<compile_context>
chip_gen: v5e
topology: v5e:2x2
jax: 0.10.0
libtpu: 0.0.40
codegen_flags: <defaults>
</compile_context>

<pallas_src>
import jax
import jax.numpy as jnp
from jax.experimental import pallas as pl
from jax.experimental.pallas import tpu as pltpu

EPS = 1e-5


# ---------------------------------------------------------------------------
# Fused Pallas kernel (one batch element, both streams, all stages in VMEM)
# ---------------------------------------------------------------------------
def _fused_bottleneck_kernel(x_ref, w1d_ref, b1_ref, bd_ref,
                             w2_ref, b2_ref, keep_ref,
                             w3_ref, b3_ref,
                             o_ref,
                             pad_ref, h2_ref, ds_ref):
    """Whole bottleneck for one batch element, both streams.

    x_ref   : (2, 1, H, W, Cin_p)    bf16   (stream-stacked, channel-padded)
    w1d_ref : (2, Cin_p, P_p+Cout_p) bf16   conv1|downsample fused, BN folded
    b1_ref  : (2, 1, P_p)   f32;  bd_ref : (2, 1, Cout_p) f32
    w2_ref  : (2, 9, P_p, P_p) bf16 (per-tap 3x3 weights, BN2 scale folded)
    b2_ref  : (2, 1, P_p)   f32
    keep_ref: (2, 1, P_p)   f32   (1 -> keep own channel, 0 -> take other)
    w3_ref  : (2, P_p, Cout_p) bf16; b3_ref : (2, 1, Cout_p) f32
    o_ref   : (2, 1, H, W, Cout_p) f32
    pad_ref : VMEM (2, H+2, W+2, P_p) f32   zero-halo conv2 input
    h2_ref  : VMEM (2, H*W, P_p)      f32   conv2+bn2 output (pre-exchange)
    ds_ref  : VMEM (2, H*W, Cout_p)   f32   downsample branch output
    """
    _, _, hh, ww, cin = x_ref.shape
    pp = w2_ref.shape[2]
    cc = w3_ref.shape[2]
    hw = hh * ww

    zrow = jnp.zeros((1, ww + 2, pp), jnp.float32)
    zcol = jnp.zeros((hh, 1, pp), jnp.float32)

    # ---- per-stream front end --------------------------------------------
    for s in (0, 1):
        x = x_ref[s, 0].reshape(hw, cin)                       # bf16

        # conv1(+bn1 scale) and downsample(+bn scale) fused into one matmul:
        # shared LHS, N = P_p + Cout_p keeps the MXU columns full.
        h0 = jnp.dot(x, w1d_ref[s], preferred_element_type=jnp.float32)
        h1 = jnp.maximum(h0[:, :pp] + b1_ref[s], 0.0)          # relu(bn1)
        ds_ref[s, :, :] = h0[:, pp:] + bd_ref[s]               # cached for +=

        # Zero only the 1-pixel halo strips (every step: cheap and correct
        # even when the batch axis is megacore-sharded); interior is fully
        # overwritten each step.
        pad_ref[s, 0:1, :, :] = zrow
        pad_ref[s, hh + 1:hh + 2, :, :] = zrow
        pad_ref[s, 1:hh + 1, 0:1, :] = zcol
        pad_ref[s, 1:hh + 1, ww + 1:ww + 2, :] = zcol
        pad_ref[s, 1:hh + 1, 1:ww + 1, :] = h1.reshape(hh, ww, pp)

        # 3x3 conv (+bn2) = 9 accumulated MXU matmuls (no im2col concat).
        acc = jnp.zeros((hw, pp), jnp.float32)
        for ky in range(3):
            for kx in range(3):
                win = pad_ref[s, ky:ky + hh, kx:kx + ww, :].reshape(hw, pp)
                acc = acc + jnp.dot(win.astype(jnp.bfloat16),
                                    w2_ref[s, ky * 3 + kx],
                                    preferred_element_type=jnp.float32)
        h2_ref[s, :, :] = acc + b2_ref[s]

    # ---- CEN channel exchange + ReLU (f32 VPU path) ------------------------
    h2_t = h2_ref[0]
    h2_f = h2_ref[1]
    e_t = jnp.maximum(jnp.where(keep_ref[0] > 0.5, h2_t, h2_f), 0.0)
    e_f = jnp.maximum(jnp.where(keep_ref[1] > 0.5, h2_f, h2_t), 0.0)

    # ---- stage 3: conv3+bn3 + (precomputed) downsample + add + ReLU --------
    for s, e in ((0, e_t), (1, e_f)):
        y = (jnp.dot(e.astype(jnp.bfloat16), w3_ref[s],
                     preferred_element_type=jnp.float32)
             + b3_ref[s] + ds_ref[s])
        o_ref[s, 0, :, :, :] = jnp.maximum(y, 0.0).reshape(hh, ww, cc)


# ---------------------------------------------------------------------------
# Wrapper: fold BN, pad channels to 128, stack streams, one pallas_call
# ---------------------------------------------------------------------------
def _round_up(v, m=128):
    return ((v + m - 1) // m) * m


def _pad_axis(a, axis, size):
    pad = [(0, 0)] * a.ndim
    pad[axis] = (0, size - a.shape[axis])
    return jnp.pad(a, pad)


def bottleneck_fusion_forward(p, x_t, x_f, bn_threshold=0.02):
    # x_t, x_f: NHWC f32
    n, hh, ww, cin = x_t.shape
    planes = p["w1_t"].shape[1]
    cout = p["w3_t"].shape[1]

    cin_p = _round_up(cin)
    pp = _round_up(planes)
    cc = _round_up(cout)
    hw = hh * ww

    # Stack streams + pad channels (lane-dense), cast activations to bf16.
    x = jnp.stack([x_t, x_f])                                   # (2,N,H,W,Cin)
    x = _pad_axis(x, 4, cin_p).astype(jnp.bfloat16)

    def fold(w_, s_):                    # fold per-output-channel BN scale
        return w_ * s_

    def pad2(w, r, c):
        return jnp.pad(w, ((0, r - w.shape[0]), (0, c - w.shape[1])))

    def pad1(v, c, cv=0.0):
        return jnp.pad(v, (0, c - v.shape[0]), constant_values=cv)

    # Fused conv1(+bn1) | downsample(+bn) weights: (2, Cin_p, P_p + Cout_p)
    w1d = jnp.stack([
        jnp.concatenate([pad2(fold(p["w1_t"], p["s1_t"]), cin_p, pp),
                         pad2(fold(p["wd_t"], p["sd_t"]), cin_p, cc)], axis=1),
        jnp.concatenate([pad2(fold(p["w1_f"], p["s1_f"]), cin_p, pp),
                         pad2(fold(p["wd_f"], p["sd_f"]), cin_p, cc)], axis=1),
    ]).astype(jnp.bfloat16)
    b1 = jnp.stack([pad1(p["b1_t"], pp), pad1(p["b1_f"], pp)]).reshape(2, 1, pp)
    bd = jnp.stack([pad1(p["bd_t"], cc), pad1(p["bd_f"], cc)]).reshape(2, 1, cc)

    # 3x3 conv (+bn2) per-tap weights: (2, 9, P_p, P_p)
    def w2pad(w, s_):
        wf = w * s_                                             # (9, P, P)
        return jnp.pad(wf, ((0, 0), (0, pp - wf.shape[1]),
                            (0, pp - wf.shape[2])))
    w2 = jnp.stack([w2pad(p["w2_t"], p["s2_t"]),
                    w2pad(p["w2_f"], p["s2_f"])]).astype(jnp.bfloat16)
    b2 = jnp.stack([pad1(p["b2_t"], pp), pad1(p["b2_f"], pp)]).reshape(2, 1, pp)

    # CEN keep mask; padded channels keep their own (zero) values.
    keep = jnp.stack([
        pad1((jnp.abs(p["g2_t"]) >= bn_threshold).astype(jnp.float32), pp, 1.0),
        pad1((jnp.abs(p["g2_f"]) >= bn_threshold).astype(jnp.float32), pp, 1.0),
    ]).reshape(2, 1, pp)

    w3 = jnp.stack([pad2(fold(p["w3_t"], p["s3_t"]), pp, cc),
                    pad2(fold(p["w3_f"], p["s3_f"]), pp, cc)]).astype(jnp.bfloat16)
    b3 = jnp.stack([pad1(p["b3_t"], cc), pad1(p["b3_f"], cc)]).reshape(2, 1, cc)

    out = pl.pallas_call(
        _fused_bottleneck_kernel,
        out_shape=jax.ShapeDtypeStruct((2, n, hh, ww, cc), jnp.float32),
        grid=(n,),
        in_specs=[
            pl.BlockSpec((2, 1, hh, ww, cin_p), lambda b: (0, b, 0, 0, 0)),
            pl.BlockSpec((2, cin_p, pp + cc), lambda b: (0, 0, 0)),
            pl.BlockSpec((2, 1, pp), lambda b: (0, 0, 0)),
            pl.BlockSpec((2, 1, cc), lambda b: (0, 0, 0)),
            pl.BlockSpec((2, 9, pp, pp), lambda b: (0, 0, 0, 0)),
            pl.BlockSpec((2, 1, pp), lambda b: (0, 0, 0)),
            pl.BlockSpec((2, 1, pp), lambda b: (0, 0, 0)),
            pl.BlockSpec((2, pp, cc), lambda b: (0, 0, 0)),
            pl.BlockSpec((2, 1, cc), lambda b: (0, 0, 0)),
        ],
        out_specs=pl.BlockSpec((2, 1, hh, ww, cc), lambda b: (0, b, 0, 0, 0)),
        scratch_shapes=[
            pltpu.VMEM((2, hh + 2, ww + 2, pp), jnp.float32),   # padded conv2 in
            pltpu.VMEM((2, hw, pp), jnp.float32),               # conv2+bn2 out
            pltpu.VMEM((2, hw, cc), jnp.float32),               # downsample out
        ],
        compiler_params=pltpu.CompilerParams(
            dimension_semantics=("parallel",)),
    )(x, w1d, b1, bd, w2, b2, keep, w3, b3)

    return out[0, :, :, :, :cout], out[1, :, :, :, :cout]


# ---------------------------------------------------------------------------
# Parameter setup (deterministic, inference-mode BN folded to scale/shift)
# ---------------------------------------------------------------------------
def _fold_bn(gamma, beta, mean, var):
    scale = gamma / jnp.sqrt(var + EPS)
    shift = beta - mean * scale
    return scale, shift


def init_params(key, in_planes, planes, expansion=4):
    out_planes = expansion * planes
    ks = jax.random.split(key, 32)
    ki = iter(range(32))

    def wgt(shape, fan_in):
        return (jax.random.normal(ks[next(ki)], shape, jnp.float32)
                / jnp.sqrt(jnp.float32(fan_in)))

    def bn_params(c, gamma=None):
        if gamma is None:
            gamma = 1.0 + 0.1 * jax.random.normal(ks[next(ki)], (c,), jnp.float32)
        beta = 0.1 * jax.random.normal(ks[next(ki)], (c,), jnp.float32)
        mean = 0.1 * jax.random.normal(ks[next(ki)], (c,), jnp.float32)
        var = jnp.ones((c,), jnp.float32)
        return gamma, beta, mean, var

    p = {}
    # stage 1: 1x1 conv in_planes -> planes
    for tag in ("t", "f"):
        p[f"w1_{tag}"] = wgt((in_planes, planes), in_planes)
        g, b, m, v = bn_params(planes)
        p[f"s1_{tag}"], p[f"b1_{tag}"] = _fold_bn(g, b, m, v)

    # stage 2: 3x3 conv planes -> planes; bn2 gammas drive the exchange
    gamma2_t = jnp.array([1.0, 0.01, 0.5, -0.015, 0.3, 0.8, 0.005, 1.2],
                         jnp.float32)[:planes]
    gamma2_f = jnp.array([0.9, 0.6, -0.01, 0.7, 0.018, 1.1, 0.4, -0.008],
                         jnp.float32)[:planes]
    for tag, g2 in (("t", gamma2_t), ("f", gamma2_f)):
        p[f"w2_{tag}"] = wgt((9, planes, planes), 9 * planes)
        g, b, m, v = bn_params(planes, gamma=g2)
        p[f"s2_{tag}"], p[f"b2_{tag}"] = _fold_bn(g, b, m, v)
        p[f"g2_{tag}"] = g2

    # stage 3: 1x1 conv planes -> out_planes
    for tag in ("t", "f"):
        p[f"w3_{tag}"] = wgt((planes, out_planes), planes)
        g, b, m, v = bn_params(out_planes)
        p[f"s3_{tag}"], p[f"b3_{tag}"] = _fold_bn(g, b, m, v)

    # downsample: 1x1 conv in_planes -> out_planes + BN
    for tag in ("t", "f"):
        p[f"wd_{tag}"] = wgt((in_planes, out_planes), in_planes)
        g, b, m, v = bn_params(out_planes)
        p[f"sd_{tag}"], p[f"bd_{tag}"] = _fold_bn(g, b, m, v)
    return p


# ---------------------------------------------------------------------------
# Pure-JAX f32 reference (matches the PyTorch module semantics)
# ---------------------------------------------------------------------------
def reference_forward(p, x_t, x_f, bn_threshold=0.02):
    dn = ("NHWC", "HWIO", "NHWC")

    def c1(x, w):
        return jax.lax.conv_general_dilated(
            x, w.reshape(1, 1, *w.shape), (1, 1), "VALID", dimension_numbers=dn)

    def c3(x, w):
        return jax.lax.conv_general_dilated(
            x, w.reshape(3, 3, w.shape[1], w.shape[2]), (1, 1),
            ((1, 1), (1, 1)), dimension_numbers=dn)

    def bn(x, s, b):
        return x * s + b

    out_t = jax.nn.relu(bn(c1(x_t, p["w1_t"]), p["s1_t"], p["b1_t"]))
    out_f = jax.nn.relu(bn(c1(x_f, p["w1_f"]), p["s1_f"], p["b1_f"]))
    out_t = bn(c3(out_t, p["w2_t"]), p["s2_t"], p["b2_t"])
    out_f = bn(c3(out_f, p["w2_f"]), p["s2_f"], p["b2_f"])
    keep_t = jnp.abs(p["g2_t"]) >= bn_threshold
    keep_f = jnp.abs(p["g2_f"]) >= bn_threshold
    xt, xf = out_t, out_f
    out_t = jnp.where(keep_t, xt, xf)
    out_f = jnp.where(keep_f, xf, xt)
    out_t, out_f = jax.nn.relu(out_t), jax.nn.relu(out_f)
    out_t = bn(c1(out_t, p["w3_t"]), p["s3_t"], p["b3_t"])
    out_f = bn(c1(out_f, p["w3_f"]), p["s3_f"], p["b3_f"])
    out_t = out_t + bn(c1(x_t, p["wd_t"]), p["sd_t"], p["bd_t"])
    out_f = out_f + bn(c1(x_f, p["wd_f"]), p["sd_f"], p["bd_f"])
    return jax.nn.relu(out_t), jax.nn.relu(out_f)


# ---------------------------------------------------------------------------
if __name__ == "__main__":
    N, IN_PLANES, PLANES, H, W = 2, 16, 8, 8, 8
    key = jax.random.PRNGKey(0)
    kx, kxf, kp = jax.random.split(key, 3)

    # PyTorch-style NCHW inputs, converted to NHWC for the TPU kernel.
    x_t_nchw = jax.random.normal(kx, (N, IN_PLANES, H, W), jnp.float32)
    x_f_nchw = jax.random.normal(kxf, (N, IN_PLANES, H, W), jnp.float32)
    x_t = jnp.transpose(x_t_nchw, (0, 2, 3, 1))
    x_f = jnp.transpose(x_f_nchw, (0, 2, 3, 1))

    params = init_params(kp, IN_PLANES, PLANES)

    out_t, out_f = bottleneck_fusion_forward(params, x_t, x_f, bn_threshold=0.02)
    out_t = jax.block_until_ready(out_t)
    out_f = jax.block_until_ready(out_f)

    ref_t, ref_f = reference_forward(params, x_t, x_f, bn_threshold=0.02)
    assert out_t.shape == (N, H, W, 4 * PLANES)
    assert out_f.shape == (N, H, W, 4 * PLANES)
    # bf16 MXU operands vs f32 reference -> loosened tolerance.
    assert jnp.allclose(out_t, ref_t, atol=5e-2, rtol=5e-2)
    assert jnp.allclose(out_f, ref_f, atol=5e-2, rtol=5e-2)

    print("KERNEL_OK")
</pallas_src>

<mosaic_0001>
module attributes {stable_mosaic.version = 11 : i64} {
  func.func @_fused_bottleneck_kernel(%arg0: i32, %arg1: memref<2x1x8x8x128xbf16, #tpu.memory_space<vmem>>, %arg2: memref<2x128x256xbf16, #tpu.memory_space<vmem>>, %arg3: memref<2x1x128xf32, #tpu.memory_space<vmem>>, %arg4: memref<2x1x128xf32, #tpu.memory_space<vmem>>, %arg5: memref<2x9x128x128xbf16, #tpu.memory_space<vmem>>, %arg6: memref<2x1x128xf32, #tpu.memory_space<vmem>>, %arg7: memref<2x1x128xf32, #tpu.memory_space<vmem>>, %arg8: memref<2x128x128xbf16, #tpu.memory_space<vmem>>, %arg9: memref<2x1x128xf32, #tpu.memory_space<vmem>>, %arg10: memref<2x1x8x8x128xf32, #tpu.memory_space<vmem>>, %arg11: memref<2x10x10x128xf32, #tpu.memory_space<vmem>>, %arg12: memref<2x64x128xf32, #tpu.memory_space<vmem>>, %arg13: memref<2x64x128xf32, #tpu.memory_space<vmem>>) attributes {dimension_semantics = [#tpu.dimension_semantics<parallel>], iteration_bounds = array<i64: 2>, scalar_prefetch = 0 : i64, scratch_operands = 3 : i64, tpu.core_type = #tpu.core_type<tc>, window_params = [{transform_indices = @transform_0, window_bounds = array<i64: 2, 1, 8, 8, 128>}, {pipeline_mode = #tpu.pipeline_mode<synchronous>, transform_indices = @transform_1, window_bounds = array<i64: 2, 128, 256>}, {pipeline_mode = #tpu.pipeline_mode<synchronous>, transform_indices = @transform_2, window_bounds = array<i64: 2, 1, 128>}, {pipeline_mode = #tpu.pipeline_mode<synchronous>, transform_indices = @transform_3, window_bounds = array<i64: 2, 1, 128>}, {pipeline_mode = #tpu.pipeline_mode<synchronous>, transform_indices = @transform_4, window_bounds = array<i64: 2, 9, 128, 128>}, {pipeline_mode = #tpu.pipeline_mode<synchronous>, transform_indices = @transform_5, window_bounds = array<i64: 2, 1, 128>}, {pipeline_mode = #tpu.pipeline_mode<synchronous>, transform_indices = @transform_6, window_bounds = array<i64: 2, 1, 128>}, {pipeline_mode = #tpu.pipeline_mode<synchronous>, transform_indices = @transform_7, window_bounds = array<i64: 2, 128, 128>}, {pipeline_mode = #tpu.pipeline_mode<synchronous>, transform_indices = @transform_8, window_bounds = array<i64: 2, 1, 128>}, {transform_indices = @transform_9, window_bounds = array<i64: 2, 1, 8, 8, 128>}]} {
    %cst = arith.constant 0.000000e+00 : f32
    %0 = vector.broadcast %cst : f32 to vector<1x10x128xf32>
    %cst_0 = arith.constant 0.000000e+00 : f32
    %1 = vector.broadcast %cst_0 : f32 to vector<8x1x128xf32>
    %c0 = arith.constant 0 : index
    %c0_1 = arith.constant 0 : index
    %c0_2 = arith.constant 0 : index
    %c0_3 = arith.constant 0 : index
    %c0_4 = arith.constant 0 : index
    %2 = vector.load %arg1[%c0, %c0_1, %c0_2, %c0_3, %c0_4] : memref<2x1x8x8x128xbf16, #tpu.memory_space<vmem>>, vector<1x1x8x8x128xbf16>
    %3 = vector.shape_cast %2 : vector<1x1x8x8x128xbf16> to vector<8x8x128xbf16>
    %4 = vector.shape_cast %3 : vector<8x8x128xbf16> to vector<64x128xbf16>
    %c0_5 = arith.constant 0 : index
    %c0_6 = arith.constant 0 : index
    %c0_7 = arith.constant 0 : index
    %5 = vector.load %arg2[%c0_5, %c0_6, %c0_7] : memref<2x128x256xbf16, #tpu.memory_space<vmem>>, vector<1x128x256xbf16>
    %6 = vector.shape_cast %5 : vector<1x128x256xbf16> to vector<128x256xbf16>
    %cst_8 = arith.constant dense<0.000000e+00> : vector<64x256xf32>
    %7 = tpu.matmul %4, %6, %cst_8 {dimension_numbers = #tpu.dot_dimension_numbers<[1], [0], [0], [1], [0, 0, 1, 1], [], []>} : vector<64x128xbf16>, vector<128x256xbf16>, vector<64x256xf32> -> vector<64x256xf32>
    %8 = vector.extract_strided_slice %7 {offsets = [0, 0], sizes = [64, 128], strides = [1, 1]} : vector<64x256xf32> to vector<64x128xf32>
    %c0_9 = arith.constant 0 : index
    %c0_10 = arith.constant 0 : index
    %c0_11 = arith.constant 0 : index
    %9 = vector.load %arg3[%c0_9, %c0_10, %c0_11] : memref<2x1x128xf32, #tpu.memory_space<vmem>>, vector<1x1x128xf32>
    %10 = vector.shape_cast %9 : vector<1x1x128xf32> to vector<1x128xf32>
    %11 = vector.broadcast %10 : vector<1x128xf32> to vector<64x128xf32>
    %12 = arith.addf %8, %11 : vector<64x128xf32>
    %cst_12 = arith.constant 0.000000e+00 : f32
    %13 = vector.broadcast %cst_12 : f32 to vector<64x128xf32>
    %14 = arith.maximumf %12, %13 : vector<64x128xf32>
    %15 = vector.extract_strided_slice %7 {offsets = [0, 128], sizes = [64, 128], strides = [1, 1]} : vector<64x256xf32> to vector<64x128xf32>
    %c0_13 = arith.constant 0 : index
    %c0_14 = arith.constant 0 : index
    %c0_15 = arith.constant 0 : index
    %16 = vector.load %arg4[%c0_13, %c0_14, %c0_15] : memref<2x1x128xf32, #tpu.memory_space<vmem>>, vector<1x1x128xf32>
    %17 = vector.shape_cast %16 : vector<1x1x128xf32> to vector<1x128xf32>
    %18 = vector.broadcast %17 : vector<1x128xf32> to vector<64x128xf32>
    %19 = arith.addf %15, %18 : vector<64x128xf32>
    %c0_16 = arith.constant 0 : index
    %c0_17 = arith.constant 0 : index
    %c0_18 = arith.constant 0 : index
    %20 = vector.load %arg13[%c0_16, %c0_17, %c0_18] : memref<2x64x128xf32, #tpu.memory_space<vmem>>, vector<1x64x128xf32>
    %21 = vector.shape_cast %20 : vector<1x64x128xf32> to vector<64x128xf32>
    %22 = vector.shape_cast %19 : vector<64x128xf32> to vector<1x64x128xf32>
    tpu.vector_store %arg13[%c0_16, %c0_17, %c0_18], %22 {strides = array<i32>} : memref<2x64x128xf32, #tpu.memory_space<vmem>>, vector<1x64x128xf32>,
    %c0_19 = arith.constant 0 : index
    %c0_20 = arith.constant 0 : index
    %c0_21 = arith.constant 0 : index
    %c0_22 = arith.constant 0 : index
    %23 = vector.load %arg11[%c0_19, %c0_20, %c0_21, %c0_22] : memref<2x10x10x128xf32, #tpu.memory_space<vmem>>, vector<1x1x10x128xf32>
    %24 = vector.shape_cast %23 : vector<1x1x10x128xf32> to vector<1x10x128xf32>
    %25 = vector.shape_cast %0 : vector<1x10x128xf32> to vector<1x1x10x128xf32>
    tpu.vector_store %arg11[%c0_19, %c0_20, %c0_21, %c0_22], %25 {strides = array<i32>} : memref<2x10x10x128xf32, #tpu.memory_space<vmem>>, vector<1x1x10x128xf32>,
    %c0_23 = arith.constant 0 : index
    %c9 = arith.constant 9 : index
    %c0_24 = arith.constant 0 : index
    %c0_25 = arith.constant 0 : index
    %26 = vector.load %arg11[%c0_23, %c9, %c0_24, %c0_25] : memref<2x10x10x128xf32, #tpu.memory_space<vmem>>, vector<1x1x10x128xf32>
    %27 = vector.shape_cast %26 : vector<1x1x10x128xf32> to vector<1x10x128xf32>
    %28 = vector.shape_cast %0 : vector<1x10x128xf32> to vector<1x1x10x128xf32>
    tpu.vector_store %arg11[%c0_23, %c9, %c0_24, %c0_25], %28 {strides = array<i32>} : memref<2x10x10x128xf32, #tpu.memory_space<vmem>>, vector<1x1x10x128xf32>,
    %c0_26 = arith.constant 0 : index
    %c1 = arith.constant 1 : index
    %c0_27 = arith.constant 0 : index
    %c0_28 = arith.constant 0 : index
    %29 = vector.load %arg11[%c0_26, %c1, %c0_27, %c0_28] : memref<2x10x10x128xf32, #tpu.memory_space<vmem>>, vector<1x8x1x128xf32>
    %30 = vector.shape_cast %29 : vector<1x8x1x128xf32> to vector<8x1x128xf32>
    %31 = vector.shape_cast %1 : vector<8x1x128xf32> to vector<1x8x1x128xf32>
    tpu.vector_store %arg11[%c0_26, %c1, %c0_27, %c0_28], %31 {strides = array<i32>} : memref<2x10x10x128xf32, #tpu.memory_space<vmem>>, vector<1x8x1x128xf32>,
    %c0_29 = arith.constant 0 : index
    %c1_30 = arith.constant 1 : index
    %c9_31 = arith.constant 9 : index
    %c0_32 = arith.constant 0 : index
    %32 = vector.load %arg11[%c0_29, %c1_30, %c9_31, %c0_32] : memref<2x10x10x128xf32, #tpu.memory_space<vmem>>, vector<1x8x1x128xf32>
    %33 = vector.shape_cast %32 : vector<1x8x1x128xf32> to vector<8x1x128xf32>
    %34 = vector.shape_cast %1 : vector<8x1x128xf32> to vector<1x8x1x128xf32>
    tpu.vector_store %arg11[%c0_29, %c1_30, %c9_31, %c0_32], %34 {strides = array<i32>} : memref<2x10x10x128xf32, #tpu.memory_space<vmem>>, vector<1x8x1x128xf32>,
    %35 = vector.shape_cast %14 : vector<64x128xf32> to vector<8x8x128xf32>
    %c0_33 = arith.constant 0 : index
    %c1_34 = arith.constant 1 : index
    %c1_35 = arith.constant 1 : index
    %c0_36 = arith.constant 0 : index
    %36 = vector.load %arg11[%c0_33, %c1_34, %c1_35, %c0_36] : memref<2x10x10x128xf32, #tpu.memory_space<vmem>>, vector<1x8x8x128xf32>
    %37 = vector.shape_cast %36 : vector<1x8x8x128xf32> to vector<8x8x128xf32>
    %38 = vector.shape_cast %35 : vector<8x8x128xf32> to vector<1x8x8x128xf32>
    tpu.vector_store %arg11[%c0_33, %c1_34, %c1_35, %c0_36], %38 {strides = array<i32>} : memref<2x10x10x128xf32, #tpu.memory_space<vmem>>, vector<1x8x8x128xf32>,
    %cst_37 = arith.constant 0.000000e+00 : f32
    %39 = vector.broadcast %cst_37 : f32 to vector<64x128xf32>
    %c0_38 = arith.constant 0 : index
    %c0_39 = arith.constant 0 : index
    %c0_40 = arith.constant 0 : index
    %c0_41 = arith.constant 0 : index
    %40 = vector.load %arg11[%c0_38, %c0_39, %c0_40, %c0_41] : memref<2x10x10x128xf32, #tpu.memory_space<vmem>>, vector<1x8x8x128xf32>
    %41 = vector.shape_cast %40 : vector<1x8x8x128xf32> to vector<8x8x128xf32>
    %42 = vector.shape_cast %41 : vector<8x8x128xf32> to vector<64x128xf32>
    %43 = arith.truncf %42 : vector<64x128xf32> to vector<64x128xbf16>
    %c0_42 = arith.constant 0 : index
    %c0_43 = arith.constant 0 : index
    %c0_44 = arith.constant 0 : index
    %c0_45 = arith.constant 0 : index
    %44 = vector.load %arg5[%c0_42, %c0_43, %c0_44, %c0_45] : memref<2x9x128x128xbf16, #tpu.memory_space<vmem>>, vector<1x1x128x128xbf16>
    %45 = vector.shape_cast %44 : vector<1x1x128x128xbf16> to vector<128x128xbf16>
    %cst_46 = arith.constant dense<0.000000e+00> : vector<64x128xf32>
    %46 = tpu.matmul %43, %45, %cst_46 {dimension_numbers = #tpu.dot_dimension_numbers<[1], [0], [0], [1], [0, 0, 1, 1], [], []>} : vector<64x128xbf16>, vector<128x128xbf16>, vector<64x128xf32> -> vector<64x128xf32>
    %47 = arith.addf %39, %46 : vector<64x128xf32>
    %c0_47 = arith.constant 0 : index
    %c0_48 = arith.constant 0 : index
    %c1_49 = arith.constant 1 : index
    %c0_50 = arith.constant 0 : index
    %48 = vector.load %arg11[%c0_47, %c0_48, %c1_49, %c0_50] : memref<2x10x10x128xf32, #tpu.memory_space<vmem>>, vector<1x8x8x128xf32>
    %49 = vector.shape_cast %48 : vector<1x8x8x128xf32> to vector<8x8x128xf32>
    %50 = vector.shape_cast %49 : vector<8x8x128xf32> to vector<64x128xf32>
    %51 = arith.truncf %50 : vector<64x128xf32> to vector<64x128xbf16>
    %c0_51 = arith.constant 0 : index
    %c1_52 = arith.constant 1 : index
    %c0_53 = arith.constant 0 : index
    %c0_54 = arith.constant 0 : index
    %52 = vector.load %arg5[%c0_51, %c1_52, %c0_53, %c0_54] : memref<2x9x128x128xbf16, #tpu.memory_space<vmem>>, vector<1x1x128x128xbf16>
    %53 = vector.shape_cast %52 : vector<1x1x128x128xbf16> to vector<128x128xbf16>
    %cst_55 = arith.constant dense<0.000000e+00> : vector<64x128xf32>
    %54 = tpu.matmul %51, %53, %cst_55 {dimension_numbers = #tpu.dot_dimension_numbers<[1], [0], [0], [1], [0, 0, 1, 1], [], []>} : vector<64x128xbf16>, vector<128x128xbf16>, vector<64x128xf32> -> vector<64x128xf32>
    %55 = arith.addf %47, %54 : vector<64x128xf32>
    %c0_56 = arith.constant 0 : index
    %c0_57 = arith.constant 0 : index
    %c2 = arith.constant 2 : index
    %c0_58 = arith.constant 0 : index
    %56 = vector.load %arg11[%c0_56, %c0_57, %c2, %c0_58] : memref<2x10x10x128xf32, #tpu.memory_space<vmem>>, vector<1x8x8x128xf32>
    %57 = vector.shape_cast %56 : vector<1x8x8x128xf32> to vector<8x8x128xf32>
    %58 = vector.shape_cast %57 : vector<8x8x128xf32> to vector<64x128xf32>
    %59 = arith.truncf %58 : vector<64x128xf32> to vector<64x128xbf16>
    %c0_59 = arith.constant 0 : index
    %c2_60 = arith.constant 2 : index
    %c0_61 = arith.constant 0 : index
    %c0_62 = arith.constant 0 : index
    %60 = vector.load %arg5[%c0_59, %c2_60, %c0_61, %c0_62] : memref<2x9x128x128xbf16, #tpu.memory_space<vmem>>, vector<1x1x128x128xbf16>
    %61 = vector.shape_cast %60 : vector<1x1x128x128xbf16> to vector<128x128xbf16>
    %cst_63 = arith.constant dense<0.000000e+00> : vector<64x128xf32>
    %62 = tpu.matmul %59, %61, %cst_63 {dimension_numbers = #tpu.dot_dimension_numbers<[1], [0], [0], [1], [0, 0, 1, 1], [], []>} : vector<64x128xbf16>, vector<128x128xbf16>, vector<64x128xf32> -> vector<64x128xf32>
    %63 = arith.addf %55, %62 : vector<64x128xf32>
    %c0_64 = arith.constant 0 : index
    %c1_65 = arith.constant 1 : index
    %c0_66 = arith.constant 0 : index
    %c0_67 = arith.constant 0 : index
    %64 = vector.load %arg11[%c0_64, %c1_65, %c0_66, %c0_67] : memref<2x10x10x128xf32, #tpu.memory_space<vmem>>, vector<1x8x8x128xf32>
    %65 = vector.shape_cast %64 : vector<1x8x8x128xf32> to vector<8x8x128xf32>
    %66 = vector.shape_cast %65 : vector<8x8x128xf32> to vector<64x128xf32>
    %67 = arith.truncf %66 : vector<64x128xf32> to vector<64x128xbf16>
    %c0_68 = arith.constant 0 : index
    %c3 = arith.constant 3 : index
    %c0_69 = arith.constant 0 : index
    %c0_70 = arith.constant 0 : index
    %68 = vector.load %arg5[%c0_68, %c3, %c0_69, %c0_70] : memref<2x9x128x128xbf16, #tpu.memory_space<vmem>>, vector<1x1x128x128xbf16>
    %69 = vector.shape_cast %68 : vector<1x1x128x128xbf16> to vector<128x128xbf16>
    %cst_71 = arith.constant dense<0.000000e+00> : vector<64x128xf32>
    %70 = tpu.matmul %67, %69, %cst_71 {dimension_numbers = #tpu.dot_dimension_numbers<[1], [0], [0], [1], [0, 0, 1, 1], [], []>} : vector<64x128xbf16>, vector<128x128xbf16>, vector<64x128xf32> -> vector<64x128xf32>
    %71 = arith.addf %63, %70 : vector<64x128xf32>
    %c0_72 = arith.constant 0 : index
    %c1_73 = arith.constant 1 : index
    %c1_74 = arith.constant 1 : index
    %c0_75 = arith.constant 0 : index
    %72 = vector.load %arg11[%c0_72, %c1_73, %c1_74, %c0_75] : memref<2x10x10x128xf32, #tpu.memory_space<vmem>>, vector<1x8x8x128xf32>
    %73 = vector.shape_cast %72 : vector<1x8x8x128xf32> to vector<8x8x128xf32>
    %74 = vector.shape_cast %73 : vector<8x8x128xf32> to vector<64x128xf32>
    %75 = arith.truncf %74 : vector<64x128xf32> to vector<64x128xbf16>
    %c0_76 = arith.constant 0 : index
    %c4 = arith.constant 4 : index
    %c0_77 = arith.constant 0 : index
    %c0_78 = arith.constant 0 : index
    %76 = vector.load %arg5[%c0_76, %c4, %c0_77, %c0_78] : memref<2x9x128x128xbf16, #tpu.memory_space<vmem>>, vector<1x1x128x128xbf16>
    %77 = vector.shape_cast %76 : vector<1x1x128x128xbf16> to vector<128x128xbf16>
    %cst_79 = arith.constant dense<0.000000e+00> : vector<64x128xf32>
    %78 = tpu.matmul %75, %77, %cst_79 {dimension_numbers = #tpu.dot_dimension_numbers<[1], [0], [0], [1], [0, 0, 1, 1], [], []>} : vector<64x128xbf16>, vector<128x128xbf16>, vector<64x128xf32> -> vector<64x128xf32>
    %79 = arith.addf %71, %78 : vector<64x128xf32>
    %c0_80 = arith.constant 0 : index
    %c1_81 = arith.constant 1 : index
    %c2_82 = arith.constant 2 : index
    %c0_83 = arith.constant 0 : index
    %80 = vector.load %arg11[%c0_80, %c1_81, %c2_82, %c0_83] : memref<2x10x10x128xf32, #tpu.memory_space<vmem>>, vector<1x8x8x128xf32>
    %81 = vector.shape_cast %80 : vector<1x8x8x128xf32> to vector<8x8x128xf32>
    %82 = vector.shape_cast %81 : vector<8x8x128xf32> to vector<64x128xf32>
    %83 = arith.truncf %82 : vector<64x128xf32> to vector<64x128xbf16>
    %c0_84 = arith.constant 0 : index
    %c5 = arith.constant 5 : index
    %c0_85 = arith.constant 0 : index
    %c0_86 = arith.constant 0 : index
    %84 = vector.load %arg5[%c0_84, %c5, %c0_85, %c0_86] : memref<2x9x128x128xbf16, #tpu.memory_space<vmem>>, vector<1x1x128x128xbf16>
    %85 = vector.shape_cast %84 : vector<1x1x128x128xbf16> to vector<128x128xbf16>
    %cst_87 = arith.constant dense<0.000000e+00> : vector<64x128xf32>
    %86 = tpu.matmul %83, %85, %cst_87 {dimension_numbers = #tpu.dot_dimension_numbers<[1], [0], [0], [1], [0, 0, 1, 1], [], []>} : vector<64x128xbf16>, vector<128x128xbf16>, vector<64x128xf32> -> vector<64x128xf32>
    %87 = arith.addf %79, %86 : vector<64x128xf32>
    %c0_88 = arith.constant 0 : index
    %c2_89 = arith.constant 2 : index
    %c0_90 = arith.constant 0 : index
    %c0_91 = arith.constant 0 : index
    %88 = vector.load %arg11[%c0_88, %c2_89, %c0_90, %c0_91] : memref<2x10x10x128xf32, #tpu.memory_space<vmem>>, vector<1x8x8x128xf32>
    %89 = vector.shape_cast %88 : vector<1x8x8x128xf32> to vector<8x8x128xf32>
    %90 = vector.shape_cast %89 : vector<8x8x128xf32> to vector<64x128xf32>
    %91 = arith.truncf %90 : vector<64x128xf32> to vector<64x128xbf16>
    %c0_92 = arith.constant 0 : index
    %c6 = arith.constant 6 : index
    %c0_93 = arith.constant 0 : index
    %c0_94 = arith.constant 0 : index
    %92 = vector.load %arg5[%c0_92, %c6, %c0_93, %c0_94] : memref<2x9x128x128xbf16, #tpu.memory_space<vmem>>, vector<1x1x128x128xbf16>
    %93 = vector.shape_cast %92 : vector<1x1x128x128xbf16> to vector<128x128xbf16>
    %cst_95 = arith.constant dense<0.000000e+00> : vector<64x128xf32>
    %94 = tpu.matmul %91, %93, %cst_95 {dimension_numbers = #tpu.dot_dimension_numbers<[1], [0], [0], [1], [0, 0, 1, 1], [], []>} : vector<64x128xbf16>, vector<128x128xbf16>, vector<64x128xf32> -> vector<64x128xf32>
    %95 = arith.addf %87, %94 : vector<64x128xf32>
    %c0_96 = arith.constant 0 : index
    %c2_97 = arith.constant 2 : index
    %c1_98 = arith.constant 1 : index
    %c0_99 = arith.constant 0 : index
    %96 = vector.load %arg11[%c0_96, %c2_97, %c1_98, %c0_99] : memref<2x10x10x128xf32, #tpu.memory_space<vmem>>, vector<1x8x8x128xf32>
    %97 = vector.shape_cast %96 : vector<1x8x8x128xf32> to vector<8x8x128xf32>
    %98 = vector.shape_cast %97 : vector<8x8x128xf32> to vector<64x128xf32>
    %99 = arith.truncf %98 : vector<64x128xf32> to vector<64x128xbf16>
    %c0_100 = arith.constant 0 : index
    %c7 = arith.constant 7 : index
    %c0_101 = arith.constant 0 : index
    %c0_102 = arith.constant 0 : index
    %100 = vector.load %arg5[%c0_100, %c7, %c0_101, %c0_102] : memref<2x9x128x128xbf16, #tpu.memory_space<vmem>>, vector<1x1x128x128xbf16>
    %101 = vector.shape_cast %100 : vector<1x1x128x128xbf16> to vector<128x128xbf16>
    %cst_103 = arith.constant dense<0.000000e+00> : vector<64x128xf32>
    %102 = tpu.matmul %99, %101, %cst_103 {dimension_numbers = #tpu.dot_dimension_numbers<[1], [0], [0], [1], [0, 0, 1, 1], [], []>} : vector<64x128xbf16>, vector<128x128xbf16>, vector<64x128xf32> -> vector<64x128xf32>
    %103 = arith.addf %95, %102 : vector<64x128xf32>
    %c0_104 = arith.constant 0 : index
    %c2_105 = arith.constant 2 : index
    %c2_106 = arith.constant 2 : index
    %c0_107 = arith.constant 0 : index
    %104 = vector.load %arg11[%c0_104, %c2_105, %c2_106, %c0_107] : memref<2x10x10x128xf32, #tpu.memory_space<vmem>>, vector<1x8x8x128xf32>
    %105 = vector.shape_cast %104 : vector<1x8x8x128xf32> to vector<8x8x128xf32>
    %106 = vector.shape_cast %105 : vector<8x8x128xf32> to vector<64x128xf32>
    %107 = arith.truncf %106 : vector<64x128xf32> to vector<64x128xbf16>
    %c0_108 = arith.constant 0 : index
    %c8 = arith.constant 8 : index
    %c0_109 = arith.constant 0 : index
    %c0_110 = arith.constant 0 : index
    %108 = vector.load %arg5[%c0_108, %c8, %c0_109, %c0_110] : memref<2x9x128x128xbf16, #tpu.memory_space<vmem>>, vector<1x1x128x128xbf16>
    %109 = vector.shape_cast %108 : vector<1x1x128x128xbf16> to vector<128x128xbf16>
    %cst_111 = arith.constant dense<0.000000e+00> : vector<64x128xf32>
    %110 = tpu.matmul %107, %109, %cst_111 {dimension_numbers = #tpu.dot_dimension_numbers<[1], [0], [0], [1], [0, 0, 1, 1], [], []>} : vector<64x128xbf16>, vector<128x128xbf16>, vector<64x128xf32> -> vector<64x128xf32>
    %111 = arith.addf %103, %110 : vector<64x128xf32>
    %c0_112 = arith.constant 0 : index
    %c0_113 = arith.constant 0 : index
    %c0_114 = arith.constant 0 : index
    %112 = vector.load %arg6[%c0_112, %c0_113, %c0_114] : memref<2x1x128xf32, #tpu.memory_space<vmem>>, vector<1x1x128xf32>
    %113 = vector.shape_cast %112 : vector<1x1x128xf32> to vector<1x128xf32>
    %114 = vector.broadcast %113 : vector<1x128xf32> to vector<64x128xf32>
    %115 = arith.addf %111, %114 : vector<64x128xf32>
    %c0_115 = arith.constant 0 : index
    %c0_116 = arith.constant 0 : index
    %c0_117 = arith.constant 0 : index
    %116 = vector.load %arg12[%c0_115, %c0_116, %c0_117] : memref<2x64x128xf32, #tpu.memory_space<vmem>>, vector<1x64x128xf32>
    %117 = vector.shape_cast %116 : vector<1x64x128xf32> to vector<64x128xf32>
    %118 = vector.shape_cast %115 : vector<64x128xf32> to vector<1x64x128xf32>
    tpu.vector_store %arg12[%c0_115, %c0_116, %c0_117], %118 {strides = array<i32>} : memref<2x64x128xf32, #tpu.memory_space<vmem>>, vector<1x64x128xf32>,
    %c1_118 = arith.constant 1 : index
    %c0_119 = arith.constant 0 : index
    %c0_120 = arith.constant 0 : index
    %c0_121 = arith.constant 0 : index
    %c0_122 = arith.constant 0 : index
    %119 = vector.load %arg1[%c1_118, %c0_119, %c0_120, %c0_121, %c0_122] : memref<2x1x8x8x128xbf16, #tpu.memory_space<vmem>>, vector<1x1x8x8x128xbf16>
    %120 = vector.shape_cast %119 : vector<1x1x8x8x128xbf16> to vector<8x8x128xbf16>
    %121 = vector.shape_cast %120 : vector<8x8x128xbf16> to vector<64x128xbf16>
    %c1_123 = arith.constant 1 : index
    %c0_124 = arith.constant 0 : index
    %c0_125 = arith.constant 0 : index
    %122 = vector.load %arg2[%c1_123, %c0_124, %c0_125] : memref<2x128x256xbf16, #tpu.memory_space<vmem>>, vector<1x128x256xbf16>
    %123 = vector.shape_cast %122 : vector<1x128x256xbf16> to vector<128x256xbf16>
    %cst_126 = arith.constant dense<0.000000e+00> : vector<64x256xf32>
    %124 = tpu.matmul %121, %123, %cst_126 {dimension_numbers = #tpu.dot_dimension_numbers<[1], [0], [0], [1], [0, 0, 1, 1], [], []>} : vector<64x128xbf16>, vector<128x256xbf16>, vector<64x256xf32> -> vector<64x256xf32>
    %125 = vector.extract_strided_slice %124 {offsets = [0, 0], sizes = [64, 128], strides = [1, 1]} : vector<64x256xf32> to vector<64x128xf32>
    %c1_127 = arith.constant 1 : index
    %c0_128 = arith.constant 0 : index
    %c0_129 = arith.constant 0 : index
    %126 = vector.load %arg3[%c1_127, %c0_128, %c0_129] : memref<2x1x128xf32, #tpu.memory_space<vmem>>, vector<1x1x128xf32>
    %127 = vector.shape_cast %126 : vector<1x1x128xf32> to vector<1x128xf32>
    %128 = vector.broadcast %127 : vector<1x128xf32> to vector<64x128xf32>
    %129 = arith.addf %125, %128 : vector<64x128xf32>
    %cst_130 = arith.constant 0.000000e+00 : f32
    %130 = vector.broadcast %cst_130 : f32 to vector<64x128xf32>
    %131 = arith.maximumf %129, %130 : vector<64x128xf32>
    %132 = vector.extract_strided_slice %124 {offsets = [0, 128], sizes = [64, 128], strides = [1, 1]} : vector<64x256xf32> to vector<64x128xf32>
    %c1_131 = arith.constant 1 : index
    %c0_132 = arith.constant 0 : index
    %c0_133 = arith.constant 0 : index
    %133 = vector.load %arg4[%c1_131, %c0_132, %c0_133] : memref<2x1x128xf32, #tpu.memory_space<vmem>>, vector<1x1x128xf32>
    %134 = vector.shape_cast %133 : vector<1x1x128xf32> to vector<1x128xf32>
    %135 = vector.broadcast %134 : vector<1x128xf32> to vector<64x128xf32>
    %136 = arith.addf %132, %135 : vector<64x128xf32>
    %c1_134 = arith.constant 1 : index
    %c0_135 = arith.constant 0 : index
    %c0_136 = arith.constant 0 : index
    %137 = vector.load %arg13[%c1_134, %c0_135, %c0_136] : memref<2x64x128xf32, #tpu.memory_space<vmem>>, vector<1x64x128xf32>
    %138 = vector.shape_cast %137 : vector<1x64x128xf32> to vector<64x128xf32>
    %139 = vector.shape_cast %136 : vector<64x128xf32> to vector<1x64x128xf32>
    tpu.vector_store %arg13[%c1_134, %c0_135, %c0_136], %139 {strides = array<i32>} : memref<2x64x128xf32, #tpu.memory_space<vmem>>, vector<1x64x128xf32>,
    %c1_137 = arith.constant 1 : index
    %c0_138 = arith.constant 0 : index
    %c0_139 = arith.constant 0 : index
    %c0_140 = arith.constant 0 : index
    %140 = vector.load %arg11[%c1_137, %c0_138, %c0_139, %c0_140] : memref<2x10x10x128xf32, #tpu.memory_space<vmem>>, vector<1x1x10x128xf32>
    %141 = vector.shape_cast %140 : vector<1x1x10x128xf32> to vector<1x10x128xf32>
    %142 = vector.shape_cast %0 : vector<1x10x128xf32> to vector<1x1x10x128xf32>
    tpu.vector_store %arg11[%c1_137, %c0_138, %c0_139, %c0_140], %142 {strides = array<i32>} : memref<2x10x10x128xf32, #tpu.memory_space<vmem>>, vector<1x1x10x128xf32>,
    %c1_141 = arith.constant 1 : index
    %c9_142 = arith.constant 9 : index
    %c0_143 = arith.constant 0 : index
    %c0_144 = arith.constant 0 : index
    %143 = vector.load %arg11[%c1_141, %c9_142, %c0_143, %c0_144] : memref<2x10x10x128xf32, #tpu.memory_space<vmem>>, vector<1x1x10x128xf32>
    %144 = vector.shape_cast %143 : vector<1x1x10x128xf32> to vector<1x10x128xf32>
    %145 = vector.shape_cast %0 : vector<1x10x128xf32> to vector<1x1x10x128xf32>
    tpu.vector_store %arg11[%c1_141, %c9_142, %c0_143, %c0_144], %145 {strides = array<i32>} : memref<2x10x10x128xf32, #tpu.memory_space<vmem>>, vector<1x1x10x128xf32>,
    %c1_145 = arith.constant 1 : index
    %c1_146 = arith.constant 1 : index
    %c0_147 = arith.constant 0 : index
    %c0_148 = arith.constant 0 : index
    %146 = vector.load %arg11[%c1_145, %c1_146, %c0_147, %c0_148] : memref<2x10x10x128xf32, #tpu.memory_space<vmem>>, vector<1x8x1x128xf32>
    %147 = vector.shape_cast %146 : vector<1x8x1x128xf32> to vector<8x1x128xf32>
    %148 = vector.shape_cast %1 : vector<8x1x128xf32> to vector<1x8x1x128xf32>
    tpu.vector_store %arg11[%c1_145, %c1_146, %c0_147, %c0_148], %148 {strides = array<i32>} : memref<2x10x10x128xf32, #tpu.memory_space<vmem>>, vector<1x8x1x128xf32>,
    %c1_149 = arith.constant 1 : index
    %c1_150 = arith.constant 1 : index
    %c9_151 = arith.constant 9 : index
    %c0_152 = arith.constant 0 : index
    %149 = vector.load %arg11[%c1_149, %c1_150, %c9_151, %c0_152] : memref<2x10x10x128xf32, #tpu.memory_space<vmem>>, vector<1x8x1x128xf32>
    %150 = vector.shape_cast %149 : vector<1x8x1x128xf32> to vector<8x1x128xf32>
    %151 = vector.shape_cast %1 : vector<8x1x128xf32> to vector<1x8x1x128xf32>
    tpu.vector_store %arg11[%c1_149, %c1_150, %c9_151, %c0_152], %151 {strides = array<i32>} : memref<2x10x10x128xf32, #tpu.memory_space<vmem>>, vector<1x8x1x128xf32>,
    %152 = vector.shape_cast %131 : vector<64x128xf32> to vector<8x8x128xf32>
    %c1_153 = arith.constant 1 : index
    %c1_154 = arith.constant 1 : index
    %c1_155 = arith.constant 1 : index
    %c0_156 = arith.constant 0 : index
    %153 = vector.load %arg11[%c1_153, %c1_154, %c1_155, %c0_156] : memref<2x10x10x128xf32, #tpu.memory_space<vmem>>, vector<1x8x8x128xf32>
    %154 = vector.shape_cast %153 : vector<1x8x8x128xf32> to vector<8x8x128xf32>
    %155 = vector.shape_cast %152 : vector<8x8x128xf32> to vector<1x8x8x128xf32>
    tpu.vector_store %arg11[%c1_153, %c1_154, %c1_155, %c0_156], %155 {strides = array<i32>} : memref<2x10x10x128xf32, #tpu.memory_space<vmem>>, vector<1x8x8x128xf32>,
    %cst_157 = arith.constant 0.000000e+00 : f32
    %156 = vector.broadcast %cst_157 : f32 to vector<64x128xf32>
    %c1_158 = arith.constant 1 : index
    %c0_159 = arith.constant 0 : index
    %c0_160 = arith.constant 0 : index
    %c0_161 = arith.constant 0 : index
    %157 = vector.load %arg11[%c1_158, %c0_159, %c0_160, %c0_161] : memref<2x10x10x128xf32, #tpu.memory_space<vmem>>, vector<1x8x8x128xf32>
    %158 = vector.shape_cast %157 : vector<1x8x8x128xf32> to vector<8x8x128xf32>
    %159 = vector.shape_cast %158 : vector<8x8x128xf32> to vector<64x128xf32>
    %160 = arith.truncf %159 : vector<64x128xf32> to vector<64x128xbf16>
    %c1_162 = arith.constant 1 : index
    %c0_163 = arith.constant 0 : index
    %c0_164 = arith.constant 0 : index
    %c0_165 = arith.constant 0 : index
    %161 = vector.load %arg5[%c1_162, %c0_163, %c0_164, %c0_165] : memref<2x9x128x128xbf16, #tpu.memory_space<vmem>>, vector<1x1x128x128xbf16>
    %162 = vector.shape_cast %161 : vector<1x1x128x128xbf16> to vector<128x128xbf16>
    %cst_166 = arith.constant dense<0.000000e+00> : vector<64x128xf32>
    %163 = tpu.matmul %160, %162, %cst_166 {dimension_numbers = #tpu.dot_dimension_numbers<[1], [0], [0], [1], [0, 0, 1, 1], [], []>} : vector<64x128xbf16>, vector<128x128xbf16>, vector<64x128xf32> -> vector<64x128xf32>
    %164 = arith.addf %156, %163 : vector<64x128xf32>
    %c1_167 = arith.constant 1 : index
    %c0_168 = arith.constant 0 : index
    %c1_169 = arith.constant 1 : index
    %c0_170 = arith.constant 0 : index
    %165 = vector.load %arg11[%c1_167, %c0_168, %c1_169, %c0_170] : memref<2x10x10x128xf32, #tpu.memory_space<vmem>>, vector<1x8x8x128xf32>
    %166 = vector.shape_cast %165 : vector<1x8x8x128xf32> to vector<8x8x128xf32>
    %167 = vector.shape_cast %166 : vector<8x8x128xf32> to vector<64x128xf32>
    %168 = arith.truncf %167 : vector<64x128xf32> to vector<64x128xbf16>
    %c1_171 = arith.constant 1 : index
    %c1_172 = arith.constant 1 : index
    %c0_173 = arith.constant 0 : index
    %c0_174 = arith.constant 0 : index
    %169 = vector.load %arg5[%c1_171, %c1_172, %c0_173, %c0_174] : memref<2x9x128x128xbf16, #tpu.memory_space<vmem>>, vector<1x1x128x128xbf16>
    %170 = vector.shape_cast %169 : vector<1x1x128x128xbf16> to vector<128x128xbf16>
    %cst_175 = arith.constant dense<0.000000e+00> : vector<64x128xf32>
    %171 = tpu.matmul %168, %170, %cst_175 {dimension_numbers = #tpu.dot_dimension_numbers<[1], [0], [0], [1], [0, 0, 1, 1], [], []>} : vector<64x128xbf16>, vector<128x128xbf16>, vector<64x128xf32> -> vector<64x128xf32>
    %172 = arith.addf %164, %171 : vector<64x128xf32>
    %c1_176 = arith.constant 1 : index
    %c0_177 = arith.constant 0 : index
    %c2_178 = arith.constant 2 : index
    %c0_179 = arith.constant 0 : index
    %173 = vector.load %arg11[%c1_176, %c0_177, %c2_178, %c0_179] : memref<2x10x10x128xf32, #tpu.memory_space<vmem>>, vector<1x8x8x128xf32>
    %174 = vector.shape_cast %173 : vector<1x8x8x128xf32> to vector<8x8x128xf32>
    %175 = vector.shape_cast %174 : vector<8x8x128xf32> to vector<64x128xf32>
    %176 = arith.truncf %175 : vector<64x128xf32> to vector<64x128xbf16>
    %c1_180 = arith.constant 1 : index
    %c2_181 = arith.constant 2 : index
    %c0_182 = arith.constant 0 : index
    %c0_183 = arith.constant 0 : index
    %177 = vector.load %arg5[%c1_180, %c2_181, %c0_182, %c0_183] : memref<2x9x128x128xbf16, #tpu.memory_space<vmem>>, vector<1x1x128x128xbf16>
    %178 = vector.shape_cast %177 : vector<1x1x128x128xbf16> to vector<128x128xbf16>
    %cst_184 = arith.constant dense<0.000000e+00> : vector<64x128xf32>
    %179 = tpu.matmul %176, %178, %cst_184 {dimension_numbers = #tpu.dot_dimension_numbers<[1], [0], [0], [1], [0, 0, 1, 1], [], []>} : vector<64x128xbf16>, vector<128x128xbf16>, vector<64x128xf32> -> vector<64x128xf32>
    %180 = arith.addf %172, %179 : vector<64x128xf32>
    %c1_185 = arith.constant 1 : index
    %c1_186 = arith.constant 1 : index
    %c0_187 = arith.constant 0 : index
    %c0_188 = arith.constant 0 : index
    %181 = vector.load %arg11[%c1_185, %c1_186, %c0_187, %c0_188] : memref<2x10x10x128xf32, #tpu.memory_space<vmem>>, vector<1x8x8x128xf32>
    %182 = vector.shape_cast %181 : vector<1x8x8x128xf32> to vector<8x8x128xf32>
    %183 = vector.shape_cast %182 : vector<8x8x128xf32> to vector<64x128xf32>
    %184 = arith.truncf %183 : vector<64x128xf32> to vector<64x128xbf16>
    %c1_189 = arith.constant 1 : index
    %c3_190 = arith.constant 3 : index
    %c0_191 = arith.constant 0 : index
    %c0_192 = arith.constant 0 : index
    %185 = vector.load %arg5[%c1_189, %c3_190, %c0_191, %c0_192] : memref<2x9x128x128xbf16, #tpu.memory_space<vmem>>, vector<1x1x128x128xbf16>
    %186 = vector.shape_cast %185 : vector<1x1x128x128xbf16> to vector<128x128xbf16>
    %cst_193 = arith.constant dense<0.000000e+00> : vector<64x128xf32>
    %187 = tpu.matmul %184, %186, %cst_193 {dimension_numbers = #tpu.dot_dimension_numbers<[1], [0], [0], [1], [0, 0, 1, 1], [], []>} : vector<64x128xbf16>, vector<128x128xbf16>, vector<64x128xf32> -> vector<64x128xf32>
    %188 = arith.addf %180, %187 : vector<64x128xf32>
    %c1_194 = arith.constant 1 : index
    %c1_195 = arith.constant 1 : index
    %c1_196 = arith.constant 1 : index
    %c0_197 = arith.constant 0 : index
    %189 = vector.load %arg11[%c1_194, %c1_195, %c1_196, %c0_197] : memref<2x10x10x128xf32, #tpu.memory_space<vmem>>, vector<1x8x8x128xf32>
    %190 = vector.shape_cast %189 : vector<1x8x8x128xf32> to vector<8x8x128xf32>
    %191 = vector.shape_cast %190 : vector<8x8x128xf32> to vector<64x128xf32>
    %192 = arith.truncf %191 : vector<64x128xf32> to vector<64x128xbf16>
    %c1_198 = arith.constant 1 : index
    %c4_199 = arith.constant 4 : index
    %c0_200 = arith.constant 0 : index
    %c0_201 = arith.constant 0 : index
    %193 = vector.load %arg5[%c1_198, %c4_199, %c0_200, %c0_201] : memref<2x9x128x128xbf16, #tpu.memory_space<vmem>>, vector<1x1x128x128xbf16>
    %194 = vector.shape_cast %193 : vector<1x1x128x128xbf16> to vector<128x128xbf16>
    %cst_202 = arith.constant dense<0.000000e+00> : vector<64x128xf32>
    %195 = tpu.matmul %192, %194, %cst_202 {dimension_numbers = #tpu.dot_dimension_numbers<[1], [0], [0], [1], [0, 0, 1, 1], [], []>} : vector<64x128xbf16>, vector<128x128xbf16>, vector<64x128xf32> -> vector<64x128xf32>
    %196 = arith.addf %188, %195 : vector<64x128xf32>
    %c1_203 = arith.constant 1 : index
    %c1_204 = arith.constant 1 : index
    %c2_205 = arith.constant 2 : index
    %c0_206 = arith.constant 0 : index
    %197 = vector.load %arg11[%c1_203, %c1_204, %c2_205, %c0_206] : memref<2x10x10x128xf32, #tpu.memory_space<vmem>>, vector<1x8x8x128xf32>
    %198 = vector.shape_cast %197 : vector<1x8x8x128xf32> to vector<8x8x128xf32>
    %199 = vector.shape_cast %198 : vector<8x8x128xf32> to vector<64x128xf32>
    %200 = arith.truncf %199 : vector<64x128xf32> to vector<64x128xbf16>
    %c1_207 = arith.constant 1 : index
    %c5_208 = arith.constant 5 : index
    %c0_209 = arith.constant 0 : index
    %c0_210 = arith.constant 0 : index
    %201 = vector.load %arg5[%c1_207, %c5_208, %c0_209, %c0_210] : memref<2x9x128x128xbf16, #tpu.memory_space<vmem>>, vector<1x1x128x128xbf16>
    %202 = vector.shape_cast %201 : vector<1x1x128x128xbf16> to vector<128x128xbf16>
    %cst_211 = arith.constant dense<0.000000e+00> : vector<64x128xf32>
    %203 = tpu.matmul %200, %202, %cst_211 {dimension_numbers = #tpu.dot_dimension_numbers<[1], [0], [0], [1], [0, 0, 1, 1], [], []>} : vector<64x128xbf16>, vector<128x128xbf16>, vector<64x128xf32> -> vector<64x128xf32>
    %204 = arith.addf %196, %203 : vector<64x128xf32>
    %c1_212 = arith.constant 1 : index
    %c2_213 = arith.constant 2 : index
    %c0_214 = arith.constant 0 : index
    %c0_215 = arith.constant 0 : index
    %205 = vector.load %arg11[%c1_212, %c2_213, %c0_214, %c0_215] : memref<2x10x10x128xf32, #tpu.memory_space<vmem>>, vector<1x8x8x128xf32>
    %206 = vector.shape_cast %205 : vector<1x8x8x128xf32> to vector<8x8x128xf32>
    %207 = vector.shape_cast %206 : vector<8x8x128xf32> to vector<64x128xf32>
    %208 = arith.truncf %207 : vector<64x128xf32> to vector<64x128xbf16>
    %c1_216 = arith.constant 1 : index
    %c6_217 = arith.constant 6 : index
    %c0_218 = arith.constant 0 : index
    %c0_219 = arith.constant 0 : index
    %209 = vector.load %arg5[%c1_216, %c6_217, %c0_218, %c0_219] : memref<2x9x128x128xbf16, #tpu.memory_space<vmem>>, vector<1x1x128x128xbf16>
    %210 = vector.shape_cast %209 : vector<1x1x128x128xbf16> to vector<128x128xbf16>
    %cst_220 = arith.constant dense<0.000000e+00> : vector<64x128xf32>
    %211 = tpu.matmul %208, %210, %cst_220 {dimension_numbers = #tpu.dot_dimension_numbers<[1], [0], [0], [1], [0, 0, 1, 1], [], []>} : vector<64x128xbf16>, vector<128x128xbf16>, vector<64x128xf32> -> vector<64x128xf32>
    %212 = arith.addf %204, %211 : vector<64x128xf32>
    %c1_221 = arith.constant 1 : index
    %c2_222 = arith.constant 2 : index
    %c1_223 = arith.constant 1 : index
    %c0_224 = arith.constant 0 : index
    %213 = vector.load %arg11[%c1_221, %c2_222, %c1_223, %c0_224] : memref<2x10x10x128xf32, #tpu.memory_space<vmem>>, vector<1x8x8x128xf32>
    %214 = vector.shape_cast %213 : vector<1x8x8x128xf32> to vector<8x8x128xf32>
    %215 = vector.shape_cast %214 : vector<8x8x128xf32> to vector<64x128xf32>
    %216 = arith.truncf %215 : vector<64x128xf32> to vector<64x128xbf16>
    %c1_225 = arith.constant 1 : index
    %c7_226 = arith.constant 7 : index
    %c0_227 = arith.constant 0 : index
    %c0_228 = arith.constant 0 : index
    %217 = vector.load %arg5[%c1_225, %c7_226, %c0_227, %c0_228] : memref<2x9x128x128xbf16, #tpu.memory_space<vmem>>, vector<1x1x128x128xbf16>
    %218 = vector.shape_cast %217 : vector<1x1x128x128xbf16> to vector<128x128xbf16>
    %cst_229 = arith.constant dense<0.000000e+00> : vector<64x128xf32>
    %219 = tpu.matmul %216, %218, %cst_229 {dimension_numbers = #tpu.dot_dimension_numbers<[1], [0], [0], [1], [0, 0, 1, 1], [], []>} : vector<64x128xbf16>, vector<128x128xbf16>, vector<64x128xf32> -> vector<64x128xf32>
    %220 = arith.addf %212, %219 : vector<64x128xf32>
    %c1_230 = arith.constant 1 : index
    %c2_231 = arith.constant 2 : index
    %c2_232 = arith.constant 2 : index
    %c0_233 = arith.constant 0 : index
    %221 = vector.load %arg11[%c1_230, %c2_231, %c2_232, %c0_233] : memref<2x10x10x128xf32, #tpu.memory_space<vmem>>, vector<1x8x8x128xf32>
    %222 = vector.shape_cast %221 : vector<1x8x8x128xf32> to vector<8x8x128xf32>
    %223 = vector.shape_cast %222 : vector<8x8x128xf32> to vector<64x128xf32>
    %224 = arith.truncf %223 : vector<64x128xf32> to vector<64x128xbf16>
    %c1_234 = arith.constant 1 : index
    %c8_235 = arith.constant 8 : index
    %c0_236 = arith.constant 0 : index
    %c0_237 = arith.constant 0 : index
    %225 = vector.load %arg5[%c1_234, %c8_235, %c0_236, %c0_237] : memref<2x9x128x128xbf16, #tpu.memory_space<vmem>>, vector<1x1x128x128xbf16>
    %226 = vector.shape_cast %225 : vector<1x1x128x128xbf16> to vector<128x128xbf16>
    %cst_238 = arith.constant dense<0.000000e+00> : vector<64x128xf32>
    %227 = tpu.matmul %224, %226, %cst_238 {dimension_numbers = #tpu.dot_dimension_numbers<[1], [0], [0], [1], [0, 0, 1, 1], [], []>} : vector<64x128xbf16>, vector<128x128xbf16>, vector<64x128xf32> -> vector<64x128xf32>
    %228 = arith.addf %220, %227 : vector<64x128xf32>
    %c1_239 = arith.constant 1 : index
    %c0_240 = arith.constant 0 : index
    %c0_241 = arith.constant 0 : index
    %229 = vector.load %arg6[%c1_239, %c0_240, %c0_241] : memref<2x1x128xf32, #tpu.memory_space<vmem>>, vector<1x1x128xf32>
    %230 = vector.shape_cast %229 : vector<1x1x128xf32> to vector<1x128xf32>
    %231 = vector.broadcast %230 : vector<1x128xf32> to vector<64x128xf32>
    %232 = arith.addf %228, %231 : vector<64x128xf32>
    %c1_242 = arith.constant 1 : index
    %c0_243 = arith.constant 0 : index
    %c0_244 = arith.constant 0 : index
    %233 = vector.load %arg12[%c1_242, %c0_243, %c0_244] : memref<2x64x128xf32, #tpu.memory_space<vmem>>, vector<1x64x128xf32>
    %234 = vector.shape_cast %233 : vector<1x64x128xf32> to vector<64x128xf32>
    %235 = vector.shape_cast %232 : vector<64x128xf32> to vector<1x64x128xf32>
    tpu.vector_store %arg12[%c1_242, %c0_243, %c0_244], %235 {strides = array<i32>} : memref<2x64x128xf32, #tpu.memory_space<vmem>>, vector<1x64x128xf32>,
    %c0_245 = arith.constant 0 : index
    %c0_246 = arith.constant 0 : index
    %c0_247 = arith.constant 0 : index
    %236 = vector.load %arg12[%c0_245, %c0_246, %c0_247] : memref<2x64x128xf32, #tpu.memory_space<vmem>>, vector<1x64x128xf32>
    %237 = vector.shape_cast %236 : vector<1x64x128xf32> to vector<64x128xf32>
    %c1_248 = arith.constant 1 : index
    %c0_249 = arith.constant 0 : index
    %c0_250 = arith.constant 0 : index
    %238 = vector.load %arg12[%c1_248, %c0_249, %c0_250] : memref<2x64x128xf32, #tpu.memory_space<vmem>>, vector<1x64x128xf32>
    %239 = vector.shape_cast %238 : vector<1x64x128xf32> to vector<64x128xf32>
    %c0_251 = arith.constant 0 : index
    %c0_252 = arith.constant 0 : index
    %c0_253 = arith.constant 0 : index
    %240 = vector.load %arg7[%c0_251, %c0_252, %c0_253] : memref<2x1x128xf32, #tpu.memory_space<vmem>>, vector<1x1x128xf32>
    %241 = vector.shape_cast %240 : vector<1x1x128xf32> to vector<1x128xf32>
    %cst_254 = arith.constant 5.000000e-01 : f32
    %242 = vector.broadcast %cst_254 : f32 to vector<1x128xf32>
    %243 = arith.cmpf ogt, %241, %242 : vector<1x128xf32>
    %244 = vector.shape_cast %243 : vector<1x128xi1> to vector<1x128xi1>
    %245 = vector.broadcast %244 : vector<1x128xi1> to vector<64x128xi1>
    %246 = arith.select %245, %237, %239 : vector<64x128xi1>, vector<64x128xf32>
    %cst_255 = arith.constant 0.000000e+00 : f32
    %247 = vector.broadcast %cst_255 : f32 to vector<64x128xf32>
    %248 = arith.maximumf %246, %247 : vector<64x128xf32>
    %c1_256 = arith.constant 1 : index
    %c0_257 = arith.constant 0 : index
    %c0_258 = arith.constant 0 : index
    %249 = vector.load %arg7[%c1_256, %c0_257, %c0_258] : memref<2x1x128xf32, #tpu.memory_space<vmem>>, vector<1x1x128xf32>
    %250 = vector.shape_cast %249 : vector<1x1x128xf32> to vector<1x128xf32>
    %cst_259 = arith.constant 5.000000e-01 : f32
    %251 = vector.broadcast %cst_259 : f32 to vector<1x128xf32>
    %252 = arith.cmpf ogt, %250, %251 : vector<1x128xf32>
    %253 = vector.shape_cast %252 : vector<1x128xi1> to vector<1x128xi1>
    %254 = vector.broadcast %253 : vector<1x128xi1> to vector<64x128xi1>
    %255 = arith.select %254, %239, %237 : vector<64x128xi1>, vector<64x128xf32>
    %cst_260 = arith.constant 0.000000e+00 : f32
    %256 = vector.broadcast %cst_260 : f32 to vector<64x128xf32>
    %257 = arith.maximumf %255, %256 : vector<64x128xf32>
    %258 = arith.truncf %248 : vector<64x128xf32> to vector<64x128xbf16>
    %c0_261 = arith.constant 0 : index
    %c0_262 = arith.constant 0 : index
    %c0_263 = arith.constant 0 : index
    %259 = vector.load %arg8[%c0_261, %c0_262, %c0_263] : memref<2x128x128xbf16, #tpu.memory_space<vmem>>, vector<1x128x128xbf16>
    %260 = vector.shape_cast %259 : vector<1x128x128xbf16> to vector<128x128xbf16>
    %cst_264 = arith.constant dense<0.000000e+00> : vector<64x128xf32>
    %261 = tpu.matmul %258, %260, %cst_264 {dimension_numbers = #tpu.dot_dimension_numbers<[1], [0], [0], [1], [0, 0, 1, 1], [], []>} : vector<64x128xbf16>, vector<128x128xbf16>, vector<64x128xf32> -> vector<64x128xf32>
    %c0_265 = arith.constant 0 : index
    %c0_266 = arith.constant 0 : index
    %c0_267 = arith.constant 0 : index
    %262 = vector.load %arg9[%c0_265, %c0_266, %c0_267] : memref<2x1x128xf32, #tpu.memory_space<vmem>>, vector<1x1x128xf32>
    %263 = vector.shape_cast %262 : vector<1x1x128xf32> to vector<1x128xf32>
    %264 = vector.broadcast %263 : vector<1x128xf32> to vector<64x128xf32>
    %265 = arith.addf %261, %264 : vector<64x128xf32>
    %c0_268 = arith.constant 0 : index
    %c0_269 = arith.constant 0 : index
    %c0_270 = arith.constant 0 : index
    %266 = vector.load %arg13[%c0_268, %c0_269, %c0_270] : memref<2x64x128xf32, #tpu.memory_space<vmem>>, vector<1x64x128xf32>
    %267 = vector.shape_cast %266 : vector<1x64x128xf32> to vector<64x128xf32>
    %268 = arith.addf %265, %267 : vector<64x128xf32>
    %cst_271 = arith.constant 0.000000e+00 : f32
    %269 = vector.broadcast %cst_271 : f32 to vector<64x128xf32>
    %270 = arith.maximumf %268, %269 : vector<64x128xf32>
    %271 = vector.shape_cast %270 : vector<64x128xf32> to vector<8x8x128xf32>
    %c0_272 = arith.constant 0 : index
    %c0_273 = arith.constant 0 : index
    %c0_274 = arith.constant 0 : index
    %c0_275 = arith.constant 0 : index
    %c0_276 = arith.constant 0 : index
    %272 = vector.load %arg10[%c0_272, %c0_273, %c0_274, %c0_275, %c0_276] : memref<2x1x8x8x128xf32, #tpu.memory_space<vmem>>, vector<1x1x8x8x128xf32>
    %273 = vector.shape_cast %272 : vector<1x1x8x8x128xf32> to vector<8x8x128xf32>
    %274 = vector.shape_cast %271 : vector<8x8x128xf32> to vector<1x1x8x8x128xf32>
    tpu.vector_store %arg10[%c0_272, %c0_273, %c0_274, %c0_275, %c0_276], %274 {strides = array<i32>} : memref<2x1x8x8x128xf32, #tpu.memory_space<vmem>>, vector<1x1x8x8x128xf32>,
    %275 = arith.truncf %257 : vector<64x128xf32> to vector<64x128xbf16>
    %c1_277 = arith.constant 1 : index
    %c0_278 = arith.constant 0 : index
    %c0_279 = arith.constant 0 : index
    %276 = vector.load %arg8[%c1_277, %c0_278, %c0_279] : memref<2x128x128xbf16, #tpu.memory_space<vmem>>, vector<1x128x128xbf16>
    %277 = vector.shape_cast %276 : vector<1x128x128xbf16> to vector<128x128xbf16>
    %cst_280 = arith.constant dense<0.000000e+00> : vector<64x128xf32>
    %278 = tpu.matmul %275, %277, %cst_280 {dimension_numbers = #tpu.dot_dimension_numbers<[1], [0], [0], [1], [0, 0, 1, 1], [], []>} : vector<64x128xbf16>, vector<128x128xbf16>, vector<64x128xf32> -> vector<64x128xf32>
    %c1_281 = arith.constant 1 : index
    %c0_282 = arith.constant 0 : index
    %c0_283 = arith.constant 0 : index
    %279 = vector.load %arg9[%c1_281, %c0_282, %c0_283] : memref<2x1x128xf32, #tpu.memory_space<vmem>>, vector<1x1x128xf32>
    %280 = vector.shape_cast %279 : vector<1x1x128xf32> to vector<1x128xf32>
    %281 = vector.broadcast %280 : vector<1x128xf32> to vector<64x128xf32>
    %282 = arith.addf %278, %281 : vector<64x128xf32>
    %c1_284 = arith.constant 1 : index
    %c0_285 = arith.constant 0 : index
    %c0_286 = arith.constant 0 : index
    %283 = vector.load %arg13[%c1_284, %c0_285, %c0_286] : memref<2x64x128xf32, #tpu.memory_space<vmem>>, vector<1x64x128xf32>
    %284 = vector.shape_cast %283 : vector<1x64x128xf32> to vector<64x128xf32>
    %285 = arith.addf %282, %284 : vector<64x128xf32>
    %cst_287 = arith.constant 0.000000e+00 : f32
    %286 = vector.broadcast %cst_287 : f32 to vector<64x128xf32>
    %287 = arith.maximumf %285, %286 : vector<64x128xf32>
    %288 = vector.shape_cast %287 : vector<64x128xf32> to vector<8x8x128xf32>
    %c1_288 = arith.constant 1 : index
    %c0_289 = arith.constant 0 : index
    %c0_290 = arith.constant 0 : index
    %c0_291 = arith.constant 0 : index
    %c0_292 = arith.constant 0 : index
    %289 = vector.load %arg10[%c1_288, %c0_289, %c0_290, %c0_291, %c0_292] : memref<2x1x8x8x128xf32, #tpu.memory_space<vmem>>, vector<1x1x8x8x128xf32>
    %290 = vector.shape_cast %289 : vector<1x1x8x8x128xf32> to vector<8x8x128xf32>
    %291 = vector.shape_cast %288 : vector<8x8x128xf32> to vector<1x1x8x8x128xf32>
    tpu.vector_store %arg10[%c1_288, %c0_289, %c0_290, %c0_291, %c0_292], %291 {strides = array<i32>} : memref<2x1x8x8x128xf32, #tpu.memory_space<vmem>>, vector<1x1x8x8x128xf32>,
    return
  }
  func.func @transform_0(%arg0: i32) -> (i32, i32, i32, i32, i32) {
    %c0_i32 = arith.constant 0 : i32
    %c0_i32_0 = arith.constant 0 : i32
    %c0_i32_1 = arith.constant 0 : i32
    %c0_i32_2 = arith.constant 0 : i32
    %c0_i32_3 = arith.constant 0 : i32
    return %c0_i32, %arg0, %c0_i32_0, %c0_i32_1, %c0_i32_2 : i32, i32, i32, i32, i32
  }
  func.func @transform_1(%arg0: i32) -> (i32, i32, i32) {
    %c0_i32 = arith.constant 0 : i32
    %c0_i32_0 = arith.constant 0 : i32
    %c0_i32_1 = arith.constant 0 : i32
    %c0_i32_2 = arith.constant 0 : i32
    return %c0_i32, %c0_i32_0, %c0_i32_1 : i32, i32, i32
  }
  func.func @transform_2(%arg0: i32) -> (i32, i32, i32) {
    %c0_i32 = arith.constant 0 : i32
    %c0_i32_0 = arith.constant 0 : i32
    %c0_i32_1 = arith.constant 0 : i32
    %c0_i32_2 = arith.constant 0 : i32
    return %c0_i32, %c0_i32_0, %c0_i32_1 : i32, i32, i32
  }
  func.func @transform_3(%arg0: i32) -> (i32, i32, i32) {
    %c0_i32 = arith.constant 0 : i32
    %c0_i32_0 = arith.constant 0 : i32
    %c0_i32_1 = arith.constant 0 : i32
    %c0_i32_2 = arith.constant 0 : i32
    return %c0_i32, %c0_i32_0, %c0_i32_1 : i32, i32, i32
  }
  func.func @transform_4(%arg0: i32) -> (i32, i32, i32, i32) {
    %c0_i32 = arith.constant 0 : i32
    %c0_i32_0 = arith.constant 0 : i32
    %c0_i32_1 = arith.constant 0 : i32
    %c0_i32_2 = arith.constant 0 : i32
    %c0_i32_3 = arith.constant 0 : i32
    return %c0_i32, %c0_i32_0, %c0_i32_1, %c0_i32_2 : i32, i32, i32, i32
  }
  func.func @transform_5(%arg0: i32) -> (i32, i32, i32) {
    %c0_i32 = arith.constant 0 : i32
    %c0_i32_0 = arith.constant 0 : i32
    %c0_i32_1 = arith.constant 0 : i32
    %c0_i32_2 = arith.constant 0 : i32
    return %c0_i32, %c0_i32_0, %c0_i32_1 : i32, i32, i32
  }
  func.func @transform_6(%arg0: i32) -> (i32, i32, i32) {
    %c0_i32 = arith.constant 0 : i32
    %c0_i32_0 = arith.constant 0 : i32
    %c0_i32_1 = arith.constant 0 : i32
    %c0_i32_2 = arith.constant 0 : i32
    return %c0_i32, %c0_i32_0, %c0_i32_1 : i32, i32, i32
  }
  func.func @transform_7(%arg0: i32) -> (i32, i32, i32) {
    %c0_i32 = arith.constant 0 : i32
    %c0_i32_0 = arith.constant 0 : i32
    %c0_i32_1 = arith.constant 0 : i32
    %c0_i32_2 = arith.constant 0 : i32
    return %c0_i32, %c0_i32_0, %c0_i32_1 : i32, i32, i32
  }
  func.func @transform_8(%arg0: i32) -> (i32, i32, i32) {
    %c0_i32 = arith.constant 0 : i32
    %c0_i32_0 = arith.constant 0 : i32
    %c0_i32_1 = arith.constant 0 : i32
    %c0_i32_2 = arith.constant 0 : i32
    return %c0_i32, %c0_i32_0, %c0_i32_1 : i32, i32, i32
  }
  func.func @transform_9(%arg0: i32) -> (i32, i32, i32, i32, i32) {
    %c0_i32 = arith.constant 0 : i32
    %c0_i32_0 = arith.constant 0 : i32
    %c0_i32_1 = arith.constant 0 : i32
    %c0_i32_2 = arith.constant 0 : i32
    %c0_i32_3 = arith.constant 0 : i32
    return %c0_i32, %arg0, %c0_i32_0, %c0_i32_1, %c0_i32_2 : i32, i32, i32, i32, i32
  }
}

</mosaic_0001>

<llo_original>
// kernel: tpu_custom_call.1
$region0: #{tpu_custom_call.1}
  #allocation0 [shape = 'u32[]', space=smem, size = 0x4, offset = 0x4, fixed_abs, tag = 'smem constant byte address 0x4 - core index']
  #allocation1 [shape = 'u32[72,128]{1,0:T(1,128)}', space=vmem, size = 0x9000, scoped, tag = 'internal scratch']
  #allocation2 [shape = 'f32[2,10,10,128]{3,2,1,0:T(8,128)}', space=vmem, size = 0x28000, scoped, tag = 'scratch operand']
  #allocation3 [shape = 'f32[2,64,128]{2,1,0:T(8,128)}', space=vmem, size = 0x10000, scoped, tag = 'scratch operand']
  #allocation4 [shape = 'f32[2,64,128]{2,1,0:T(8,128)}', space=vmem, size = 0x10000, scoped, tag = 'scratch operand']
  #allocation17 [shape = 's32[]', space=sflag, size = 0x4, offset = 0, fixed_abs, tag = 'sflag constant byte address 0x0 - dummy sync flag']
  #allocation19 [shape = 's32[]', space=sflag, size = 0x4, offset = 0, fixed_abs, tag = 'sflag constant byte address 0x0 - dummy sync flag']
  %s0 = inlined_call_operand.hbm [shape: bf16[2,2,8,8,128], index: 0, kind: input, shape index: {}]
  %s1 = inlined_call_operand.hbm [shape: bf16[2,128,256], index: 1, kind: input, shape index: {}]
  %s2 = inlined_call_operand.hbm [shape: f32[2,1,128], index: 2, kind: input, shape index: {}]
  %s3 = inlined_call_operand.vmem [shape: f32[2,1,128], index: 3, kind: input, shape index: {}]
  %s4 = inlined_call_operand.hbm [shape: bf16[2,9,128,128], index: 4, kind: input, shape index: {}]
  %s5 = inlined_call_operand.vmem [shape: f32[2,1,128], index: 5, kind: input, shape index: {}]
  %s6 = inlined_call_operand.hbm [shape: f32[2,1,128], index: 6, kind: input, shape index: {}]
  %s7 = inlined_call_operand.hbm [shape: bf16[2,128,128], index: 7, kind: input, shape index: {}]
  %s8 = inlined_call_operand.vmem [shape: f32[2,1,128], index: 8, kind: input, shape index: {}]
  %s9 = inlined_call_operand.hbm [shape: f32[2,2,8,8,128], index: 9, kind: output, shape index: {}]
  %s10 = sld [smem:[#allocation0]]
  $region93: #{tpu_custom_call.1} parent=0
    _
  %s12 = ssub.s32 1, %s10
  %s13 = scalar_select 0, %s12, %s10
  $region1: #{tpu_custom_call.1} parent=0
    #allocation5 [shape = 'u8[65536]{0}', space=vmem, size = 0x10000, scoped, tag = 'input window, operand 0']
    #allocation6 [shape = 's32[2]{0}', space=sflag, size = 0x8, scoped, tag = 'scoped memory for tpu_custom_call.1']
    #allocation7 [shape = 's32[2]{0}', space=sflag, size = 0x8, scoped, tag = 'scoped memory for tpu_custom_call.1']
    #allocation8 [shape = 'u8[131072]{0}', space=vmem, size = 0x20000, scoped, tag = 'input window, operand 1, single buffered']
    #allocation9 [shape = 's32[1]{0}', space=sflag, size = 0x4, scoped, tag = 'scoped memory for tpu_custom_call.1']
    #allocation10 [shape = 'u8[1024]{0}', space=vmem, size = 0x400, scoped, tag = 'input window, operand 2, single buffered']
    #allocation11 [shape = 'u8[589824]{0}', space=vmem, size = 0x90000, scoped, tag = 'input window, operand 4, single buffered']
    #allocation12 [shape = 's32[1]{0}', space=sflag, size = 0x4, scoped, tag = 'scoped memory for tpu_custom_call.1']
    #allocation13 [shape = 'u8[1024]{0}', space=vmem, size = 0x400, scoped, tag = 'input window, operand 6, single buffered']
    #allocation14 [shape = 'u8[65536]{0}', space=vmem, size = 0x10000, scoped, tag = 'input window, operand 7, single buffered']
    #allocation15 [shape = 's32[1]{0}', space=sflag, size = 0x4, scoped, tag = 'scoped memory for tpu_custom_call.1']
    #allocation16 [shape = 'u8[131072]{0}', space=vmem, size = 0x20000, scoped, tag = 'output window, operand 0']
    %14 = vsyncpa [#allocation6], 0
    %s15 = scalar_lea.sflag [#allocation6], 1
    %16 = vsyncpa %s15, 0
    %17 = vsyncpa [#allocation9], 0
    %18 = vsyncpa [#allocation12], 0
    %19 = vsyncpa [#allocation15], 0
    %20 = vsyncpa [#allocation7], 0
    %s21 = scalar_lea.sflag [#allocation7], 1
    %22 = vsyncpa %s21, 0
    loop: start=0, step=1, limit=4
    $region2: #{tpu_custom_call.1} parent=1 // loop_pre_header
      _
    $region3: #{tpu_custom_call.1} parent=1 // loop_header
      %s24 = sphi 0, %s28
      %p25 = scmp.ge.s32.totalorder %s24, 4
      %s34 = sphi 0, %s36
      %s37 = sphi 0, %s34
      %s38 = sphi 0, %s37
      %s54 = sphi 0, %s38
      %s58 = sphi 0, %s58
      %s60 = sphi 0, %s58
      %s61 = sphi 0, %s60
      %s75 = sphi 0, %s61
      %s79 = sphi 0, %s79
      %s81 = sphi 0, %s79
      %s82 = sphi 0, %s81
      %s96 = sphi 0, %s82
      %s100 = sphi 0, %s100
      %s102 = sphi 0, %s100
      %s103 = sphi 0, %s102
      %s117 = sphi 0, %s103
      %s121 = sphi 0, %s121
      %s123 = sphi 0, %s121
      %s124 = sphi 0, %s123
      %s138 = sphi 0, %s124
      %s142 = sphi 0, %s142
      %s144 = sphi 0, %s142
      %s145 = sphi 0, %s144
      %s159 = sphi 0, %s145
      %s163 = sphi 0, %s163
      %s165 = sphi 0, %s163
      %s166 = sphi 0, %s165
      %s180 = sphi 0, %s166
      %s184 = sphi 0, %s184
      %s186 = sphi 0, %s184
      %s187 = sphi 0, %s186
      %s201 = sphi 0, %s187
      %s205 = sphi 0, %s205
      %s207 = sphi 0, %s205
      %s208 = sphi 0, %s207
      %s222 = sphi 0, %s208
      %s228 = sphi 0, %s230
      %s231 = sphi 0, %s228
      %s232 = sphi 0, %s231
      %s248 = sphi 0, %s232
    $region4: #{tpu_custom_call.1} parent=1 // loop_header_branch
      %27 = sbr.rel (%p25) target = $region8
    $region5: #{tpu_custom_call.1} parent=1 // loop_body
      %s29 = ssub.s32 %s24, 1
      %s30 = ssub.s32 %s24, 2
      %s31 = sadd.s32 %s24, 1
      %s32 = ssub.s32 %s24, %s31
      %p33 = scmp.eq.s32.totalorder %s32, 0
      %s35 = sadd.s32 %s34, 1
      %s36 = scalar_select %p33, %s34, %s35
      %p39 = pneg %p33
      %p40 = scmp.eq.s32.totalorder %s24, 1
      %p41 = por %p39, %p40
      %p42 = scmp.ne.s32.totalorder %s34, %s37
      %p43 = scmp.eq.s32.totalorder %s24, 0
      %p44 = por %p42, %p43
      %p45 = scmp.ne.s32.totalorder %s34, %s37
      %p46 = scmp.eq.s32.totalorder %s29, 1
      %p47 = por %p45, %p46
      %p48 = scmp.ne.s32.totalorder %s37, %s38
      %p49 = scmp.eq.s32.totalorder %s29, 0
      %p50 = por %p48, %p49
      %p51 = scmp.ne.s32.totalorder %s37, %s38
      %p52 = scmp.eq.s32.totalorder %s30, 1
      %p53 = por %p51, %p52
      %p55 = scmp.ne.s32.totalorder %s38, %s54
      %p56 = scmp.eq.s32.totalorder %s30, 0
      %p57 = por %p55, %p56
      %s59 = sadd.s32 %s58, 1
      %p62 = scmp.eq.s32.totalorder %s24, 1
      %p63 = scmp.ne.s32.totalorder %s58, %s60
      %p64 = scmp.eq.s32.totalorder %s24, 0
      %p65 = por %p63, %p64
      %p66 = scmp.ne.s32.totalorder %s58, %s60
      %p67 = scmp.eq.s32.totalorder %s29, 1
      %p68 = por %p66, %p67
      %p69 = scmp.ne.s32.totalorder %s60, %s61
      %p70 = scmp.eq.s32.totalorder %s29, 0
      %p71 = por %p69, %p70
      %p72 = scmp.ne.s32.totalorder %s60, %s61
      %p73 = scmp.eq.s32.totalorder %s30, 1
      %p74 = por %p72, %p73
      %p76 = scmp.ne.s32.totalorder %s61, %s75
      %p77 = scmp.eq.s32.totalorder %s30, 0
      %p78 = por %p76, %p77
      %s80 = sadd.s32 %s79, 1
      %p83 = scmp.eq.s32.totalorder %s24, 1
      %p84 = scmp.ne.s32.totalorder %s79, %s81
      %p85 = scmp.eq.s32.totalorder %s24, 0
      %p86 = por %p84, %p85
      %p87 = scmp.ne.s32.totalorder %s79, %s81
      %p88 = scmp.eq.s32.totalorder %s29, 1
      %p89 = por %p87, %p88
      %p90 = scmp.ne.s32.totalorder %s81, %s82
      %p91 = scmp.eq.s32.totalorder %s29, 0
      %p92 = por %p90, %p91
      %p93 = scmp.ne.s32.totalorder %s81, %s82
      %p94 = scmp.eq.s32.totalorder %s30, 1
      %p95 = por %p93, %p94
      %p97 = scmp.ne.s32.totalorder %s82, %s96
      %p98 = scmp.eq.s32.totalorder %s30, 0
      %p99 = por %p97, %p98
      %s101 = sadd.s32 %s100, 1
      %p104 = scmp.eq.s32.totalorder %s24, 1
      %p105 = scmp.ne.s32.totalorder %s100, %s102
      %p106 = scmp.eq.s32.totalorder %s24, 0
      %p107 = por %p105, %p106
      %p108 = scmp.ne.s32.totalorder %s100, %s102
      %p109 = scmp.eq.s32.totalorder %s29, 1
      %p110 = por %p108, %p109
      %p111 = scmp.ne.s32.totalorder %s102, %s103
      %p112 = scmp.eq.s32.totalorder %s29, 0
      %p113 = por %p111, %p112
      %p114 = scmp.ne.s32.totalorder %s102, %s103
      %p115 = scmp.eq.s32.totalorder %s30, 1
      %p116 = por %p114, %p115
      %p118 = scmp.ne.s32.totalorder %s103, %s117
      %p119 = scmp.eq.s32.totalorder %s30, 0
      %p120 = por %p118, %p119
      %s122 = sadd.s32 %s121, 1
      %p125 = scmp.eq.s32.totalorder %s24, 1
      %p126 = scmp.ne.s32.totalorder %s121, %s123
      %p127 = scmp.eq.s32.totalorder %s24, 0
      %p128 = por %p126, %p127
      %p129 = scmp.ne.s32.totalorder %s121, %s123
      %p130 = scmp.eq.s32.totalorder %s29, 1
      %p131 = por %p129, %p130
      %p132 = scmp.ne.s32.totalorder %s123, %s124
      %p133 = scmp.eq.s32.totalorder %s29, 0
      %p134 = por %p132, %p133
      %p135 = scmp.ne.s32.totalorder %s123, %s124
      %p136 = scmp.eq.s32.totalorder %s30, 1
      %p137 = por %p135, %p136
      %p139 = scmp.ne.s32.totalorder %s124, %s138
      %p140 = scmp.eq.s32.totalorder %s30, 0
      %p141 = por %p139, %p140
      %s143 = sadd.s32 %s142, 1
      %p146 = scmp.eq.s32.totalorder %s24, 1
      %p147 = scmp.ne.s32.totalorder %s142, %s144
      %p148 = scmp.eq.s32.totalorder %s24, 0
      %p149 = por %p147, %p148
      %p150 = scmp.ne.s32.totalorder %s142, %s144
      %p151 = scmp.eq.s32.totalorder %s29, 1
      %p152 = por %p150, %p151
      %p153 = scmp.ne.s32.totalorder %s144, %s145
      %p154 = scmp.eq.s32.totalorder %s29, 0
      %p155 = por %p153, %p154
      %p156 = scmp.ne.s32.totalorder %s144, %s145
      %p157 = scmp.eq.s32.totalorder %s30, 1
      %p158 = por %p156, %p157
      %p160 = scmp.ne.s32.totalorder %s145, %s159
      %p161 = scmp.eq.s32.totalorder %s30, 0
      %p162 = por %p160, %p161
      %s164 = sadd.s32 %s163, 1
      %p167 = scmp.eq.s32.totalorder %s24, 1
      %p168 = scmp.ne.s32.totalorder %s163, %s165
      %p169 = scmp.eq.s32.totalorder %s24, 0
      %p170 = por %p168, %p169
      %p171 = scmp.ne.s32.totalorder %s163, %s165
      %p172 = scmp.eq.s32.totalorder %s29, 1
      %p173 = por %p171, %p172
      %p174 = scmp.ne.s32.totalorder %s165, %s166
      %p175 = scmp.eq.s32.totalorder %s29, 0
      %p176 = por %p174, %p175
      %p177 = scmp.ne.s32.totalorder %s165, %s166
      %p178 = scmp.eq.s32.totalorder %s30, 1
      %p179 = por %p177, %p178
      %p181 = scmp.ne.s32.totalorder %s166, %s180
      %p182 = scmp.eq.s32.totalorder %s30, 0
      %p183 = por %p181, %p182
      %s185 = sadd.s32 %s184, 1
      %p188 = scmp.eq.s32.totalorder %s24, 1
      %p189 = scmp.ne.s32.totalorder %s184, %s186
      %p190 = scmp.eq.s32.totalorder %s24, 0
      %p191 = por %p189, %p190
      %p192 = scmp.ne.s32.totalorder %s184, %s186
      %p193 = scmp.eq.s32.totalorder %s29, 1
      %p194 = por %p192, %p193
      %p195 = scmp.ne.s32.totalorder %s186, %s187
      %p196 = scmp.eq.s32.totalorder %s29, 0
      %p197 = por %p195, %p196
      %p198 = scmp.ne.s32.totalorder %s186, %s187
      %p199 = scmp.eq.s32.totalorder %s30, 1
      %p200 = por %p198, %p199
      %p202 = scmp.ne.s32.totalorder %s187, %s201
      %p203 = scmp.eq.s32.totalorder %s30, 0
      %p204 = por %p202, %p203
      %s206 = sadd.s32 %s205, 1
      %p209 = scmp.eq.s32.totalorder %s24, 1
      %p210 = scmp.ne.s32.totalorder %s205, %s207
      %p211 = scmp.eq.s32.totalorder %s24, 0
      %p212 = por %p210, %p211
      %p213 = scmp.ne.s32.totalorder %s205, %s207
      %p214 = scmp.eq.s32.totalorder %s29, 1
      %p215 = por %p213, %p214
      %p216 = scmp.ne.s32.totalorder %s207, %s208
      %p217 = scmp.eq.s32.totalorder %s29, 0
      %p218 = por %p216, %p217
      %p219 = scmp.ne.s32.totalorder %s207, %s208
      %p220 = scmp.eq.s32.totalorder %s30, 1
      %p221 = por %p219, %p220
      %p223 = scmp.ne.s32.totalorder %s208, %s222
      %p224 = scmp.eq.s32.totalorder %s30, 0
      %p225 = por %p223, %p224
      %s226 = ssub.s32 %s24, %s31
      %p227 = scmp.eq.s32.totalorder %s226, 0
      %s229 = sadd.s32 %s228, 1
      %s230 = scalar_select %p227, %s228, %s229
      %p233 = pneg %p227
      %p234 = scmp.eq.s32.totalorder %s24, 1
      %p235 = por %p233, %p234
      %p236 = scmp.ne.s32.totalorder %s228, %s231
      %p237 = scmp.eq.s32.totalorder %s24, 0
      %p238 = por %p236, %p237
      %p239 = scmp.ne.s32.totalorder %s228, %s231
      %p240 = scmp.eq.s32.totalorder %s29, 1
      %p241 = por %p239, %p240
      %p242 = scmp.ne.s32.totalorder %s231, %s232
      %p243 = scmp.eq.s32.totalorder %s29, 0
      %p244 = por %p242, %p243
      %p245 = scmp.ne.s32.totalorder %s231, %s232
      %p246 = scmp.eq.s32.totalorder %s30, 1
      %p247 = por %p245, %p246
      %p249 = scmp.ne.s32.totalorder %s232, %s248
      %p250 = scmp.eq.s32.totalorder %s30, 0
      %p251 = por %p249, %p250
      %p252 = scmp.le.s32.totalorder 1, %s24
      %p253 = scmp.lt.s32.totalorder %s24, 3
      %p254 = pnand %p252, %p253
      %p255 = pneg %p254
      // Predicated region
      $region9: #{tpu_custom_call.1} parent=5 // pred_check
        _
      $region10: #{tpu_custom_call.1} parent=5 // pred_check_branch
        %257 = sbr.rel (%p254) target = $region12
      $region11: #{tpu_custom_call.1} parent=5 // pred_region
        %s258 = ssub.s32 %s24, 1
        // Predicated region
        $region13: #{tpu_custom_call.1} parent=11 // pred_check
          %p259 = pneg %p71
        $region14: #{tpu_custom_call.1} parent=11 // pred_check_branch
          %261 = sbr.rel (%p259) target = $region16
        $region15: #{tpu_custom_call.1} parent=11 // pred_region
          %263 = vsyncadd [#allocation9], 0
          %s264 = sshll.u32 %s1, 4
          %s265 = int_to_ptr.hbm [resolvable:$true] %s264
          %s266 = sshll.u32 [#allocation8], 4
          %s267 = int_to_ptr.vmem [resolvable:$true] %s266
          %272 = dma.hbm_to_vmem [thread:$0]  %s265, 4096, %s267, [#allocation9], 128, 128, 8
        $region16: #{tpu_custom_call.1} parent=11 // pred_fallthru
          _
        // Predicated region
        $region17: #{tpu_custom_call.1} parent=11 // pred_check
          %p273 = pneg %p92
        $region18: #{tpu_custom_call.1} parent=11 // pred_check_branch
          %275 = sbr.rel (%p273) target = $region20
        $region19: #{tpu_custom_call.1} parent=11 // pred_region
          %277 = vsyncadd [#allocation9], 0
          %s278 = sshll.u32 %s2, 4
          %s279 = int_to_ptr.hbm [resolvable:$true] %s278
          %s280 = sshll.u32 [#allocation10], 4
          %s281 = int_to_ptr.vmem [resolvable:$true] %s280
          %286 = dma.hbm_to_vmem [thread:$0]  %s279, 32, %s281, [#allocation9], 16, 16, 1
        $region20: #{tpu_custom_call.1} parent=11 // pred_fallthru
          _
        // Predicated region
        $region21: #{tpu_custom_call.1} parent=11 // pred_check
          %p287 = pneg %p113
        $region22: #{tpu_custom_call.1} parent=11 // pred_check_branch
          %289 = sbr.rel (%p287) target = $region24
        $region23: #{tpu_custom_call.1} parent=11 // pred_region
          _
        $region24: #{tpu_custom_call.1} parent=11 // pred_fallthru
          _
        // Predicated region
        $region25: #{tpu_custom_call.1} parent=11 // pred_check
          %p290 = pneg %p134
        $region26: #{tpu_custom_call.1} parent=11 // pred_check_branch
          %292 = sbr.rel (%p290) target = $region28
        $region27: #{tpu_custom_call.1} parent=11 // pred_region
          %294 = vsyncadd [#allocation12], 0
          %s295 = sshll.u32 %s4, 4
          %s296 = int_to_ptr.hbm [resolvable:$true] %s295
          %s297 = sshll.u32 [#allocation11], 4
          %s298 = int_to_ptr.vmem [resolvable:$true] %s297
          %303 = dma.hbm_to_vmem [thread:$0]  %s296, 18432, %s298, [#allocation12], 64, 64, 4
        $region28: #{tpu_custom_call.1} parent=11 // pred_fallthru
          _
        // Predicated region
        $region29: #{tpu_custom_call.1} parent=11 // pred_check
          %p304 = pneg %p155
        $region30: #{tpu_custom_call.1} parent=11 // pred_check_branch
          %306 = sbr.rel (%p304) target = $region32
        $region31: #{tpu_custom_call.1} parent=11 // pred_region
          _
        $region32: #{tpu_custom_call.1} parent=11 // pred_fallthru
          _
        // Predicated region
        $region33: #{tpu_custom_call.1} parent=11 // pred_check
          %p307 = pneg %p176
        $region34: #{tpu_custom_call.1} parent=11 // pred_check_branch
          %309 = sbr.rel (%p307) target = $region36
        $region35: #{tpu_custom_call.1} parent=11 // pred_region
          %311 = vsyncadd [#allocation12], 0
          %s312 = sshll.u32 %s6, 4
          %s313 = int_to_ptr.hbm [resolvable:$true] %s312
          %s314 = sshll.u32 [#allocation13], 4
          %s315 = int_to_ptr.vmem [resolvable:$true] %s314
          %320 = dma.hbm_to_vmem [thread:$0]  %s313, 32, %s315, [#allocation12], 16, 16, 1
        $region36: #{tpu_custom_call.1} parent=11 // pred_fallthru
          _
        // Predicated region
        $region37: #{tpu_custom_call.1} parent=11 // pred_check
          %p321 = pneg %p197
        $region38: #{tpu_custom_call.1} parent=11 // pred_check_branch
          %323 = sbr.rel (%p321) target = $region40
        $region39: #{tpu_custom_call.1} parent=11 // pred_region
          %325 = vsyncadd [#allocation15], 0
          %s326 = sshll.u32 %s7, 4
          %s327 = int_to_ptr.hbm [resolvable:$true] %s326
          %s328 = sshll.u32 [#allocation14], 4
          %s329 = int_to_ptr.vmem [resolvable:$true] %s328
          %334 = dma.hbm_to_vmem [thread:$0]  %s327, 2048, %s329, [#allocation15], 64, 64, 4
        $region40: #{tpu_custom_call.1} parent=11 // pred_fallthru
          _
        // Predicated region
        $region41: #{tpu_custom_call.1} parent=11 // pred_check
          %p335 = pneg %p218
        $region42: #{tpu_custom_call.1} parent=11 // pred_check_branch
          %337 = sbr.rel (%p335) target = $region44
        $region43: #{tpu_custom_call.1} parent=11 // pred_region
          _
        $region44: #{tpu_custom_call.1} parent=11 // pred_fallthru
          _
      $region12: #{tpu_custom_call.1} parent=5 // pred_fallthru
        _
      %p338 = scmp.lt.s32.totalorder %s24, 2
      // Predicated region
      $region45: #{tpu_custom_call.1} parent=5 // pred_check
        %p339 = pneg %p338
      $region46: #{tpu_custom_call.1} parent=5 // pred_check_branch
        %341 = sbr.rel (%p339) target = $region48
      $region47: #{tpu_custom_call.1} parent=5 // pred_region
        // Predicated region
        $region49: #{tpu_custom_call.1} parent=47 // pred_check
          %p342 = pneg %p44
        $region50: #{tpu_custom_call.1} parent=47 // pred_check_branch
          %344 = sbr.rel (%p342) target = $region52
        $region51: #{tpu_custom_call.1} parent=47 // pred_region
          #allocation18 [shape = 'u32[6]{0}', space=smem, size = 0x18, scoped, tag = 'DMA stride descriptor']
          %s345 = sand.u32 %s34, 1
          %s346 = scalar_lea.sflag [#allocation6], %s345
          %s347 = sand.u32 %s34, 1
          %s348 = smul.addr %s347, 64
          %s349 = scalar_lea.vmem [#allocation5], %s348
          %351 = vsyncadd %s346, 0
          %s352 = smul.addr %s24, 8
          %s353 = smul.addr %s352, 4
          %s354 = scalar_lea.hbm %s0, %s353
          %s356 = sshll.u32 1, 14
          %s357 = sxor.u32 4294967295, %s356
          %s359 = sld [smem:[#allocation0]]
          %s360 = sadd.s32 2, %s359
          %s362 = sshll.u32 7, 26
          %s363 = sxor.u32 4294967295, %s362
          %s364 = sand.u32 0, %s363
          %s365 = sshll.u32 %s360, 26
          %s366 = sor.u32 %s364, %s365
          %s367 = sshll.u32 %s354, 4
          %s368 = int_to_ptr.hbm [resolvable:$true] %s367
          %s369 = sshll.u32 %s349, 4
          %s370 = int_to_ptr.vmem [resolvable:$true] %s369
          %376 = sst [smem:[#allocation18]] 1024
          %s377 = scalar_lea.smem [#allocation18], 1
          %378 = sst [smem:[%s377]] 512
          %s379 = scalar_lea.smem [#allocation18], 2
          %380 = sst [smem:[%s379]] 8
          %s381 = scalar_lea.smem [#allocation18], 3
          %382 = sst [smem:[%s381]] 64
          %s383 = scalar_lea.smem [#allocation18], 4
          %384 = sst [smem:[%s383]] 64
          %s385 = scalar_lea.smem [#allocation18], 5
          %386 = sst [smem:[%s385]] 4
          %388 = dma.general %s368, 1024, %s370, %s346, [#allocation17], [#allocation18], %s366, 0
        $region52: #{tpu_custom_call.1} parent=47 // pred_fallthru
          _
      $region48: #{tpu_custom_call.1} parent=5 // pred_fallthru
        _
      %p389 = scmp.le.s32.totalorder 1, %s24
      %p390 = scmp.lt.s32.totalorder %s24, 3
      %p391 = pnand %p389, %p390
      %p392 = pneg %p391
      // Predicated region
      $region53: #{tpu_custom_call.1} parent=5 // pred_check
        _
      $region54: #{tpu_custom_call.1} parent=5 // pred_check_branch
        %394 = sbr.rel (%p391) target = $region56
      $region55: #{tpu_custom_call.1} parent=5 // pred_region
        %s395 = ssub.s32 %s24, 1
        %s396 = sand.u32 %s37, 1
        %s397 = scalar_lea.sflag [#allocation6], %s396
        %s398 = sand.u32 %s37, 1
        %s399 = smul.addr %s398, 64
        %s400 = scalar_lea.vmem [#allocation5], %s399
        // Predicated region
        $region57: #{tpu_custom_call.1} parent=55 // pred_check
          %p401 = pneg %p50
        $region58: #{tpu_custom_call.1} parent=55 // pred_check_branch
          %403 = sbr.rel (%p401) target = $region60
        $region59: #{tpu_custom_call.1} parent=55 // pred_region
          %405 = dma.done %s397, 1024
        $region60: #{tpu_custom_call.1} parent=55 // pred_fallthru
          _
        // Predicated region
        $region61: #{tpu_custom_call.1} parent=55 // pred_check
          %p406 = pneg %p71
        $region62: #{tpu_custom_call.1} parent=55 // pred_check_branch
          %408 = sbr.rel (%p406) target = $region64
        $region63: #{tpu_custom_call.1} parent=55 // pred_region
          %410 = dma.done [#allocation9], 4096
        $region64: #{tpu_custom_call.1} parent=55 // pred_fallthru
          _
        // Predicated region
        $region65: #{tpu_custom_call.1} parent=55 // pred_check
          %p411 = pneg %p92
        $region66: #{tpu_custom_call.1} parent=55 // pred_check_branch
          %413 = sbr.rel (%p411) target = $region68
        $region67: #{tpu_custom_call.1} parent=55 // pred_region
          %415 = dma.done [#allocation9], 32
        $region68: #{tpu_custom_call.1} parent=55 // pred_fallthru
          _
        // Predicated region
        $region69: #{tpu_custom_call.1} parent=55 // pred_check
          %p416 = pneg %p134
        $region70: #{tpu_custom_call.1} parent=55 // pred_check_branch
          %418 = sbr.rel (%p416) target = $region72
        $region71: #{tpu_custom_call.1} parent=55 // pred_region
          %420 = dma.done [#allocation12], 18432
        $region72: #{tpu_custom_call.1} parent=55 // pred_fallthru
          _
        // Predicated region
        $region73: #{tpu_custom_call.1} parent=55 // pred_check
          %p421 = pneg %p176
        $region74: #{tpu_custom_call.1} parent=55 // pred_check_branch
          %423 = sbr.rel (%p421) target = $region76
        $region75: #{tpu_custom_call.1} parent=55 // pred_region
          %425 = dma.done [#allocation12], 32
        $region76: #{tpu_custom_call.1} parent=55 // pred_fallthru
          _
        // Predicated region
        $region77: #{tpu_custom_call.1} parent=55 // pred_check
          %p426 = pneg %p197
        $region78: #{tpu_custom_call.1} parent=55 // pred_check_branch
          %428 = sbr.rel (%p426) target = $region80
        $region79: #{tpu_custom_call.1} parent=55 // pred_region
          %430 = dma.done [#allocation15], 2048
        $region80: #{tpu_custom_call.1} parent=55 // pred_fallthru
          _
        %s431 = sand.u32 %s37, 1
        %s432 = scalar_lea.sflag [#allocation6], %s431
        %s433 = sand.u32 %s37, 1
        %s434 = smul.addr %s433, 64
        %s435 = scalar_lea.vmem [#allocation5], %s434
        %p436 = pneg %p50
        %p437 = pneg %p47
        %p438 = pneg %p71
        %p439 = pneg %p68
        %p440 = pneg %p92
        %p441 = pneg %p89
        %p442 = pneg %p113
        %p443 = pneg %p110
        %p444 = pneg %p134
        %p445 = pneg %p131
        %p446 = pneg %p155
        %p447 = pneg %p152
        %p448 = pneg %p176
        %p449 = pneg %p173
        %p450 = pneg %p197
        %p451 = pneg %p194
        %p452 = pneg %p218
        %p453 = pneg %p215
        %p454 = pneg %p244
        %p455 = pneg %p241
        %s456 = sand.u32 %s231, 1
        %s457 = scalar_lea.sflag [#allocation7], %s456
        %s458 = sand.u32 %s231, 1
        %s459 = smul.addr %s458, 128
        %s460 = scalar_lea.vmem [#allocation16], %s459
        %v461 = vld [vmem:[%s400] sm:$0xf]
        %v462 = vld [vmem:[%s400 + $0x4] sm:$0xf]
        %v463 = vld [vmem:[%s400 + $0x8] sm:$0xf]
        %v464 = vld [vmem:[%s400 + $0xc] sm:$0xf]
        %v465 = vld [vmem:[%s400 + $0x10] sm:$0xf]
        %v466 = vld [vmem:[%s400 + $0x14] sm:$0xf]
        %v467 = vld [vmem:[%s400 + $0x18] sm:$0xf]
        %v468 = vld [vmem:[%s400 + $0x1c] sm:$0xf]
        %v469 = vld [vmem:[#allocation8] sm:$0xff]
        %v470 = vld [vmem:[#allocation8 + $0x8] sm:$0xff]
        %v471 = vld [vmem:[#allocation8 + $0x10] sm:$0xff]
        %v472 = vld [vmem:[#allocation8 + $0x18] sm:$0xff]
        %v473 = vld [vmem:[#allocation8 + $0x20] sm:$0xff]
        %v474 = vld [vmem:[#allocation8 + $0x28] sm:$0xff]
        %v475 = vld [vmem:[#allocation8 + $0x30] sm:$0xff]
        %v476 = vld [vmem:[#allocation8 + $0x38] sm:$0xff]
        %v477 = vld [vmem:[#allocation8 + $0x40] sm:$0xff]
        %v478 = vld [vmem:[#allocation8 + $0x48] sm:$0xff]
        %v479 = vld [vmem:[#allocation8 + $0x50] sm:$0xff]
        %v480 = vld [vmem:[#allocation8 + $0x58] sm:$0xff]
        %v481 = vld [vmem:[#allocation8 + $0x60] sm:$0xff]
        %v482 = vld [vmem:[#allocation8 + $0x68] sm:$0xff]
        %v483 = vld [vmem:[#allocation8 + $0x70] sm:$0xff]
        %v484 = vld [vmem:[#allocation8 + $0x78] sm:$0xff]
        %v493 = vunpack.c.l.b16 %v461
        %v494 = vunpack.c.l.b16 %v462
        %v495 = vunpack.c.l.b16 %v463
        %v496 = vunpack.c.l.b16 %v464
        %v497 = vunpack.c.l.b16 %v465
        %v498 = vunpack.c.l.b16 %v466
        %v499 = vunpack.c.l.b16 %v467
        %v500 = vunpack.c.l.b16 %v468
        %v501 = vpack.c.b16 %v494, %v493
        %v502 = vpack.c.b16 %v496, %v495
        %v503 = vpack.c.b16 %v498, %v497
        %v504 = vpack.c.b16 %v500, %v499
        %v525 = vunpack.c.l.b16 %v469
        %v526 = vunpack.c.h.b16 %v469
        %v527 = vunpack.c.l.b16 %v470
        %v528 = vunpack.c.h.b16 %v470
        %v529 = vunpack.c.l.b16 %v471
        %v530 = vunpack.c.h.b16 %v471
        %v531 = vunpack.c.l.b16 %v472
        %v532 = vunpack.c.h.b16 %v472
        %v533 = vunpack.c.l.b16 %v473
        %v534 = vunpack.c.h.b16 %v473
        %v535 = vunpack.c.l.b16 %v474
        %v536 = vunpack.c.h.b16 %v474
        %v537 = vunpack.c.l.b16 %v475
        %v538 = vunpack.c.h.b16 %v475
        %v539 = vunpack.c.l.b16 %v476
        %v540 = vunpack.c.h.b16 %v476
        %v541 = vunpack.c.l.b16 %v477
        %v542 = vunpack.c.h.b16 %v477
        %v543 = vunpack.c.l.b16 %v478
        %v544 = vunpack.c.h.b16 %v478
        %v545 = vunpack.c.l.b16 %v479
        %v546 = vunpack.c.h.b16 %v479
        %v547 = vunpack.c.l.b16 %v480
        %v548 = vunpack.c.h.b16 %v480
        %v549 = vunpack.c.l.b16 %v481
        %v550 = vunpack.c.h.b16 %v481
        %v551 = vunpack.c.l.b16 %v482
        %v552 = vunpack.c.h.b16 %v482
        %v553 = vunpack.c.l.b16 %v483
        %v554 = vunpack.c.h.b16 %v483
        %v555 = vunpack.c.l.b16 %v484
        %v556 = vunpack.c.h.b16 %v484
        %v557 = vpack.c.b16 %v527, %v525
        %v558 = vpack.c.b16 %v528, %v526
        %v559 = vpack.c.b16 %v531, %v529
        %v560 = vpack.c.b16 %v532, %v530
        %v561 = vpack.c.b16 %v535, %v533
        %v562 = vpack.c.b16 %v536, %v534
        %v563 = vpack.c.b16 %v539, %v537
        %v564 = vpack.c.b16 %v540, %v538
        %v565 = vpack.c.b16 %v543, %v541
        %v566 = vpack.c.b16 %v544, %v542
        %v567 = vpack.c.b16 %v547, %v545
        %v568 = vpack.c.b16 %v548, %v546
        %v569 = vpack.c.b16 %v551, %v549
        %v570 = vpack.c.b16 %v552, %v550
        %v571 = vpack.c.b16 %v555, %v553
        %v572 = vpack.c.b16 %v556, %v554
        %589 = vmatpush.bf16.msra.mxu0 %v571
        %590 = vmatpush.bf16.msra.mxu0 %v569
        %591 = vmatpush.bf16.msra.mxu0 %v567
        %592 = vmatpush.bf16.msra.mxu0 %v565
        %593 = vmatpush.bf16.msra.mxu0 %v563
        %594 = vmatpush.bf16.msra.mxu0 %v561
        %595 = vmatpush.bf16.msra.mxu0 %v559
        %596 = vmatpush.bf16.msra.mxu0 %v557
        %597 = vmatmul.bf16.gmra.mxu0 %v501
        %v598 = vpop.f32.mrf.mxu0
        %v599 = vadd.f32 0.0, %v598
        %v600 = vpop.f32.mrf.mxu0
        %v601 = vadd.f32 0.0, %v600
        %602 = vmatmul.bf16.gmra.mxu0 %v502
        %v603 = vpop.f32.mrf.mxu0
        %v604 = vadd.f32 0.0, %v603
        %v605 = vpop.f32.mrf.mxu0
        %v606 = vadd.f32 0.0, %v605
        %607 = vmatmul.bf16.gmra.mxu0 %v503
        %v608 = vpop.f32.mrf.mxu0
        %v609 = vadd.f32 0.0, %v608
        %v610 = vpop.f32.mrf.mxu0
        %v611 = vadd.f32 0.0, %v610
        %612 = vmatmul.bf16.gmra.mxu0 %v504
        %v613 = vpop.f32.mrf.mxu0
        %v614 = vadd.f32 0.0, %v613
        %v615 = vpop.f32.mrf.mxu0
        %v616 = vadd.f32 0.0, %v615
        %617 = vdwg.mxu0
        %618 = vmatpush.bf16.msra.mxu0 %v572
        %619 = vmatpush.bf16.msra.mxu0 %v570
        %620 = vmatpush.bf16.msra.mxu0 %v568
        %621 = vmatpush.bf16.msra.mxu0 %v566
        %622 = vmatpush.bf16.msra.mxu0 %v564
        %623 = vmatpush.bf16.msra.mxu0 %v562
        %624 = vmatpush.bf16.msra.mxu0 %v560
        %625 = vmatpush.bf16.msra.mxu0 %v558
        %626 = vmatmul.bf16.gmra.mxu0 %v501
        %v627 = vpop.f32.mrf.mxu0
        %v628 = vadd.f32 0.0, %v627
        %v629 = vpop.f32.mrf.mxu0
        %v630 = vadd.f32 0.0, %v629
        %631 = vmatmul.bf16.gmra.mxu0 %v502
        %v632 = vpop.f32.mrf.mxu0
        %v633 = vadd.f32 0.0, %v632
        %v634 = vpop.f32.mrf.mxu0
        %v635 = vadd.f32 0.0, %v634
        %636 = vmatmul.bf16.gmra.mxu0 %v503
        %v637 = vpop.f32.mrf.mxu0
        %v638 = vadd.f32 0.0, %v637
        %v639 = vpop.f32.mrf.mxu0
        %v640 = vadd.f32 0.0, %v639
        %641 = vmatmul.bf16.gmra.mxu0 %v504
        %v642 = vpop.f32.mrf.mxu0
        %v643 = vadd.f32 0.0, %v642
        %v644 = vpop.f32.mrf.mxu0
        %v645 = vadd.f32 0.0, %v644
        %646 = vdwg.mxu0
        %v647 = vld [vmem:[#allocation10] sm:$0x1]
        %v649 = vperm.slane %v647, 0
        %v651 = vadd.f32 %v599, %v649
        %v652 = vadd.f32 %v601, %v649
        %v653 = vadd.f32 %v604, %v649
        %v654 = vadd.f32 %v606, %v649
        %v655 = vadd.f32 %v609, %v649
        %v656 = vadd.f32 %v611, %v649
        %v657 = vadd.f32 %v614, %v649
        %v658 = vadd.f32 %v616, %v649
        %v659 = vmax.f32 %v651, 0.0
        %v660 = vmax.f32 %v652, 0.0
        %v661 = vmax.f32 %v653, 0.0
        %v662 = vmax.f32 %v654, 0.0
        %v663 = vmax.f32 %v655, 0.0
        %v664 = vmax.f32 %v656, 0.0
        %v665 = vmax.f32 %v657, 0.0
        %v666 = vmax.f32 %v658, 0.0
        %v667 = vld [vmem:[%s3] sm:$0x1]
        %v669 = vperm.slane %v667, 0
        %v671 = vadd.f32 %v628, %v669
        %v672 = vadd.f32 %v630, %v669
        %v673 = vadd.f32 %v633, %v669
        %v674 = vadd.f32 %v635, %v669
        %v675 = vadd.f32 %v638, %v669
        %v676 = vadd.f32 %v640, %v669
        %v677 = vadd.f32 %v643, %v669
        %v678 = vadd.f32 %v645, %v669
        %679 = vst [vmem:[#allocation4] sm:$0xff] %v671
        %680 = vst [vmem:[#allocation4 + $0x8] sm:$0xff] %v672
        %681 = vst [vmem:[#allocation4 + $0x10] sm:$0xff] %v673
        %682 = vst [vmem:[#allocation4 + $0x18] sm:$0xff] %v674
        %683 = vst [vmem:[#allocation4 + $0x20] sm:$0xff] %v675
        %684 = vst [vmem:[#allocation4 + $0x28] sm:$0xff] %v676
        %685 = vst [vmem:[#allocation4 + $0x30] sm:$0xff] %v677
        %686 = vst [vmem:[#allocation4 + $0x38] sm:$0xff] %v678
        %687 = vst [vmem:[#allocation2] sm:$0xff] 0.0
        %688 = vst [vmem:[#allocation2 + $0x8] sm:$0x3] 0.0
        %s689 = scalar_lea.vmem [#allocation2], 144
        %690 = vst [vmem:[%s689] sm:$0xff] 0.0
        %691 = vst [vmem:[%s689 + $0x8] sm:$0x3] 0.0
        %s692 = scalar_lea.vmem [#allocation2], 16
        %693 = vst [vmem:[%s692] sm:$0x1] 0.0
        %694 = vst [vmem:[%s692 + $0x10] sm:$0x1] 0.0
        %695 = vst [vmem:[%s692 + $0x20] sm:$0x1] 0.0
        %696 = vst [vmem:[%s692 + $0x30] sm:$0x1] 0.0
        %697 = vst [vmem:[%s692 + $0x40] sm:$0x1] 0.0
        %698 = vst [vmem:[%s692 + $0x50] sm:$0x1] 0.0
        %699 = vst [vmem:[%s692 + $0x60] sm:$0x1] 0.0
        %700 = vst [vmem:[%s692 + $0x70] sm:$0x1] 0.0
        %701 = vst [vmem:[%s692 + $0x9] sm:$0x1] 0.0
        %702 = vst [vmem:[%s692 + $0x19] sm:$0x1] 0.0
        %703 = vst [vmem:[%s692 + $0x29] sm:$0x1] 0.0
        %704 = vst [vmem:[%s692 + $0x39] sm:$0x1] 0.0
        %705 = vst [vmem:[%s692 + $0x49] sm:$0x1] 0.0
        %706 = vst [vmem:[%s692 + $0x59] sm:$0x1] 0.0
        %707 = vst [vmem:[%s692 + $0x69] sm:$0x1] 0.0
        %708 = vst [vmem:[%s692 + $0x79] sm:$0x1] 0.0
        %709 = vst [vmem:[%s692 + $0x1] sm:$0xff] %v659
        %710 = vst [vmem:[%s692 + $0x11] sm:$0xff] %v660
        %711 = vst [vmem:[%s692 + $0x21] sm:$0xff] %v661
        %712 = vst [vmem:[%s692 + $0x31] sm:$0xff] %v662
        %713 = vst [vmem:[%s692 + $0x41] sm:$0xff] %v663
        %714 = vst [vmem:[%s692 + $0x51] sm:$0xff] %v664
        %715 = vst [vmem:[%s692 + $0x61] sm:$0xff] %v665
        %716 = vst [vmem:[%s692 + $0x71] sm:$0xff] %v666
        %v717 = vld [vmem:[#allocation2] sm:$0xff]
        %v718 = vld [vmem:[#allocation2 + $0x10] sm:$0xff]
        %v719 = vld [vmem:[#allocation2 + $0x20] sm:$0xff]
        %v720 = vld [vmem:[#allocation2 + $0x30] sm:$0xff]
        %v721 = vld [vmem:[#allocation2 + $0x40] sm:$0xff]
        %v722 = vld [vmem:[#allocation2 + $0x50] sm:$0xff]
        %v723 = vld [vmem:[#allocation2 + $0x60] sm:$0xff]
        %v724 = vld [vmem:[#allocation2 + $0x70] sm:$0xff]
        %v725 = vpack.c.bf16 %v718, %v717
        %v726 = vpack.c.bf16 %v720, %v719
        %v727 = vpack.c.bf16 %v722, %v721
        %v728 = vpack.c.bf16 %v724, %v723
        %v729 = vld [vmem:[#allocation11] sm:$0xf]
        %v730 = vld [vmem:[#allocation11 + $0x4] sm:$0xf]
        %v731 = vld [vmem:[#allocation11 + $0x8] sm:$0xf]
        %v732 = vld [vmem:[#allocation11 + $0xc] sm:$0xf]
        %v733 = vld [vmem:[#allocation11 + $0x10] sm:$0xf]
        %v734 = vld [vmem:[#allocation11 + $0x14] sm:$0xf]
        %v735 = vld [vmem:[#allocation11 + $0x18] sm:$0xf]
        %v736 = vld [vmem:[#allocation11 + $0x1c] sm:$0xf]
        %v737 = vld [vmem:[#allocation11 + $0x20] sm:$0xf]
        %v738 = vld [vmem:[#allocation11 + $0x24] sm:$0xf]
        %v739 = vld [vmem:[#allocation11 + $0x28] sm:$0xf]
        %v740 = vld [vmem:[#allocation11 + $0x2c] sm:$0xf]
        %v741 = vld [vmem:[#allocation11 + $0x30] sm:$0xf]
        %v742 = vld [vmem:[#allocation11 + $0x34] sm:$0xf]
        %v743 = vld [vmem:[#allocation11 + $0x38] sm:$0xf]
        %v744 = vld [vmem:[#allocation11 + $0x3c] sm:$0xf]
        %v745 = vld [vmem:[#allocation2 + $0x1] sm:$0xff]
        %v746 = vld [vmem:[#allocation2 + $0x11] sm:$0xff]
        %v747 = vld [vmem:[#allocation2 + $0x21] sm:$0xff]
        %v748 = vld [vmem:[#allocation2 + $0x31] sm:$0xff]
        %v749 = vld [vmem:[#allocation2 + $0x41] sm:$0xff]
        %v750 = vld [vmem:[#allocation2 + $0x51] sm:$0xff]
        %v751 = vld [vmem:[#allocation2 + $0x61] sm:$0xff]
        %v752 = vld [vmem:[#allocation2 + $0x71] sm:$0xff]
        %v753 = vpack.c.bf16 %v746, %v745
        %v754 = vpack.c.bf16 %v748, %v747
        %v755 = vpack.c.bf16 %v750, %v749
        %v756 = vpack.c.bf16 %v752, %v751
        %s757 = scalar_lea.vmem [#allocation11], 64
        %v758 = vld [vmem:[%s757] sm:$0xf]
        %v759 = vld [vmem:[%s757 + $0x4] sm:$0xf]
        %v760 = vld [vmem:[%s757 + $0x8] sm:$0xf]
        %v761 = vld [vmem:[%s757 + $0xc] sm:$0xf]
        %v762 = vld [vmem:[%s757 + $0x10] sm:$0xf]
        %v763 = vld [vmem:[%s757 + $0x14] sm:$0xf]
        %v764 = vld [vmem:[%s757 + $0x18] sm:$0xf]
        %v765 = vld [vmem:[%s757 + $0x1c] sm:$0xf]
        %v766 = vld [vmem:[%s757 + $0x20] sm:$0xf]
        %v767 = vld [vmem:[%s757 + $0x24] sm:$0xf]
        %v768 = vld [vmem:[%s757 + $0x28] sm:$0xf]
        %v769 = vld [vmem:[%s757 + $0x2c] sm:$0xf]
        %v770 = vld [vmem:[%s757 + $0x30] sm:$0xf]
        %v771 = vld [vmem:[%s757 + $0x34] sm:$0xf]
        %v772 = vld [vmem:[%s757 + $0x38] sm:$0xf]
        %v773 = vld [vmem:[%s757 + $0x3c] sm:$0xf]
        %v790 = vunpack.c.l.b16 %v758
        %v791 = vunpack.c.l.b16 %v759
        %v792 = vunpack.c.l.b16 %v760
        %v793 = vunpack.c.l.b16 %v761
        %v794 = vunpack.c.l.b16 %v762
        %v795 = vunpack.c.l.b16 %v763
        %v796 = vunpack.c.l.b16 %v764
        %v797 = vunpack.c.l.b16 %v765
        %v798 = vunpack.c.l.b16 %v766
        %v799 = vunpack.c.l.b16 %v767
        %v800 = vunpack.c.l.b16 %v768
        %v801 = vunpack.c.l.b16 %v769
        %v802 = vunpack.c.l.b16 %v770
        %v803 = vunpack.c.l.b16 %v771
        %v804 = vunpack.c.l.b16 %v772
        %v805 = vunpack.c.l.b16 %v773
        %v806 = vpack.c.b16 %v791, %v790
        %v807 = vpack.c.b16 %v793, %v792
        %v808 = vpack.c.b16 %v795, %v794
        %v809 = vpack.c.b16 %v797, %v796
        %v810 = vpack.c.b16 %v799, %v798
        %v811 = vpack.c.b16 %v801, %v800
        %v812 = vpack.c.b16 %v803, %v802
        %v813 = vpack.c.b16 %v805, %v804
        %822 = vmatpush.bf16.msra.mxu0 %v813
        %823 = vmatpush.bf16.msra.mxu0 %v812
        %824 = vmatpush.bf16.msra.mxu0 %v811
        %825 = vmatpush.bf16.msra.mxu0 %v810
        %826 = vmatpush.bf16.msra.mxu0 %v809
        %827 = vmatpush.bf16.msra.mxu0 %v808
        %828 = vmatpush.bf16.msra.mxu0 %v807
        %829 = vmatpush.bf16.msra.mxu0 %v806
        %830 = vmatmul.bf16.gmra.mxu0 %v753
        %v831 = vpop.f32.mrf.mxu0
        %v832 = vadd.f32 0.0, %v831
        %v833 = vpop.f32.mrf.mxu0
        %v834 = vadd.f32 0.0, %v833
        %835 = vmatmul.bf16.gmra.mxu0 %v754
        %v836 = vpop.f32.mrf.mxu0
        %v837 = vadd.f32 0.0, %v836
        %v838 = vpop.f32.mrf.mxu0
        %v839 = vadd.f32 0.0, %v838
        %840 = vmatmul.bf16.gmra.mxu0 %v755
        %v841 = vpop.f32.mrf.mxu0
        %v842 = vadd.f32 0.0, %v841
        %v843 = vpop.f32.mrf.mxu0
        %v844 = vadd.f32 0.0, %v843
        %845 = vmatmul.bf16.gmra.mxu0 %v756
        %v846 = vpop.f32.mrf.mxu0
        %v847 = vadd.f32 0.0, %v846
        %v848 = vpop.f32.mrf.mxu0
        %v849 = vadd.f32 0.0, %v848
        %850 = vdwg.mxu0
        %v867 = vunpack.c.l.b16 %v729
        %v868 = vunpack.c.l.b16 %v730
        %v869 = vunpack.c.l.b16 %v731
        %v870 = vunpack.c.l.b16 %v732
        %v871 = vunpack.c.l.b16 %v733
        %v872 = vunpack.c.l.b16 %v734
        %v873 = vunpack.c.l.b16 %v735
        %v874 = vunpack.c.l.b16 %v736
        %v875 = vunpack.c.l.b16 %v737
        %v876 = vunpack.c.l.b16 %v738
        %v877 = vunpack.c.l.b16 %v739
        %v878 = vunpack.c.l.b16 %v740
        %v879 = vunpack.c.l.b16 %v741
        %v880 = vunpack.c.l.b16 %v742
        %v881 = vunpack.c.l.b16 %v743
        %v882 = vunpack.c.l.b16 %v744
        %v883 = vpack.c.b16 %v868, %v867
        %v884 = vpack.c.b16 %v870, %v869
        %v885 = vpack.c.b16 %v872, %v871
        %v886 = vpack.c.b16 %v874, %v873
        %v887 = vpack.c.b16 %v876, %v875
        %v888 = vpack.c.b16 %v878, %v877
        %v889 = vpack.c.b16 %v880, %v879
        %v890 = vpack.c.b16 %v882, %v881
        %899 = vmatpush.bf16.msra.mxu0 %v890
        %900 = vmatpush.bf16.msra.mxu0 %v889
        %901 = vmatpush.bf16.msra.mxu0 %v888
        %902 = vmatpush.bf16.msra.mxu0 %v887
        %903 = vmatpush.bf16.msra.mxu0 %v886
        %904 = vmatpush.bf16.msra.mxu0 %v885
        %905 = vmatpush.bf16.msra.mxu0 %v884
        %906 = vmatpush.bf16.msra.mxu0 %v883
        %907 = vmatmul.bf16.gmra.mxu0 %v725
        %v908 = vpop.f32.mrf.mxu0
        %v909 = vadd.f32 %v832, %v908
        %v910 = vpop.f32.mrf.mxu0
        %v911 = vadd.f32 %v834, %v910
        %912 = vmatmul.bf16.gmra.mxu0 %v726
        %v913 = vpop.f32.mrf.mxu0
        %v914 = vadd.f32 %v837, %v913
        %v915 = vpop.f32.mrf.mxu0
        %v916 = vadd.f32 %v839, %v915
        %917 = vmatmul.bf16.gmra.mxu0 %v727
        %v918 = vpop.f32.mrf.mxu0
        %v919 = vadd.f32 %v842, %v918
        %v920 = vpop.f32.mrf.mxu0
        %v921 = vadd.f32 %v844, %v920
        %922 = vmatmul.bf16.gmra.mxu0 %v728
        %v923 = vpop.f32.mrf.mxu0
        %v924 = vadd.f32 %v847, %v923
        %v925 = vpop.f32.mrf.mxu0
        %v926 = vadd.f32 %v849, %v925
        %927 = vdwg.mxu0
        %v928 = vld [vmem:[#allocation2 + $0x2] sm:$0xff]
        %v929 = vld [vmem:[#allocation2 + $0x12] sm:$0xff]
        %v930 = vld [vmem:[#allocation2 + $0x22] sm:$0xff]
        %v931 = vld [vmem:[#allocation2 + $0x32] sm:$0xff]
        %v932 = vld [vmem:[#allocation2 + $0x42] sm:$0xff]
        %v933 = vld [vmem:[#allocation2 + $0x52] sm:$0xff]
        %v934 = vld [vmem:[#allocation2 + $0x62] sm:$0xff]
        %v935 = vld [vmem:[#allocation2 + $0x72] sm:$0xff]
        %v936 = vpack.c.bf16 %v929, %v928
        %v937 = vpack.c.bf16 %v931, %v930
        %v938 = vpack.c.bf16 %v933, %v932
        %v939 = vpack.c.bf16 %v935, %v934
        %s940 = scalar_lea.vmem [#allocation11], 128
        %v941 = vld [vmem:[%s940] sm:$0xf]
        %v942 = vld [vmem:[%s940 + $0x4] sm:$0xf]
        %v943 = vld [vmem:[%s940 + $0x8] sm:$0xf]
        %v944 = vld [vmem:[%s940 + $0xc] sm:$0xf]
        %v945 = vld [vmem:[%s940 + $0x10] sm:$0xf]
        %v946 = vld [vmem:[%s940 + $0x14] sm:$0xf]
        %v947 = vld [vmem:[%s940 + $0x18] sm:$0xf]
        %v948 = vld [vmem:[%s940 + $0x1c] sm:$0xf]
        %v949 = vld [vmem:[%s940 + $0x20] sm:$0xf]
        %v950 = vld [vmem:[%s940 + $0x24] sm:$0xf]
        %v951 = vld [vmem:[%s940 + $0x28] sm:$0xf]
        %v952 = vld [vmem:[%s940 + $0x2c] sm:$0xf]
        %v953 = vld [vmem:[%s940 + $0x30] sm:$0xf]
        %v954 = vld [vmem:[%s940 + $0x34] sm:$0xf]
        %v955 = vld [vmem:[%s940 + $0x38] sm:$0xf]
        %v956 = vld [vmem:[%s940 + $0x3c] sm:$0xf]
        %v973 = vunpack.c.l.b16 %v941
        %v974 = vunpack.c.l.b16 %v942
        %v975 = vunpack.c.l.b16 %v943
        %v976 = vunpack.c.l.b16 %v944
        %v977 = vunpack.c.l.b16 %v945
        %v978 = vunpack.c.l.b16 %v946
        %v979 = vunpack.c.l.b16 %v947
        %v980 = vunpack.c.l.b16 %v948
        %v981 = vunpack.c.l.b16 %v949
        %v982 = vunpack.c.l.b16 %v950
        %v983 = vunpack.c.l.b16 %v951
        %v984 = vunpack.c.l.b16 %v952
        %v985 = vunpack.c.l.b16 %v953
        %v986 = vunpack.c.l.b16 %v954
        %v987 = vunpack.c.l.b16 %v955
        %v988 = vunpack.c.l.b16 %v956
        %v989 = vpack.c.b16 %v974, %v973
        %v990 = vpack.c.b16 %v976, %v975
        %v991 = vpack.c.b16 %v978, %v977
        %v992 = vpack.c.b16 %v980, %v979
        %v993 = vpack.c.b16 %v982, %v981
        %v994 = vpack.c.b16 %v984, %v983
        %v995 = vpack.c.b16 %v986, %v985
        %v996 = vpack.c.b16 %v988, %v987
        %1005 = vmatpush.bf16.msra.mxu0 %v996
        %1006 = vmatpush.bf16.msra.mxu0 %v995
        %1007 = vmatpush.bf16.msra.mxu0 %v994
        %1008 = vmatpush.bf16.msra.mxu0 %v993
        %1009 = vmatpush.bf16.msra.mxu0 %v992
        %1010 = vmatpush.bf16.msra.mxu0 %v991
        %1011 = vmatpush.bf16.msra.mxu0 %v990
        %1012 = vmatpush.bf16.msra.mxu0 %v989
        %1013 = vmatmul.bf16.gmra.mxu0 %v936
        %v1014 = vpop.f32.mrf.mxu0
        %v1015 = vadd.f32 0.0, %v1014
        %v1016 = vpop.f32.mrf.mxu0
        %v1017 = vadd.f32 0.0, %v1016
        %1018 = vmatmul.bf16.gmra.mxu0 %v937
        %v1019 = vpop.f32.mrf.mxu0
        %v1020 = vadd.f32 0.0, %v1019
        %v1021 = vpop.f32.mrf.mxu0
        %v1022 = vadd.f32 0.0, %v1021
        %1023 = vmatmul.bf16.gmra.mxu0 %v938
        %v1024 = vpop.f32.mrf.mxu0
        %v1025 = vadd.f32 0.0, %v1024
        %v1026 = vpop.f32.mrf.mxu0
        %v1027 = vadd.f32 0.0, %v1026
        %1028 = vmatmul.bf16.gmra.mxu0 %v939
        %v1029 = vpop.f32.mrf.mxu0
        %v1030 = vadd.f32 0.0, %v1029
        %v1031 = vpop.f32.mrf.mxu0
        %v1032 = vadd.f32 0.0, %v1031
        %1033 = vdwg.mxu0
        %v1034 = vadd.f32 %v909, %v1015
        %v1035 = vadd.f32 %v911, %v1017
        %v1036 = vadd.f32 %v914, %v1020
        %v1037 = vadd.f32 %v916, %v1022
        %v1038 = vadd.f32 %v919, %v1025
        %v1039 = vadd.f32 %v921, %v1027
        %v1040 = vadd.f32 %v924, %v1030
        %v1041 = vadd.f32 %v926, %v1032
        %v1042 = vld [vmem:[%s692] sm:$0xff]
        %v1043 = vld [vmem:[%s692 + $0x10] sm:$0xff]
        %v1044 = vld [vmem:[%s692 + $0x20] sm:$0xff]
        %v1045 = vld [vmem:[%s692 + $0x30] sm:$0xff]
        %v1046 = vld [vmem:[%s692 + $0x40] sm:$0xff]
        %v1047 = vld [vmem:[%s692 + $0x50] sm:$0xff]
        %v1048 = vld [vmem:[%s692 + $0x60] sm:$0xff]
        %v1049 = vld [vmem:[%s692 + $0x70] sm:$0xff]
        %v1050 = vpack.c.bf16 %v1043, %v1042
        %v1051 = vpack.c.bf16 %v1045, %v1044
        %v1052 = vpack.c.bf16 %v1047, %v1046
        %v1053 = vpack.c.bf16 %v1049, %v1048
        %s1054 = scalar_lea.vmem [#allocation11], 192
        %v1055 = vld [vmem:[%s1054] sm:$0xf]
        %v1056 = vld [vmem:[%s1054 + $0x4] sm:$0xf]
        %v1057 = vld [vmem:[%s1054 + $0x8] sm:$0xf]
        %v1058 = vld [vmem:[%s1054 + $0xc] sm:$0xf]
        %v1059 = vld [vmem:[%s1054 + $0x10] sm:$0xf]
        %v1060 = vld [vmem:[%s1054 + $0x14] sm:$0xf]
        %v1061 = vld [vmem:[%s1054 + $0x18] sm:$0xf]
        %v1062 = vld [vmem:[%s1054 + $0x1c] sm:$0xf]
        %v1063 = vld [vmem:[%s1054 + $0x20] sm:$0xf]
        %v1064 = vld [vmem:[%s1054 + $0x24] sm:$0xf]
        %v1065 = vld [vmem:[%s1054 + $0x28] sm:$0xf]
        %v1066 = vld [vmem:[%s1054 + $0x2c] sm:$0xf]
        %v1067 = vld [vmem:[%s1054 + $0x30] sm:$0xf]
        %v1068 = vld [vmem:[%s1054 + $0x34] sm:$0xf]
        %v1069 = vld [vmem:[%s1054 + $0x38] sm:$0xf]
        %v1070 = vld [vmem:[%s1054 + $0x3c] sm:$0xf]
        %v1087 = vunpack.c.l.b16 %v1055
        %v1088 = vunpack.c.l.b16 %v1056
        %v1089 = vunpack.c.l.b16 %v1057
        %v1090 = vunpack.c.l.b16 %v1058
        %v1091 = vunpack.c.l.b16 %v1059
        %v1092 = vunpack.c.l.b16 %v1060
        %v1093 = vunpack.c.l.b16 %v1061
        %v1094 = vunpack.c.l.b16 %v1062
        %v1095 = vunpack.c.l.b16 %v1063
        %v1096 = vunpack.c.l.b16 %v1064
        %v1097 = vunpack.c.l.b16 %v1065
        %v1098 = vunpack.c.l.b16 %v1066
        %v1099 = vunpack.c.l.b16 %v1067
        %v1100 = vunpack.c.l.b16 %v1068
        %v1101 = vunpack.c.l.b16 %v1069
        %v1102 = vunpack.c.l.b16 %v1070
        %v1103 = vpack.c.b16 %v1088, %v1087
        %v1104 = vpack.c.b16 %v1090, %v1089
        %v1105 = vpack.c.b16 %v1092, %v1091
        %v1106 = vpack.c.b16 %v1094, %v1093
        %v1107 = vpack.c.b16 %v1096, %v1095
        %v1108 = vpack.c.b16 %v1098, %v1097
        %v1109 = vpack.c.b16 %v1100, %v1099
        %v1110 = vpack.c.b16 %v1102, %v1101
        %1119 = vmatpush.bf16.msra.mxu0 %v1110
        %1120 = vmatpush.bf16.msra.mxu0 %v1109
        %1121 = vmatpush.bf16.msra.mxu0 %v1108
        %1122 = vmatpush.bf16.msra.mxu0 %v1107
        %1123 = vmatpush.bf16.msra.mxu0 %v1106
        %1124 = vmatpush.bf16.msra.mxu0 %v1105
        %1125 = vmatpush.bf16.msra.mxu0 %v1104
        %1126 = vmatpush.bf16.msra.mxu0 %v1103
        %1127 = vmatmul.bf16.gmra.mxu0 %v1050
        %v1128 = vpop.f32.mrf.mxu0
        %v1129 = vadd.f32 0.0, %v1128
        %v1130 = vpop.f32.mrf.mxu0
        %v1131 = vadd.f32 0.0, %v1130
        %1132 = vmatmul.bf16.gmra.mxu0 %v1051
        %v1133 = vpop.f32.mrf.mxu0
        %v1134 = vadd.f32 0.0, %v1133
        %v1135 = vpop.f32.mrf.mxu0
        %v1136 = vadd.f32 0.0, %v1135
        %1137 = vmatmul.bf16.gmra.mxu0 %v1052
        %v1138 = vpop.f32.mrf.mxu0
        %v1139 = vadd.f32 0.0, %v1138
        %v1140 = vpop.f32.mrf.mxu0
        %v1141 = vadd.f32 0.0, %v1140
        %1142 = vmatmul.bf16.gmra.mxu0 %v1053
        %v1143 = vpop.f32.mrf.mxu0
        %v1144 = vadd.f32 0.0, %v1143
        %v1145 = vpop.f32.mrf.mxu0
        %v1146 = vadd.f32 0.0, %v1145
        %1147 = vdwg.mxu0
        %v1148 = vadd.f32 %v1034, %v1129
        %v1149 = vadd.f32 %v1035, %v1131
        %v1150 = vadd.f32 %v1036, %v1134
        %v1151 = vadd.f32 %v1037, %v1136
        %v1152 = vadd.f32 %v1038, %v1139
        %v1153 = vadd.f32 %v1039, %v1141
        %v1154 = vadd.f32 %v1040, %v1144
        %v1155 = vadd.f32 %v1041, %v1146
        %v1156 = vld [vmem:[%s692 + $0x1] sm:$0xff]
        %v1157 = vld [vmem:[%s692 + $0x11] sm:$0xff]
        %v1158 = vld [vmem:[%s692 + $0x21] sm:$0xff]
        %v1159 = vld [vmem:[%s692 + $0x31] sm:$0xff]
        %v1160 = vld [vmem:[%s692 + $0x41] sm:$0xff]
        %v1161 = vld [vmem:[%s692 + $0x51] sm:$0xff]
        %v1162 = vld [vmem:[%s692 + $0x61] sm:$0xff]
        %v1163 = vld [vmem:[%s692 + $0x71] sm:$0xff]
        %v1164 = vpack.c.bf16 %v1157, %v1156
        %v1165 = vpack.c.bf16 %v1159, %v1158
        %v1166 = vpack.c.bf16 %v1161, %v1160
        %v1167 = vpack.c.bf16 %v1163, %v1162
        %s1168 = scalar_lea.vmem [#allocation11], 256
        %v1169 = vld [vmem:[%s1168] sm:$0xf]
        %v1170 = vld [vmem:[%s1168 + $0x4] sm:$0xf]
        %v1171 = vld [vmem:[%s1168 + $0x8] sm:$0xf]
        %v1172 = vld [vmem:[%s1168 + $0xc] sm:$0xf]
        %v1173 = vld [vmem:[%s1168 + $0x10] sm:$0xf]
        %v1174 = vld [vmem:[%s1168 + $0x14] sm:$0xf]
        %v1175 = vld [vmem:[%s1168 + $0x18] sm:$0xf]
        %v1176 = vld [vmem:[%s1168 + $0x1c] sm:$0xf]
        %v1177 = vld [vmem:[%s1168 + $0x20] sm:$0xf]
        %v1178 = vld [vmem:[%s1168 + $0x24] sm:$0xf]
        %v1179 = vld [vmem:[%s1168 + $0x28] sm:$0xf]
        %v1180 = vld [vmem:[%s1168 + $0x2c] sm:$0xf]
        %v1181 = vld [vmem:[%s1168 + $0x30] sm:$0xf]
        %v1182 = vld [vmem:[%s1168 + $0x34] sm:$0xf]
        %v1183 = vld [vmem:[%s1168 + $0x38] sm:$0xf]
        %v1184 = vld [vmem:[%s1168 + $0x3c] sm:$0xf]
        %v1201 = vunpack.c.l.b16 %v1169
        %v1202 = vunpack.c.l.b16 %v1170
        %v1203 = vunpack.c.l.b16 %v1171
        %v1204 = vunpack.c.l.b16 %v1172
        %v1205 = vunpack.c.l.b16 %v1173
        %v1206 = vunpack.c.l.b16 %v1174
        %v1207 = vunpack.c.l.b16 %v1175
        %v1208 = vunpack.c.l.b16 %v1176
        %v1209 = vunpack.c.l.b16 %v1177
        %v1210 = vunpack.c.l.b16 %v1178
        %v1211 = vunpack.c.l.b16 %v1179
        %v1212 = vunpack.c.l.b16 %v1180
        %v1213 = vunpack.c.l.b16 %v1181
        %v1214 = vunpack.c.l.b16 %v1182
        %v1215 = vunpack.c.l.b16 %v1183
        %v1216 = vunpack.c.l.b16 %v1184
        %v1217 = vpack.c.b16 %v1202, %v1201
        %v1218 = vpack.c.b16 %v1204, %v1203
        %v1219 = vpack.c.b16 %v1206, %v1205
        %v1220 = vpack.c.b16 %v1208, %v1207
        %v1221 = vpack.c.b16 %v1210, %v1209
        %v1222 = vpack.c.b16 %v1212, %v1211
        %v1223 = vpack.c.b16 %v1214, %v1213
        %v1224 = vpack.c.b16 %v1216, %v1215
        %1233 = vmatpush.bf16.msra.mxu0 %v1224
        %1234 = vmatpush.bf16.msra.mxu0 %v1223
        %1235 = vmatpush.bf16.msra.mxu0 %v1222
        %1236 = vmatpush.bf16.msra.mxu0 %v1221
        %1237 = vmatpush.bf16.msra.mxu0 %v1220
        %1238 = vmatpush.bf16.msra.mxu0 %v1219
        %1239 = vmatpush.bf16.msra.mxu0 %v1218
        %1240 = vmatpush.bf16.msra.mxu0 %v1217
        %1241 = vmatmul.bf16.gmra.mxu0 %v1164
        %v1242 = vpop.f32.mrf.mxu0
        %v1243 = vadd.f32 0.0, %v1242
        %v1244 = vpop.f32.mrf.mxu0
        %v1245 = vadd.f32 0.0, %v1244
        %1246 = vmatmul.bf16.gmra.mxu0 %v1165
        %v1247 = vpop.f32.mrf.mxu0
        %v1248 = vadd.f32 0.0, %v1247
        %v1249 = vpop.f32.mrf.mxu0
        %v1250 = vadd.f32 0.0, %v1249
        %1251 = vmatmul.bf16.gmra.mxu0 %v1166
        %v1252 = vpop.f32.mrf.mxu0
        %v1253 = vadd.f32 0.0, %v1252
        %v1254 = vpop.f32.mrf.mxu0
        %v1255 = vadd.f32 0.0, %v1254
        %1256 = vmatmul.bf16.gmra.mxu0 %v1167
        %v1257 = vpop.f32.mrf.mxu0
        %v1258 = vadd.f32 0.0, %v1257
        %v1259 = vpop.f32.mrf.mxu0
        %v1260 = vadd.f32 0.0, %v1259
        %1261 = vdwg.mxu0
        %v1262 = vadd.f32 %v1148, %v1243
        %v1263 = vadd.f32 %v1149, %v1245
        %v1264 = vadd.f32 %v1150, %v1248
        %v1265 = vadd.f32 %v1151, %v1250
        %v1266 = vadd.f32 %v1152, %v1253
        %v1267 = vadd.f32 %v1153, %v1255
        %v1268 = vadd.f32 %v1154, %v1258
        %v1269 = vadd.f32 %v1155, %v1260
        %v1270 = vld [vmem:[%s692 + $0x2] sm:$0xff]
        %v1271 = vld [vmem:[%s692 + $0x12] sm:$0xff]
        %v1272 = vld [vmem:[%s692 + $0x22] sm:$0xff]
        %v1273 = vld [vmem:[%s692 + $0x32] sm:$0xff]
        %v1274 = vld [vmem:[%s692 + $0x42] sm:$0xff]
        %v1275 = vld [vmem:[%s692 + $0x52] sm:$0xff]
        %v1276 = vld [vmem:[%s692 + $0x62] sm:$0xff]
        %v1277 = vld [vmem:[%s692 + $0x72] sm:$0xff]
        %v1278 = vpack.c.bf16 %v1271, %v1270
        %v1279 = vpack.c.bf16 %v1273, %v1272
        %v1280 = vpack.c.bf16 %v1275, %v1274
        %v1281 = vpack.c.bf16 %v1277, %v1276
        %s1282 = scalar_lea.vmem [#allocation11], 320
        %v1283 = vld [vmem:[%s1282] sm:$0xf]
        %v1284 = vld [vmem:[%s1282 + $0x4] sm:$0xf]
        %v1285 = vld [vmem:[%s1282 + $0x8] sm:$0xf]
        %v1286 = vld [vmem:[%s1282 + $0xc] sm:$0xf]
        %v1287 = vld [vmem:[%s1282 + $0x10] sm:$0xf]
        %v1288 = vld [vmem:[%s1282 + $0x14] sm:$0xf]
        %v1289 = vld [vmem:[%s1282 + $0x18] sm:$0xf]
        %v1290 = vld [vmem:[%s1282 + $0x1c] sm:$0xf]
        %v1291 = vld [vmem:[%s1282 + $0x20] sm:$0xf]
        %v1292 = vld [vmem:[%s1282 + $0x24] sm:$0xf]
        %v1293 = vld [vmem:[%s1282 + $0x28] sm:$0xf]
        %v1294 = vld [vmem:[%s1282 + $0x2c] sm:$0xf]
        %v1295 = vld [vmem:[%s1282 + $0x30] sm:$0xf]
        %v1296 = vld [vmem:[%s1282 + $0x34] sm:$0xf]
        %v1297 = vld [vmem:[%s1282 + $0x38] sm:$0xf]
        %v1298 = vld [vmem:[%s1282 + $0x3c] sm:$0xf]
        %v1315 = vunpack.c.l.b16 %v1283
        %v1316 = vunpack.c.l.b16 %v1284
        %v1317 = vunpack.c.l.b16 %v1285
        %v1318 = vunpack.c.l.b16 %v1286
        %v1319 = vunpack.c.l.b16 %v1287
        %v1320 = vunpack.c.l.b16 %v1288
        %v1321 = vunpack.c.l.b16 %v1289
        %v1322 = vunpack.c.l.b16 %v1290
        %v1323 = vunpack.c.l.b16 %v1291
        %v1324 = vunpack.c.l.b16 %v1292
        %v1325 = vunpack.c.l.b16 %v1293
        %v1326 = vunpack.c.l.b16 %v1294
        %v1327 = vunpack.c.l.b16 %v1295
        %v1328 = vunpack.c.l.b16 %v1296
        %v1329 = vunpack.c.l.b16 %v1297
        %v1330 = vunpack.c.l.b16 %v1298
        %v1331 = vpack.c.b16 %v1316, %v1315
        %v1332 = vpack.c.b16 %v1318, %v1317
        %v1333 = vpack.c.b16 %v1320, %v1319
        %v1334 = vpack.c.b16 %v1322, %v1321
        %v1335 = vpack.c.b16 %v1324, %v1323
        %v1336 = vpack.c.b16 %v1326, %v1325
        %v1337 = vpack.c.b16 %v1328, %v1327
        %v1338 = vpack.c.b16 %v1330, %v1329
        %1347 = vmatpush.bf16.msra.mxu0 %v1338
        %1348 = vmatpush.bf16.msra.mxu0 %v1337
        %1349 = vmatpush.bf16.msra.mxu0 %v1336
        %1350 = vmatpush.bf16.msra.mxu0 %v1335
        %1351 = vmatpush.bf16.msra.mxu0 %v1334
        %1352 = vmatpush.bf16.msra.mxu0 %v1333
        %1353 = vmatpush.bf16.msra.mxu0 %v1332
        %1354 = vmatpush.bf16.msra.mxu0 %v1331
        %1355 = vmatmul.bf16.gmra.mxu0 %v1278
        %v1356 = vpop.f32.mrf.mxu0
        %v1357 = vadd.f32 0.0, %v1356
        %v1358 = vpop.f32.mrf.mxu0
        %v1359 = vadd.f32 0.0, %v1358
        %1360 = vmatmul.bf16.gmra.mxu0 %v1279
        %v1361 = vpop.f32.mrf.mxu0
        %v1362 = vadd.f32 0.0, %v1361
        %v1363 = vpop.f32.mrf.mxu0
        %v1364 = vadd.f32 0.0, %v1363
        %1365 = vmatmul.bf16.gmra.mxu0 %v1280
        %v1366 = vpop.f32.mrf.mxu0
        %v1367 = vadd.f32 0.0, %v1366
        %v1368 = vpop.f32.mrf.mxu0
        %v1369 = vadd.f32 0.0, %v1368
        %1370 = vmatmul.bf16.gmra.mxu0 %v1281
        %v1371 = vpop.f32.mrf.mxu0
        %v1372 = vadd.f32 0.0, %v1371
        %v1373 = vpop.f32.mrf.mxu0
        %v1374 = vadd.f32 0.0, %v1373
        %1375 = vdwg.mxu0
        %v1376 = vadd.f32 %v1262, %v1357
        %v1377 = vadd.f32 %v1263, %v1359
        %v1378 = vadd.f32 %v1264, %v1362
        %v1379 = vadd.f32 %v1265, %v1364
        %v1380 = vadd.f32 %v1266, %v1367
        %v1381 = vadd.f32 %v1267, %v1369
        %v1382 = vadd.f32 %v1268, %v1372
        %v1383 = vadd.f32 %v1269, %v1374
        %s1384 = scalar_lea.vmem [#allocation2], 32
        %v1385 = vld [vmem:[%s1384] sm:$0xff]
        %v1386 = vld [vmem:[%s1384 + $0x10] sm:$0xff]
        %v1387 = vld [vmem:[%s1384 + $0x20] sm:$0xff]
        %v1388 = vld [vmem:[%s1384 + $0x30] sm:$0xff]
        %v1389 = vld [vmem:[%s1384 + $0x40] sm:$0xff]
        %v1390 = vld [vmem:[%s1384 + $0x50] sm:$0xff]
        %v1391 = vld [vmem:[%s1384 + $0x60] sm:$0xff]
        %v1392 = vld [vmem:[%s1384 + $0x70] sm:$0xff]
        %v1393 = vpack.c.bf16 %v1386, %v1385
        %v1394 = vpack.c.bf16 %v1388, %v1387
        %v1395 = vpack.c.bf16 %v1390, %v1389
        %v1396 = vpack.c.bf16 %v1392, %v1391
        %s1397 = scalar_lea.vmem [#allocation11], 384
        %v1398 = vld [vmem:[%s1397] sm:$0xf]
        %v1399 = vld [vmem:[%s1397 + $0x4] sm:$0xf]
        %v1400 = vld [vmem:[%s1397 + $0x8] sm:$0xf]
        %v1401 = vld [vmem:[%s1397 + $0xc] sm:$0xf]
        %v1402 = vld [vmem:[%s1397 + $0x10] sm:$0xf]
        %v1403 = vld [vmem:[%s1397 + $0x14] sm:$0xf]
        %v1404 = vld [vmem:[%s1397 + $0x18] sm:$0xf]
        %v1405 = vld [vmem:[%s1397 + $0x1c] sm:$0xf]
        %v1406 = vld [vmem:[%s1397 + $0x20] sm:$0xf]
        %v1407 = vld [vmem:[%s1397 + $0x24] sm:$0xf]
        %v1408 = vld [vmem:[%s1397 + $0x28] sm:$0xf]
        %v1409 = vld [vmem:[%s1397 + $0x2c] sm:$0xf]
        %v1410 = vld [vmem:[%s1397 + $0x30] sm:$0xf]
        %v1411 = vld [vmem:[%s1397 + $0x34] sm:$0xf]
        %v1412 = vld [vmem:[%s1397 + $0x38] sm:$0xf]
        %v1413 = vld [vmem:[%s1397 + $0x3c] sm:$0xf]
        %v1430 = vunpack.c.l.b16 %v1398
        %v1431 = vunpack.c.l.b16 %v1399
        %v1432 = vunpack.c.l.b16 %v1400
        %v1433 = vunpack.c.l.b16 %v1401
        %v1434 = vunpack.c.l.b16 %v1402
        %v1435 = vunpack.c.l.b16 %v1403
        %v1436 = vunpack.c.l.b16 %v1404
        %v1437 = vunpack.c.l.b16 %v1405
        %v1438 = vunpack.c.l.b16 %v1406
        %v1439 = vunpack.c.l.b16 %v1407
        %v1440 = vunpack.c.l.b16 %v1408
        %v1441 = vunpack.c.l.b16 %v1409
        %v1442 = vunpack.c.l.b16 %v1410
        %v1443 = vunpack.c.l.b16 %v1411
        %v1444 = vunpack.c.l.b16 %v1412
        %v1445 = vunpack.c.l.b16 %v1413
        %v1446 = vpack.c.b16 %v1431, %v1430
        %v1447 = vpack.c.b16 %v1433, %v1432
        %v1448 = vpack.c.b16 %v1435, %v1434
        %v1449 = vpack.c.b16 %v1437, %v1436
        %v1450 = vpack.c.b16 %v1439, %v1438
        %v1451 = vpack.c.b16 %v1441, %v1440
        %v1452 = vpack.c.b16 %v1443, %v1442
        %v1453 = vpack.c.b16 %v1445, %v1444
        %1462 = vmatpush.bf16.msra.mxu0 %v1453
        %1463 = vmatpush.bf16.msra.mxu0 %v1452
        %1464 = vmatpush.bf16.msra.mxu0 %v1451
        %1465 = vmatpush.bf16.msra.mxu0 %v1450
        %1466 = vmatpush.bf16.msra.mxu0 %v1449
        %1467 = vmatpush.bf16.msra.mxu0 %v1448
        %1468 = vmatpush.bf16.msra.mxu0 %v1447
        %1469 = vmatpush.bf16.msra.mxu0 %v1446
        %1470 = vmatmul.bf16.gmra.mxu0 %v1393
        %v1471 = vpop.f32.mrf.mxu0
        %v1472 = vadd.f32 0.0, %v1471
        %v1473 = vpop.f32.mrf.mxu0
        %v1474 = vadd.f32 0.0, %v1473
        %1475 = vmatmul.bf16.gmra.mxu0 %v1394
        %v1476 = vpop.f32.mrf.mxu0
        %v1477 = vadd.f32 0.0, %v1476
        %v1478 = vpop.f32.mrf.mxu0
        %v1479 = vadd.f32 0.0, %v1478
        %1480 = vmatmul.bf16.gmra.mxu0 %v1395
        %v1481 = vpop.f32.mrf.mxu0
        %v1482 = vadd.f32 0.0, %v1481
        %v1483 = vpop.f32.mrf.mxu0
        %v1484 = vadd.f32 0.0, %v1483
        %1485 = vmatmul.bf16.gmra.mxu0 %v1396
        %v1486 = vpop.f32.mrf.mxu0
        %v1487 = vadd.f32 0.0, %v1486
        %v1488 = vpop.f32.mrf.mxu0
        %v1489 = vadd.f32 0.0, %v1488
        %1490 = vdwg.mxu0
        %v1491 = vadd.f32 %v1376, %v1472
        %v1492 = vadd.f32 %v1377, %v1474
        %v1493 = vadd.f32 %v1378, %v1477
        %v1494 = vadd.f32 %v1379, %v1479
        %v1495 = vadd.f32 %v1380, %v1482
        %v1496 = vadd.f32 %v1381, %v1484
        %v1497 = vadd.f32 %v1382, %v1487
        %v1498 = vadd.f32 %v1383, %v1489
        %v1499 = vld [vmem:[%s1384 + $0x1] sm:$0xff]
        %v1500 = vld [vmem:[%s1384 + $0x11] sm:$0xff]
        %v1501 = vld [vmem:[%s1384 + $0x21] sm:$0xff]
        %v1502 = vld [vmem:[%s1384 + $0x31] sm:$0xff]
        %v1503 = vld [vmem:[%s1384 + $0x41] sm:$0xff]
        %v1504 = vld [vmem:[%s1384 + $0x51] sm:$0xff]
        %v1505 = vld [vmem:[%s1384 + $0x61] sm:$0xff]
        %v1506 = vld [vmem:[%s1384 + $0x71] sm:$0xff]
        %v1507 = vpack.c.bf16 %v1500, %v1499
        %v1508 = vpack.c.bf16 %v1502, %v1501
        %v1509 = vpack.c.bf16 %v1504, %v1503
        %v1510 = vpack.c.bf16 %v1506, %v1505
        %s1511 = scalar_lea.vmem [#allocation11], 448
        %v1512 = vld [vmem:[%s1511] sm:$0xf]
        %v1513 = vld [vmem:[%s1511 + $0x4] sm:$0xf]
        %v1514 = vld [vmem:[%s1511 + $0x8] sm:$0xf]
        %v1515 = vld [vmem:[%s1511 + $0xc] sm:$0xf]
        %v1516 = vld [vmem:[%s1511 + $0x10] sm:$0xf]
        %v1517 = vld [vmem:[%s1511 + $0x14] sm:$0xf]
        %v1518 = vld [vmem:[%s1511 + $0x18] sm:$0xf]
        %v1519 = vld [vmem:[%s1511 + $0x1c] sm:$0xf]
        %v1520 = vld [vmem:[%s1511 + $0x20] sm:$0xf]
        %v1521 = vld [vmem:[%s1511 + $0x24] sm:$0xf]
        %v1522 = vld [vmem:[%s1511 + $0x28] sm:$0xf]
        %v1523 = vld [vmem:[%s1511 + $0x2c] sm:$0xf]
        %v1524 = vld [vmem:[%s1511 + $0x30] sm:$0xf]
        %v1525 = vld [vmem:[%s1511 + $0x34] sm:$0xf]
        %v1526 = vld [vmem:[%s1511 + $0x38] sm:$0xf]
        %v1527 = vld [vmem:[%s1511 + $0x3c] sm:$0xf]
        %v1544 = vunpack.c.l.b16 %v1512
        %v1545 = vunpack.c.l.b16 %v1513
        %v1546 = vunpack.c.l.b16 %v1514
        %v1547 = vunpack.c.l.b16 %v1515
        %v1548 = vunpack.c.l.b16 %v1516
        %v1549 = vunpack.c.l.b16 %v1517
        %v1550 = vunpack.c.l.b16 %v1518
        %v1551 = vunpack.c.l.b16 %v1519
        %v1552 = vunpack.c.l.b16 %v1520
        %v1553 = vunpack.c.l.b16 %v1521
        %v1554 = vunpack.c.l.b16 %v1522
        %v1555 = vunpack.c.l.b16 %v1523
        %v1556 = vunpack.c.l.b16 %v1524
        %v1557 = vunpack.c.l.b16 %v1525
        %v1558 = vunpack.c.l.b16 %v1526
        %v1559 = vunpack.c.l.b16 %v1527
        %v1560 = vpack.c.b16 %v1545, %v1544
        %v1561 = vpack.c.b16 %v1547, %v1546
        %v1562 = vpack.c.b16 %v1549, %v1548
        %v1563 = vpack.c.b16 %v1551, %v1550
        %v1564 = vpack.c.b16 %v1553, %v1552
        %v1565 = vpack.c.b16 %v1555, %v1554
        %v1566 = vpack.c.b16 %v1557, %v1556
        %v1567 = vpack.c.b16 %v1559, %v1558
        %1576 = vmatpush.bf16.msra.mxu0 %v1567
        %1577 = vmatpush.bf16.msra.mxu0 %v1566
        %1578 = vmatpush.bf16.msra.mxu0 %v1565
        %1579 = vmatpush.bf16.msra.mxu0 %v1564
        %1580 = vmatpush.bf16.msra.mxu0 %v1563
        %1581 = vmatpush.bf16.msra.mxu0 %v1562
        %1582 = vmatpush.bf16.msra.mxu0 %v1561
        %1583 = vmatpush.bf16.msra.mxu0 %v1560
        %1584 = vmatmul.bf16.gmra.mxu0 %v1507
        %v1585 = vpop.f32.mrf.mxu0
        %v1586 = vadd.f32 0.0, %v1585
        %v1587 = vpop.f32.mrf.mxu0
        %v1588 = vadd.f32 0.0, %v1587
        %1589 = vmatmul.bf16.gmra.mxu0 %v1508
        %v1590 = vpop.f32.mrf.mxu0
        %v1591 = vadd.f32 0.0, %v1590
        %v1592 = vpop.f32.mrf.mxu0
        %v1593 = vadd.f32 0.0, %v1592
        %1594 = vmatmul.bf16.gmra.mxu0 %v1509
        %v1595 = vpop.f32.mrf.mxu0
        %v1596 = vadd.f32 0.0, %v1595
        %v1597 = vpop.f32.mrf.mxu0
        %v1598 = vadd.f32 0.0, %v1597
        %1599 = vmatmul.bf16.gmra.mxu0 %v1510
        %v1600 = vpop.f32.mrf.mxu0
        %v1601 = vadd.f32 0.0, %v1600
        %v1602 = vpop.f32.mrf.mxu0
        %v1603 = vadd.f32 0.0, %v1602
        %1604 = vdwg.mxu0
        %v1605 = vadd.f32 %v1491, %v1586
        %v1606 = vadd.f32 %v1492, %v1588
        %v1607 = vadd.f32 %v1493, %v1591
        %v1608 = vadd.f32 %v1494, %v1593
        %v1609 = vadd.f32 %v1495, %v1596
        %v1610 = vadd.f32 %v1496, %v1598
        %v1611 = vadd.f32 %v1497, %v1601
        %v1612 = vadd.f32 %v1498, %v1603
        %v1613 = vld [vmem:[%s1384 + $0x2] sm:$0xff]
        %v1614 = vld [vmem:[%s1384 + $0x12] sm:$0xff]
        %v1615 = vld [vmem:[%s1384 + $0x22] sm:$0xff]
        %v1616 = vld [vmem:[%s1384 + $0x32] sm:$0xff]
        %v1617 = vld [vmem:[%s1384 + $0x42] sm:$0xff]
        %v1618 = vld [vmem:[%s1384 + $0x52] sm:$0xff]
        %v1619 = vld [vmem:[%s1384 + $0x62] sm:$0xff]
        %v1620 = vld [vmem:[%s1384 + $0x72] sm:$0xff]
        %v1621 = vpack.c.bf16 %v1614, %v1613
        %v1622 = vpack.c.bf16 %v1616, %v1615
        %v1623 = vpack.c.bf16 %v1618, %v1617
        %v1624 = vpack.c.bf16 %v1620, %v1619
        %s1625 = scalar_lea.vmem [#allocation11], 512
        %v1626 = vld [vmem:[%s1625] sm:$0xf]
        %v1627 = vld [vmem:[%s1625 + $0x4] sm:$0xf]
        %v1628 = vld [vmem:[%s1625 + $0x8] sm:$0xf]
        %v1629 = vld [vmem:[%s1625 + $0xc] sm:$0xf]
        %v1630 = vld [vmem:[%s1625 + $0x10] sm:$0xf]
        %v1631 = vld [vmem:[%s1625 + $0x14] sm:$0xf]
        %v1632 = vld [vmem:[%s1625 + $0x18] sm:$0xf]
        %v1633 = vld [vmem:[%s1625 + $0x1c] sm:$0xf]
        %v1634 = vld [vmem:[%s1625 + $0x20] sm:$0xf]
        %v1635 = vld [vmem:[%s1625 + $0x24] sm:$0xf]
        %v1636 = vld [vmem:[%s1625 + $0x28] sm:$0xf]
        %v1637 = vld [vmem:[%s1625 + $0x2c] sm:$0xf]
        %v1638 = vld [vmem:[%s1625 + $0x30] sm:$0xf]
        %v1639 = vld [vmem:[%s1625 + $0x34] sm:$0xf]
        %v1640 = vld [vmem:[%s1625 + $0x38] sm:$0xf]
        %v1641 = vld [vmem:[%s1625 + $0x3c] sm:$0xf]
        %v1658 = vunpack.c.l.b16 %v1626
        %v1659 = vunpack.c.l.b16 %v1627
        %v1660 = vunpack.c.l.b16 %v1628
        %v1661 = vunpack.c.l.b16 %v1629
        %v1662 = vunpack.c.l.b16 %v1630
        %v1663 = vunpack.c.l.b16 %v1631
        %v1664 = vunpack.c.l.b16 %v1632
        %v1665 = vunpack.c.l.b16 %v1633
        %v1666 = vunpack.c.l.b16 %v1634
        %v1667 = vunpack.c.l.b16 %v1635
        %v1668 = vunpack.c.l.b16 %v1636
        %v1669 = vunpack.c.l.b16 %v1637
        %v1670 = vunpack.c.l.b16 %v1638
        %v1671 = vunpack.c.l.b16 %v1639
        %v1672 = vunpack.c.l.b16 %v1640
        %v1673 = vunpack.c.l.b16 %v1641
        %v1674 = vpack.c.b16 %v1659, %v1658
        %v1675 = vpack.c.b16 %v1661, %v1660
        %v1676 = vpack.c.b16 %v1663, %v1662
        %v1677 = vpack.c.b16 %v1665, %v1664
        %v1678 = vpack.c.b16 %v1667, %v1666
        %v1679 = vpack.c.b16 %v1669, %v1668
        %v1680 = vpack.c.b16 %v1671, %v1670
        %v1681 = vpack.c.b16 %v1673, %v1672
        %1690 = vmatpush.bf16.msra.mxu0 %v1681
        %1691 = vmatpush.bf16.msra.mxu0 %v1680
        %1692 = vmatpush.bf16.msra.mxu0 %v1679
        %1693 = vmatpush.bf16.msra.mxu0 %v1678
        %1694 = vmatpush.bf16.msra.mxu0 %v1677
        %1695 = vmatpush.bf16.msra.mxu0 %v1676
        %1696 = vmatpush.bf16.msra.mxu0 %v1675
        %1697 = vmatpush.bf16.msra.mxu0 %v1674
        %1698 = vmatmul.bf16.gmra.mxu0 %v1621
        %v1699 = vpop.f32.mrf.mxu0
        %v1700 = vadd.f32 0.0, %v1699
        %v1701 = vpop.f32.mrf.mxu0
        %v1702 = vadd.f32 0.0, %v1701
        %1703 = vmatmul.bf16.gmra.mxu0 %v1622
        %v1704 = vpop.f32.mrf.mxu0
        %v1705 = vadd.f32 0.0, %v1704
        %v1706 = vpop.f32.mrf.mxu0
        %v1707 = vadd.f32 0.0, %v1706
        %1708 = vmatmul.bf16.gmra.mxu0 %v1623
        %v1709 = vpop.f32.mrf.mxu0
        %v1710 = vadd.f32 0.0, %v1709
        %v1711 = vpop.f32.mrf.mxu0
        %v1712 = vadd.f32 0.0, %v1711
        %1713 = vmatmul.bf16.gmra.mxu0 %v1624
        %v1714 = vpop.f32.mrf.mxu0
        %v1715 = vadd.f32 0.0, %v1714
        %v1716 = vpop.f32.mrf.mxu0
        %v1717 = vadd.f32 0.0, %v1716
        %1718 = vdwg.mxu0
        %v1719 = vadd.f32 %v1605, %v1700
        %v1720 = vadd.f32 %v1606, %v1702
        %v1721 = vadd.f32 %v1607, %v1705
        %v1722 = vadd.f32 %v1608, %v1707
        %v1723 = vadd.f32 %v1609, %v1710
        %v1724 = vadd.f32 %v1610, %v1712
        %v1725 = vadd.f32 %v1611, %v1715
        %v1726 = vadd.f32 %v1612, %v1717
        %v1727 = vld [vmem:[%s5] sm:$0x1]
        %v1729 = vperm.slane %v1727, 0
        %v1731 = vadd.f32 %v1719, %v1729
        %v1732 = vadd.f32 %v1720, %v1729
        %v1733 = vadd.f32 %v1721, %v1729
        %v1734 = vadd.f32 %v1722, %v1729
        %v1735 = vadd.f32 %v1723, %v1729
        %v1736 = vadd.f32 %v1724, %v1729
        %v1737 = vadd.f32 %v1725, %v1729
        %v1738 = vadd.f32 %v1726, %v1729
        %1739 = vst [vmem:[#allocation3] sm:$0xff] %v1731
        %1740 = vst [vmem:[#allocation3 + $0x8] sm:$0xff] %v1732
        %1741 = vst [vmem:[#allocation3 + $0x10] sm:$0xff] %v1733
        %1742 = vst [vmem:[#allocation3 + $0x18] sm:$0xff] %v1734
        %1743 = vst [vmem:[#allocation3 + $0x20] sm:$0xff] %v1735
        %1744 = vst [vmem:[#allocation3 + $0x28] sm:$0xff] %v1736
        %1745 = vst [vmem:[#allocation3 + $0x30] sm:$0xff] %v1737
        %1746 = vst [vmem:[#allocation3 + $0x38] sm:$0xff] %v1738
        %s1747 = scalar_lea.vmem %s400, 32 [#allocation5]
        %v1748 = vld [vmem:[%s1747] sm:$0xf]
        %v1749 = vld [vmem:[%s1747 + $0x4] sm:$0xf]
        %v1750 = vld [vmem:[%s1747 + $0x8] sm:$0xf]
        %v1751 = vld [vmem:[%s1747 + $0xc] sm:$0xf]
        %v1752 = vld [vmem:[%s1747 + $0x10] sm:$0xf]
        %v1753 = vld [vmem:[%s1747 + $0x14] sm:$0xf]
        %v1754 = vld [vmem:[%s1747 + $0x18] sm:$0xf]
        %v1755 = vld [vmem:[%s1747 + $0x1c] sm:$0xf]
        %s1756 = scalar_lea.vmem [#allocation8], 128
        %v1757 = vld [vmem:[%s1756] sm:$0xff]
        %v1758 = vld [vmem:[%s1756 + $0x8] sm:$0xff]
        %v1759 = vld [vmem:[%s1756 + $0x10] sm:$0xff]
        %v1760 = vld [vmem:[%s1756 + $0x18] sm:$0xff]
        %v1761 = vld [vmem:[%s1756 + $0x20] sm:$0xff]
        %v1762 = vld [vmem:[%s1756 + $0x28] sm:$0xff]
        %v1763 = vld [vmem:[%s1756 + $0x30] sm:$0xff]
        %v1764 = vld [vmem:[%s1756 + $0x38] sm:$0xff]
        %v1765 = vld [vmem:[%s1756 + $0x40] sm:$0xff]
        %v1766 = vld [vmem:[%s1756 + $0x48] sm:$0xff]
        %v1767 = vld [vmem:[%s1756 + $0x50] sm:$0xff]
        %v1768 = vld [vmem:[%s1756 + $0x58] sm:$0xff]
        %v1769 = vld [vmem:[%s1756 + $0x60] sm:$0xff]
        %v1770 = vld [vmem:[%s1756 + $0x68] sm:$0xff]
        %v1771 = vld [vmem:[%s1756 + $0x70] sm:$0xff]
        %v1772 = vld [vmem:[%s1756 + $0x78] sm:$0xff]
        %v1781 = vunpack.c.l.b16 %v1748
        %v1782 = vunpack.c.l.b16 %v1749
        %v1783 = vunpack.c.l.b16 %v1750
        %v1784 = vunpack.c.l.b16 %v1751
        %v1785 = vunpack.c.l.b16 %v1752
        %v1786 = vunpack.c.l.b16 %v1753
        %v1787 = vunpack.c.l.b16 %v1754
        %v1788 = vunpack.c.l.b16 %v1755
        %v1789 = vpack.c.b16 %v1782, %v1781
        %v1790 = vpack.c.b16 %v1784, %v1783
        %v1791 = vpack.c.b16 %v1786, %v1785
        %v1792 = vpack.c.b16 %v1788, %v1787
        %v1813 = vunpack.c.l.b16 %v1757
        %v1814 = vunpack.c.h.b16 %v1757
        %v1815 = vunpack.c.l.b16 %v1758
        %v1816 = vunpack.c.h.b16 %v1758
        %v1817 = vunpack.c.l.b16 %v1759
        %v1818 = vunpack.c.h.b16 %v1759
        %v1819 = vunpack.c.l.b16 %v1760
        %v1820 = vunpack.c.h.b16 %v1760
        %v1821 = vunpack.c.l.b16 %v1761
        %v1822 = vunpack.c.h.b16 %v1761
        %v1823 = vunpack.c.l.b16 %v1762
        %v1824 = vunpack.c.h.b16 %v1762
        %v1825 = vunpack.c.l.b16 %v1763
        %v1826 = vunpack.c.h.b16 %v1763
        %v1827 = vunpack.c.l.b16 %v1764
        %v1828 = vunpack.c.h.b16 %v1764
        %v1829 = vunpack.c.l.b16 %v1765
        %v1830 = vunpack.c.h.b16 %v1765
        %v1831 = vunpack.c.l.b16 %v1766
        %v1832 = vunpack.c.h.b16 %v1766
        %v1833 = vunpack.c.l.b16 %v1767
        %v1834 = vunpack.c.h.b16 %v1767
        %v1835 = vunpack.c.l.b16 %v1768
        %v1836 = vunpack.c.h.b16 %v1768
        %v1837 = vunpack.c.l.b16 %v1769
        %v1838 = vunpack.c.h.b16 %v1769
        %v1839 = vunpack.c.l.b16 %v1770
        %v1840 = vunpack.c.h.b16 %v1770
        %v1841 = vunpack.c.l.b16 %v1771
        %v1842 = vunpack.c.h.b16 %v1771
        %v1843 = vunpack.c.l.b16 %v1772
        %v1844 = vunpack.c.h.b16 %v1772
        %v1845 = vpack.c.b16 %v1815, %v1813
        %v1846 = vpack.c.b16 %v1816, %v1814
        %v1847 = vpack.c.b16 %v1819, %v1817
        %v1848 = vpack.c.b16 %v1820, %v1818
        %v1849 = vpack.c.b16 %v1823, %v1821
        %v1850 = vpack.c.b16 %v1824, %v1822
        %v1851 = vpack.c.b16 %v1827, %v1825
        %v1852 = vpack.c.b16 %v1828, %v1826
        %v1853 = vpack.c.b16 %v1831, %v1829
        %v1854 = vpack.c.b16 %v1832, %v1830
        %v1855 = vpack.c.b16 %v1835, %v1833
        %v1856 = vpack.c.b16 %v1836, %v1834
        %v1857 = vpack.c.b16 %v1839, %v1837
        %v1858 = vpack.c.b16 %v1840, %v1838
        %v1859 = vpack.c.b16 %v1843, %v1841
        %v1860 = vpack.c.b16 %v1844, %v1842
        %1877 = vmatpush.bf16.msra.mxu0 %v1859
        %1878 = vmatpush.bf16.msra.mxu0 %v1857
        %1879 = vmatpush.bf16.msra.mxu0 %v1855
        %1880 = vmatpush.bf16.msra.mxu0 %v1853
        %1881 = vmatpush.bf16.msra.mxu0 %v1851
        %1882 = vmatpush.bf16.msra.mxu0 %v1849
        %1883 = vmatpush.bf16.msra.mxu0 %v1847
        %1884 = vmatpush.bf16.msra.mxu0 %v1845
        %1885 = vmatmul.bf16.gmra.mxu0 %v1789
        %v1886 = vpop.f32.mrf.mxu0
        %v1887 = vadd.f32 0.0, %v1886
        %v1888 = vpop.f32.mrf.mxu0
        %v1889 = vadd.f32 0.0, %v1888
        %1890 = vmatmul.bf16.gmra.mxu0 %v1790
        %v1891 = vpop.f32.mrf.mxu0
        %v1892 = vadd.f32 0.0, %v1891
        %v1893 = vpop.f32.mrf.mxu0
        %v1894 = vadd.f32 0.0, %v1893
        %1895 = vmatmul.bf16.gmra.mxu0 %v1791
        %v1896 = vpop.f32.mrf.mxu0
        %v1897 = vadd.f32 0.0, %v1896
        %v1898 = vpop.f32.mrf.mxu0
        %v1899 = vadd.f32 0.0, %v1898
        %1900 = vmatmul.bf16.gmra.mxu0 %v1792
        %v1901 = vpop.f32.mrf.mxu0
        %v1902 = vadd.f32 0.0, %v1901
        %v1903 = vpop.f32.mrf.mxu0
        %v1904 = vadd.f32 0.0, %v1903
        %1905 = vdwg.mxu0
        %1906 = vmatpush.bf16.msra.mxu0 %v1860
        %1907 = vmatpush.bf16.msra.mxu0 %v1858
        %1908 = vmatpush.bf16.msra.mxu0 %v1856
        %1909 = vmatpush.bf16.msra.mxu0 %v1854
        %1910 = vmatpush.bf16.msra.mxu0 %v1852
        %1911 = vmatpush.bf16.msra.mxu0 %v1850
        %1912 = vmatpush.bf16.msra.mxu0 %v1848
        %1913 = vmatpush.bf16.msra.mxu0 %v1846
        %1914 = vmatmul.bf16.gmra.mxu0 %v1789
        %v1915 = vpop.f32.mrf.mxu0
        %v1916 = vadd.f32 0.0, %v1915
        %v1917 = vpop.f32.mrf.mxu0
        %v1918 = vadd.f32 0.0, %v1917
        %1919 = vmatmul.bf16.gmra.mxu0 %v1790
        %v1920 = vpop.f32.mrf.mxu0
        %v1921 = vadd.f32 0.0, %v1920
        %v1922 = vpop.f32.mrf.mxu0
        %v1923 = vadd.f32 0.0, %v1922
        %1924 = vmatmul.bf16.gmra.mxu0 %v1791
        %v1925 = vpop.f32.mrf.mxu0
        %v1926 = vadd.f32 0.0, %v1925
        %v1927 = vpop.f32.mrf.mxu0
        %v1928 = vadd.f32 0.0, %v1927
        %1929 = vmatmul.bf16.gmra.mxu0 %v1792
        %v1930 = vpop.f32.mrf.mxu0
        %v1931 = vadd.f32 0.0, %v1930
        %v1932 = vpop.f32.mrf.mxu0
        %v1933 = vadd.f32 0.0, %v1932
        %1934 = vdwg.mxu0
        %s1935 = scalar_lea.vmem [#allocation10], 1
        %v1936 = vld [vmem:[%s1935] sm:$0x1]
        %v1938 = vperm.slane %v1936, 0
        %v1940 = vadd.f32 %v1887, %v1938
        %v1941 = vadd.f32 %v1889, %v1938
        %v1942 = vadd.f32 %v1892, %v1938
        %v1943 = vadd.f32 %v1894, %v1938
        %v1944 = vadd.f32 %v1897, %v1938
        %v1945 = vadd.f32 %v1899, %v1938
        %v1946 = vadd.f32 %v1902, %v1938
        %v1947 = vadd.f32 %v1904, %v1938
        %v1948 = vmax.f32 %v1940, 0.0
        %v1949 = vmax.f32 %v1941, 0.0
        %v1950 = vmax.f32 %v1942, 0.0
        %v1951 = vmax.f32 %v1943, 0.0
        %v1952 = vmax.f32 %v1944, 0.0
        %v1953 = vmax.f32 %v1945, 0.0
        %v1954 = vmax.f32 %v1946, 0.0
        %v1955 = vmax.f32 %v1947, 0.0
        %s1956 = scalar_lea.vmem %s3, 1
        %v1957 = vld [vmem:[%s1956] sm:$0x1]
        %v1959 = vperm.slane %v1957, 0
        %v1961 = vadd.f32 %v1916, %v1959
        %v1962 = vadd.f32 %v1918, %v1959
        %v1963 = vadd.f32 %v1921, %v1959
        %v1964 = vadd.f32 %v1923, %v1959
        %v1965 = vadd.f32 %v1926, %v1959
        %v1966 = vadd.f32 %v1928, %v1959
        %v1967 = vadd.f32 %v1931, %v1959
        %v1968 = vadd.f32 %v1933, %v1959
        %s1969 = scalar_lea.vmem [#allocation4], 64
        %1970 = vst [vmem:[%s1969] sm:$0xff] %v1961
        %1971 = vst [vmem:[%s1969 + $0x8] sm:$0xff] %v1962
        %1972 = vst [vmem:[%s1969 + $0x10] sm:$0xff] %v1963
        %1973 = vst [vmem:[%s1969 + $0x18] sm:$0xff] %v1964
        %1974 = vst [vmem:[%s1969 + $0x20] sm:$0xff] %v1965
        %1975 = vst [vmem:[%s1969 + $0x28] sm:$0xff] %v1966
        %1976 = vst [vmem:[%s1969 + $0x30] sm:$0xff] %v1967
        %1977 = vst [vmem:[%s1969 + $0x38] sm:$0xff] %v1968
        %s1978 = scalar_lea.vmem [#allocation2], 160
        %1979 = vst [vmem:[%s1978] sm:$0xff] 0.0
        %1980 = vst [vmem:[%s1978 + $0x8] sm:$0x3] 0.0
        %s1981 = scalar_lea.vmem [#allocation2], 304
        %1982 = vst [vmem:[%s1981] sm:$0xff] 0.0
        %1983 = vst [vmem:[%s1981 + $0x8] sm:$0x3] 0.0
        %s1984 = scalar_lea.vmem [#allocation2], 176
        %1985 = vst [vmem:[%s1984] sm:$0x1] 0.0
        %1986 = vst [vmem:[%s1984 + $0x10] sm:$0x1] 0.0
        %1987 = vst [vmem:[%s1984 + $0x20] sm:$0x1] 0.0
        %1988 = vst [vmem:[%s1984 + $0x30] sm:$0x1] 0.0
        %1989 = vst [vmem:[%s1984 + $0x40] sm:$0x1] 0.0
        %1990 = vst [vmem:[%s1984 + $0x50] sm:$0x1] 0.0
        %1991 = vst [vmem:[%s1984 + $0x60] sm:$0x1] 0.0
        %1992 = vst [vmem:[%s1984 + $0x70] sm:$0x1] 0.0
        %1993 = vst [vmem:[%s1984 + $0x9] sm:$0x1] 0.0
        %1994 = vst [vmem:[%s1984 + $0x19] sm:$0x1] 0.0
        %1995 = vst [vmem:[%s1984 + $0x29] sm:$0x1] 0.0
        %1996 = vst [vmem:[%s1984 + $0x39] sm:$0x1] 0.0
        %1997 = vst [vmem:[%s1984 + $0x49] sm:$0x1] 0.0
        %1998 = vst [vmem:[%s1984 + $0x59] sm:$0x1] 0.0
        %1999 = vst [vmem:[%s1984 + $0x69] sm:$0x1] 0.0
        %2000 = vst [vmem:[%s1984 + $0x79] sm:$0x1] 0.0
        %2001 = vst [vmem:[%s1984 + $0x1] sm:$0xff] %v1948
        %2002 = vst [vmem:[%s1984 + $0x11] sm:$0xff] %v1949
        %2003 = vst [vmem:[%s1984 + $0x21] sm:$0xff] %v1950
        %2004 = vst [vmem:[%s1984 + $0x31] sm:$0xff] %v1951
        %2005 = vst [vmem:[%s1984 + $0x41] sm:$0xff] %v1952
        %2006 = vst [vmem:[%s1984 + $0x51] sm:$0xff] %v1953
        %2007 = vst [vmem:[%s1984 + $0x61] sm:$0xff] %v1954
        %2008 = vst [vmem:[%s1984 + $0x71] sm:$0xff] %v1955
        %v2009 = vld [vmem:[%s1978] sm:$0xff]
        %v2010 = vld [vmem:[%s1978 + $0x10] sm:$0xff]
        %v2011 = vld [vmem:[%s1978 + $0x20] sm:$0xff]
        %v2012 = vld [vmem:[%s1978 + $0x30] sm:$0xff]
        %v2013 = vld [vmem:[%s1978 + $0x40] sm:$0xff]
        %v2014 = vld [vmem:[%s1978 + $0x50] sm:$0xff]
        %v2015 = vld [vmem:[%s1978 + $0x60] sm:$0xff]
        %v2016 = vld [vmem:[%s1978 + $0x70] sm:$0xff]
        %v2017 = vpack.c.bf16 %v2010, %v2009
        %v2018 = vpack.c.bf16 %v2012, %v2011
        %v2019 = vpack.c.bf16 %v2014, %v2013
        %v2020 = vpack.c.bf16 %v2016, %v2015
        %s2021 = scalar_lea.vmem [#allocation11], 576
        %v2022 = vld [vmem:[%s2021] sm:$0xf]
        %v2023 = vld [vmem:[%s2021 + $0x4] sm:$0xf]
        %v2024 = vld [vmem:[%s2021 + $0x8] sm:$0xf]
        %v2025 = vld [vmem:[%s2021 + $0xc] sm:$0xf]
        %v2026 = vld [vmem:[%s2021 + $0x10] sm:$0xf]
        %v2027 = vld [vmem:[%s2021 + $0x14] sm:$0xf]
        %v2028 = vld [vmem:[%s2021 + $0x18] sm:$0xf]
        %v2029 = vld [vmem:[%s2021 + $0x1c] sm:$0xf]
        %v2030 = vld [vmem:[%s2021 + $0x20] sm:$0xf]
        %v2031 = vld [vmem:[%s2021 + $0x24] sm:$0xf]
        %v2032 = vld [vmem:[%s2021 + $0x28] sm:$0xf]
        %v2033 = vld [vmem:[%s2021 + $0x2c] sm:$0xf]
        %v2034 = vld [vmem:[%s2021 + $0x30] sm:$0xf]
        %v2035 = vld [vmem:[%s2021 + $0x34] sm:$0xf]
        %v2036 = vld [vmem:[%s2021 + $0x38] sm:$0xf]
        %v2037 = vld [vmem:[%s2021 + $0x3c] sm:$0xf]
        %v2038 = vld [vmem:[%s1978 + $0x1] sm:$0xff]
        %v2039 = vld [vmem:[%s1978 + $0x11] sm:$0xff]
        %v2040 = vld [vmem:[%s1978 + $0x21] sm:$0xff]
        %v2041 = vld [vmem:[%s1978 + $0x31] sm:$0xff]
        %v2042 = vld [vmem:[%s1978 + $0x41] sm:$0xff]
        %v2043 = vld [vmem:[%s1978 + $0x51] sm:$0xff]
        %v2044 = vld [vmem:[%s1978 + $0x61] sm:$0xff]
        %v2045 = vld [vmem:[%s1978 + $0x71] sm:$0xff]
        %v2046 = vpack.c.bf16 %v2039, %v2038
        %v2047 = vpack.c.bf16 %v2041, %v2040
        %v2048 = vpack.c.bf16 %v2043, %v2042
        %v2049 = vpack.c.bf16 %v2045, %v2044
        %s2050 = scalar_lea.vmem [#allocation11], 640
        %v2051 = vld [vmem:[%s2050] sm:$0xf]
        %v2052 = vld [vmem:[%s2050 + $0x4] sm:$0xf]
        %v2053 = vld [vmem:[%s2050 + $0x8] sm:$0xf]
        %v2054 = vld [vmem:[%s2050 + $0xc] sm:$0xf]
        %v2055 = vld [vmem:[%s2050 + $0x10] sm:$0xf]
        %v2056 = vld [vmem:[%s2050 + $0x14] sm:$0xf]
        %v2057 = vld [vmem:[%s2050 + $0x18] sm:$0xf]
        %v2058 = vld [vmem:[%s2050 + $0x1c] sm:$0xf]
        %v2059 = vld [vmem:[%s2050 + $0x20] sm:$0xf]
        %v2060 = vld [vmem:[%s2050 + $0x24] sm:$0xf]
        %v2061 = vld [vmem:[%s2050 + $0x28] sm:$0xf]
        %v2062 = vld [vmem:[%s2050 + $0x2c] sm:$0xf]
        %v2063 = vld [vmem:[%s2050 + $0x30] sm:$0xf]
        %v2064 = vld [vmem:[%s2050 + $0x34] sm:$0xf]
        %v2065 = vld [vmem:[%s2050 + $0x38] sm:$0xf]
        %v2066 = vld [vmem:[%s2050 + $0x3c] sm:$0xf]
        %v2083 = vunpack.c.l.b16 %v2051
        %v2084 = vunpack.c.l.b16 %v2052
        %v2085 = vunpack.c.l.b16 %v2053
        %v2086 = vunpack.c.l.b16 %v2054
        %v2087 = vunpack.c.l.b16 %v2055
        %v2088 = vunpack.c.l.b16 %v2056
        %v2089 = vunpack.c.l.b16 %v2057
        %v2090 = vunpack.c.l.b16 %v2058
        %v2091 = vunpack.c.l.b16 %v2059
        %v2092 = vunpack.c.l.b16 %v2060
        %v2093 = vunpack.c.l.b16 %v2061
        %v2094 = vunpack.c.l.b16 %v2062
        %v2095 = vunpack.c.l.b16 %v2063
        %v2096 = vunpack.c.l.b16 %v2064
        %v2097 = vunpack.c.l.b16 %v2065
        %v2098 = vunpack.c.l.b16 %v2066
        %v2099 = vpack.c.b16 %v2084, %v2083
        %v2100 = vpack.c.b16 %v2086, %v2085
        %v2101 = vpack.c.b16 %v2088, %v2087
        %v2102 = vpack.c.b16 %v2090, %v2089
        %v2103 = vpack.c.b16 %v2092, %v2091
        %v2104 = vpack.c.b16 %v2094, %v2093
        %v2105 = vpack.c.b16 %v2096, %v2095
        %v2106 = vpack.c.b16 %v2098, %v2097
        %2115 = vmatpush.bf16.msra.mxu0 %v2106
        %2116 = vmatpush.bf16.msra.mxu0 %v2105
        %2117 = vmatpush.bf16.msra.mxu0 %v2104
        %2118 = vmatpush.bf16.msra.mxu0 %v2103
        %2119 = vmatpush.bf16.msra.mxu0 %v2102
        %2120 = vmatpush.bf16.msra.mxu0 %v2101
        %2121 = vmatpush.bf16.msra.mxu0 %v2100
        %2122 = vmatpush.bf16.msra.mxu0 %v2099
        %2123 = vmatmul.bf16.gmra.mxu0 %v2046
        %v2124 = vpop.f32.mrf.mxu0
        %v2125 = vadd.f32 0.0, %v2124
        %v2126 = vpop.f32.mrf.mxu0
        %v2127 = vadd.f32 0.0, %v2126
        %2128 = vmatmul.bf16.gmra.mxu0 %v2047
        %v2129 = vpop.f32.mrf.mxu0
        %v2130 = vadd.f32 0.0, %v2129
        %v2131 = vpop.f32.mrf.mxu0
        %v2132 = vadd.f32 0.0, %v2131
        %2133 = vmatmul.bf16.gmra.mxu0 %v2048
        %v2134 = vpop.f32.mrf.mxu0
        %v2135 = vadd.f32 0.0, %v2134
        %v2136 = vpop.f32.mrf.mxu0
        %v2137 = vadd.f32 0.0, %v2136
        %2138 = vmatmul.bf16.gmra.mxu0 %v2049
        %v2139 = vpop.f32.mrf.mxu0
        %v2140 = vadd.f32 0.0, %v2139
        %v2141 = vpop.f32.mrf.mxu0
        %v2142 = vadd.f32 0.0, %v2141
        %2143 = vdwg.mxu0
        %v2160 = vunpack.c.l.b16 %v2022
        %v2161 = vunpack.c.l.b16 %v2023
        %v2162 = vunpack.c.l.b16 %v2024
        %v2163 = vunpack.c.l.b16 %v2025
        %v2164 = vunpack.c.l.b16 %v2026
        %v2165 = vunpack.c.l.b16 %v2027
        %v2166 = vunpack.c.l.b16 %v2028
        %v2167 = vunpack.c.l.b16 %v2029
        %v2168 = vunpack.c.l.b16 %v2030
        %v2169 = vunpack.c.l.b16 %v2031
        %v2170 = vunpack.c.l.b16 %v2032
        %v2171 = vunpack.c.l.b16 %v2033
        %v2172 = vunpack.c.l.b16 %v2034
        %v2173 = vunpack.c.l.b16 %v2035
        %v2174 = vunpack.c.l.b16 %v2036
        %v2175 = vunpack.c.l.b16 %v2037
        %v2176 = vpack.c.b16 %v2161, %v2160
        %v2177 = vpack.c.b16 %v2163, %v2162
        %v2178 = vpack.c.b16 %v2165, %v2164
        %v2179 = vpack.c.b16 %v2167, %v2166
        %v2180 = vpack.c.b16 %v2169, %v2168
        %v2181 = vpack.c.b16 %v2171, %v2170
        %v2182 = vpack.c.b16 %v2173, %v2172
        %v2183 = vpack.c.b16 %v2175, %v2174
        %2192 = vmatpush.bf16.msra.mxu0 %v2183
        %2193 = vmatpush.bf16.msra.mxu0 %v2182
        %2194 = vmatpush.bf16.msra.mxu0 %v2181
        %2195 = vmatpush.bf16.msra.mxu0 %v2180
        %2196 = vmatpush.bf16.msra.mxu0 %v2179
        %2197 = vmatpush.bf16.msra.mxu0 %v2178
        %2198 = vmatpush.bf16.msra.mxu0 %v2177
        %2199 = vmatpush.bf16.msra.mxu0 %v2176
        %2200 = vmatmul.bf16.gmra.mxu0 %v2017
        %v2201 = vpop.f32.mrf.mxu0
        %v2202 = vadd.f32 %v2125, %v2201
        %v2203 = vpop.f32.mrf.mxu0
        %v2204 = vadd.f32 %v2127, %v2203
        %2205 = vmatmul.bf16.gmra.mxu0 %v2018
        %v2206 = vpop.f32.mrf.mxu0
        %v2207 = vadd.f32 %v2130, %v2206
        %v2208 = vpop.f32.mrf.mxu0
        %v2209 = vadd.f32 %v2132, %v2208
        %2210 = vmatmul.bf16.gmra.mxu0 %v2019
        %v2211 = vpop.f32.mrf.mxu0
        %v2212 = vadd.f32 %v2135, %v2211
        %v2213 = vpop.f32.mrf.mxu0
        %v2214 = vadd.f32 %v2137, %v2213
        %2215 = vmatmul.bf16.gmra.mxu0 %v2020
        %v2216 = vpop.f32.mrf.mxu0
        %v2217 = vadd.f32 %v2140, %v2216
        %v2218 = vpop.f32.mrf.mxu0
        %v2219 = vadd.f32 %v2142, %v2218
        %2220 = vdwg.mxu0
        %v2221 = vld [vmem:[%s1978 + $0x2] sm:$0xff]
        %v2222 = vld [vmem:[%s1978 + $0x12] sm:$0xff]
        %v2223 = vld [vmem:[%s1978 + $0x22] sm:$0xff]
        %v2224 = vld [vmem:[%s1978 + $0x32] sm:$0xff]
        %v2225 = vld [vmem:[%s1978 + $0x42] sm:$0xff]
        %v2226 = vld [vmem:[%s1978 + $0x52] sm:$0xff]
        %v2227 = vld [vmem:[%s1978 + $0x62] sm:$0xff]
        %v2228 = vld [vmem:[%s1978 + $0x72] sm:$0xff]
        %v2229 = vpack.c.bf16 %v2222, %v2221
        %v2230 = vpack.c.bf16 %v2224, %v2223
        %v2231 = vpack.c.bf16 %v2226, %v2225
        %v2232 = vpack.c.bf16 %v2228, %v2227
        %s2233 = scalar_lea.vmem [#allocation11], 704
        %v2234 = vld [vmem:[%s2233] sm:$0xf]
        %v2235 = vld [vmem:[%s2233 + $0x4] sm:$0xf]
        %v2236 = vld [vmem:[%s2233 + $0x8] sm:$0xf]
        %v2237 = vld [vmem:[%s2233 + $0xc] sm:$0xf]
        %v2238 = vld [vmem:[%s2233 + $0x10] sm:$0xf]
        %v2239 = vld [vmem:[%s2233 + $0x14] sm:$0xf]
        %v2240 = vld [vmem:[%s2233 + $0x18] sm:$0xf]
        %v2241 = vld [vmem:[%s2233 + $0x1c] sm:$0xf]
        %v2242 = vld [vmem:[%s2233 + $0x20] sm:$0xf]
        %v2243 = vld [vmem:[%s2233 + $0x24] sm:$0xf]
        %v2244 = vld [vmem:[%s2233 + $0x28] sm:$0xf]
        %v2245 = vld [vmem:[%s2233 + $0x2c] sm:$0xf]
        %v2246 = vld [vmem:[%s2233 + $0x30] sm:$0xf]
        %v2247 = vld [vmem:[%s2233 + $0x34] sm:$0xf]
        %v2248 = vld [vmem:[%s2233 + $0x38] sm:$0xf]
        %v2249 = vld [vmem:[%s2233 + $0x3c] sm:$0xf]
        %v2266 = vunpack.c.l.b16 %v2234
        %v2267 = vunpack.c.l.b16 %v2235
        %v2268 = vunpack.c.l.b16 %v2236
        %v2269 = vunpack.c.l.b16 %v2237
        %v2270 = vunpack.c.l.b16 %v2238
        %v2271 = vunpack.c.l.b16 %v2239
        %v2272 = vunpack.c.l.b16 %v2240
        %v2273 = vunpack.c.l.b16 %v2241
        %v2274 = vunpack.c.l.b16 %v2242
        %v2275 = vunpack.c.l.b16 %v2243
        %v2276 = vunpack.c.l.b16 %v2244
        %v2277 = vunpack.c.l.b16 %v2245
        %v2278 = vunpack.c.l.b16 %v2246
        %v2279 = vunpack.c.l.b16 %v2247
        %v2280 = vunpack.c.l.b16 %v2248
        %v2281 = vunpack.c.l.b16 %v2249
        %v2282 = vpack.c.b16 %v2267, %v2266
        %v2283 = vpack.c.b16 %v2269, %v2268
        %v2284 = vpack.c.b16 %v2271, %v2270
        %v2285 = vpack.c.b16 %v2273, %v2272
        %v2286 = vpack.c.b16 %v2275, %v2274
        %v2287 = vpack.c.b16 %v2277, %v2276
        %v2288 = vpack.c.b16 %v2279, %v2278
        %v2289 = vpack.c.b16 %v2281, %v2280
        %2298 = vmatpush.bf16.msra.mxu0 %v2289
        %2299 = vmatpush.bf16.msra.mxu0 %v2288
        %2300 = vmatpush.bf16.msra.mxu0 %v2287
        %2301 = vmatpush.bf16.msra.mxu0 %v2286
        %2302 = vmatpush.bf16.msra.mxu0 %v2285
        %2303 = vmatpush.bf16.msra.mxu0 %v2284
        %2304 = vmatpush.bf16.msra.mxu0 %v2283
        %2305 = vmatpush.bf16.msra.mxu0 %v2282
        %2306 = vmatmul.bf16.gmra.mxu0 %v2229
        %v2307 = vpop.f32.mrf.mxu0
        %v2308 = vadd.f32 0.0, %v2307
        %v2309 = vpop.f32.mrf.mxu0
        %v2310 = vadd.f32 0.0, %v2309
        %2311 = vmatmul.bf16.gmra.mxu0 %v2230
        %v2312 = vpop.f32.mrf.mxu0
        %v2313 = vadd.f32 0.0, %v2312
        %v2314 = vpop.f32.mrf.mxu0
        %v2315 = vadd.f32 0.0, %v2314
        %2316 = vmatmul.bf16.gmra.mxu0 %v2231
        %v2317 = vpop.f32.mrf.mxu0
        %v2318 = vadd.f32 0.0, %v2317
        %v2319 = vpop.f32.mrf.mxu0
        %v2320 = vadd.f32 0.0, %v2319
        %2321 = vmatmul.bf16.gmra.mxu0 %v2232
        %v2322 = vpop.f32.mrf.mxu0
        %v2323 = vadd.f32 0.0, %v2322
        %v2324 = vpop.f32.mrf.mxu0
        %v2325 = vadd.f32 0.0, %v2324
        %2326 = vdwg.mxu0
        %v2327 = vadd.f32 %v2202, %v2308
        %v2328 = vadd.f32 %v2204, %v2310
        %v2329 = vadd.f32 %v2207, %v2313
        %v2330 = vadd.f32 %v2209, %v2315
        %v2331 = vadd.f32 %v2212, %v2318
        %v2332 = vadd.f32 %v2214, %v2320
        %v2333 = vadd.f32 %v2217, %v2323
        %v2334 = vadd.f32 %v2219, %v2325
        %v2335 = vld [vmem:[%s1984] sm:$0xff]
        %v2336 = vld [vmem:[%s1984 + $0x10] sm:$0xff]
        %v2337 = vld [vmem:[%s1984 + $0x20] sm:$0xff]
        %v2338 = vld [vmem:[%s1984 + $0x30] sm:$0xff]
        %v2339 = vld [vmem:[%s1984 + $0x40] sm:$0xff]
        %v2340 = vld [vmem:[%s1984 + $0x50] sm:$0xff]
        %v2341 = vld [vmem:[%s1984 + $0x60] sm:$0xff]
        %v2342 = vld [vmem:[%s1984 + $0x70] sm:$0xff]
        %v2343 = vpack.c.bf16 %v2336, %v2335
        %v2344 = vpack.c.bf16 %v2338, %v2337
        %v2345 = vpack.c.bf16 %v2340, %v2339
        %v2346 = vpack.c.bf16 %v2342, %v2341
        %s2347 = scalar_lea.vmem [#allocation11], 768
        %v2348 = vld [vmem:[%s2347] sm:$0xf]
        %v2349 = vld [vmem:[%s2347 + $0x4] sm:$0xf]
        %v2350 = vld [vmem:[%s2347 + $0x8] sm:$0xf]
        %v2351 = vld [vmem:[%s2347 + $0xc] sm:$0xf]
        %v2352 = vld [vmem:[%s2347 + $0x10] sm:$0xf]
        %v2353 = vld [vmem:[%s2347 + $0x14] sm:$0xf]
        %v2354 = vld [vmem:[%s2347 + $0x18] sm:$0xf]
        %v2355 = vld [vmem:[%s2347 + $0x1c] sm:$0xf]
        %v2356 = vld [vmem:[%s2347 + $0x20] sm:$0xf]
        %v2357 = vld [vmem:[%s2347 + $0x24] sm:$0xf]
        %v2358 = vld [vmem:[%s2347 + $0x28] sm:$0xf]
        %v2359 = vld [vmem:[%s2347 + $0x2c] sm:$0xf]
        %v2360 = vld [vmem:[%s2347 + $0x30] sm:$0xf]
        %v2361 = vld [vmem:[%s2347 + $0x34] sm:$0xf]
        %v2362 = vld [vmem:[%s2347 + $0x38] sm:$0xf]
        %v2363 = vld [vmem:[%s2347 + $0x3c] sm:$0xf]
        %v2380 = vunpack.c.l.b16 %v2348
        %v2381 = vunpack.c.l.b16 %v2349
        %v2382 = vunpack.c.l.b16 %v2350
        %v2383 = vunpack.c.l.b16 %v2351
        %v2384 = vunpack.c.l.b16 %v2352
        %v2385 = vunpack.c.l.b16 %v2353
        %v2386 = vunpack.c.l.b16 %v2354
        %v2387 = vunpack.c.l.b16 %v2355
        %v2388 = vunpack.c.l.b16 %v2356
        %v2389 = vunpack.c.l.b16 %v2357
        %v2390 = vunpack.c.l.b16 %v2358
        %v2391 = vunpack.c.l.b16 %v2359
        %v2392 = vunpack.c.l.b16 %v2360
        %v2393 = vunpack.c.l.b16 %v2361
        %v2394 = vunpack.c.l.b16 %v2362
        %v2395 = vunpack.c.l.b16 %v2363
        %v2396 = vpack.c.b16 %v2381, %v2380
        %v2397 = vpack.c.b16 %v2383, %v2382
        %v2398 = vpack.c.b16 %v2385, %v2384
        %v2399 = vpack.c.b16 %v2387, %v2386
        %v2400 = vpack.c.b16 %v2389, %v2388
        %v2401 = vpack.c.b16 %v2391, %v2390
        %v2402 = vpack.c.b16 %v2393, %v2392
        %v2403 = vpack.c.b16 %v2395, %v2394
        %2412 = vmatpush.bf16.msra.mxu0 %v2403
        %2413 = vmatpush.bf16.msra.mxu0 %v2402
        %2414 = vmatpush.bf16.msra.mxu0 %v2401
        %2415 = vmatpush.bf16.msra.mxu0 %v2400
        %2416 = vmatpush.bf16.msra.mxu0 %v2399
        %2417 = vmatpush.bf16.msra.mxu0 %v2398
        %2418 = vmatpush.bf16.msra.mxu0 %v2397
        %2419 = vmatpush.bf16.msra.mxu0 %v2396
        %2420 = vmatmul.bf16.gmra.mxu0 %v2343
        %v2421 = vpop.f32.mrf.mxu0
        %v2422 = vadd.f32 0.0, %v2421
        %v2423 = vpop.f32.mrf.mxu0
        %v2424 = vadd.f32 0.0, %v2423
        %2425 = vmatmul.bf16.gmra.mxu0 %v2344
        %v2426 = vpop.f32.mrf.mxu0
        %v2427 = vadd.f32 0.0, %v2426
        %v2428 = vpop.f32.mrf.mxu0
        %v2429 = vadd.f32 0.0, %v2428
        %2430 = vmatmul.bf16.gmra.mxu0 %v2345
        %v2431 = vpop.f32.mrf.mxu0
        %v2432 = vadd.f32 0.0, %v2431
        %v2433 = vpop.f32.mrf.mxu0
        %v2434 = vadd.f32 0.0, %v2433
        %2435 = vmatmul.bf16.gmra.mxu0 %v2346
        %v2436 = vpop.f32.mrf.mxu0
        %v2437 = vadd.f32 0.0, %v2436
        %v2438 = vpop.f32.mrf.mxu0
        %v2439 = vadd.f32 0.0, %v2438
        %2440 = vdwg.mxu0
        %v2441 = vadd.f32 %v2327, %v2422
        %v2442 = vadd.f32 %v2328, %v2424
        %v2443 = vadd.f32 %v2329, %v2427
        %v2444 = vadd.f32 %v2330, %v2429
        %v2445 = vadd.f32 %v2331, %v2432
        %v2446 = vadd.f32 %v2332, %v2434
        %v2447 = vadd.f32 %v2333, %v2437
        %v2448 = vadd.f32 %v2334, %v2439
        %v2449 = vld [vmem:[%s1984 + $0x1] sm:$0xff]
        %v2450 = vld [vmem:[%s1984 + $0x11] sm:$0xff]
        %v2451 = vld [vmem:[%s1984 + $0x21] sm:$0xff]
        %v2452 = vld [vmem:[%s1984 + $0x31] sm:$0xff]
        %v2453 = vld [vmem:[%s1984 + $0x41] sm:$0xff]
        %v2454 = vld [vmem:[%s1984 + $0x51] sm:$0xff]
        %v2455 = vld [vmem:[%s1984 + $0x61] sm:$0xff]
        %v2456 = vld [vmem:[%s1984 + $0x71] sm:$0xff]
        %v2457 = vpack.c.bf16 %v2450, %v2449
        %v2458 = vpack.c.bf16 %v2452, %v2451
        %v2459 = vpack.c.bf16 %v2454, %v2453
        %v2460 = vpack.c.bf16 %v2456, %v2455
        %s2461 = scalar_lea.vmem [#allocation11], 832
        %v2462 = vld [vmem:[%s2461] sm:$0xf]
        %v2463 = vld [vmem:[%s2461 + $0x4] sm:$0xf]
        %v2464 = vld [vmem:[%s2461 + $0x8] sm:$0xf]
        %v2465 = vld [vmem:[%s2461 + $0xc] sm:$0xf]
        %v2466 = vld [vmem:[%s2461 + $0x10] sm:$0xf]
        %v2467 = vld [vmem:[%s2461 + $0x14] sm:$0xf]
        %v2468 = vld [vmem:[%s2461 + $0x18] sm:$0xf]
        %v2469 = vld [vmem:[%s2461 + $0x1c] sm:$0xf]
        %v2470 = vld [vmem:[%s2461 + $0x20] sm:$0xf]
        %v2471 = vld [vmem:[%s2461 + $0x24] sm:$0xf]
        %v2472 = vld [vmem:[%s2461 + $0x28] sm:$0xf]
        %v2473 = vld [vmem:[%s2461 + $0x2c] sm:$0xf]
        %v2474 = vld [vmem:[%s2461 + $0x30] sm:$0xf]
        %v2475 = vld [vmem:[%s2461 + $0x34] sm:$0xf]
        %v2476 = vld [vmem:[%s2461 + $0x38] sm:$0xf]
        %v2477 = vld [vmem:[%s2461 + $0x3c] sm:$0xf]
        %v2494 = vunpack.c.l.b16 %v2462
        %v2495 = vunpack.c.l.b16 %v2463
        %v2496 = vunpack.c.l.b16 %v2464
        %v2497 = vunpack.c.l.b16 %v2465
        %v2498 = vunpack.c.l.b16 %v2466
        %v2499 = vunpack.c.l.b16 %v2467
        %v2500 = vunpack.c.l.b16 %v2468
        %v2501 = vunpack.c.l.b16 %v2469
        %v2502 = vunpack.c.l.b16 %v2470
        %v2503 = vunpack.c.l.b16 %v2471
        %v2504 = vunpack.c.l.b16 %v2472
        %v2505 = vunpack.c.l.b16 %v2473
        %v2506 = vunpack.c.l.b16 %v2474
        %v2507 = vunpack.c.l.b16 %v2475
        %v2508 = vunpack.c.l.b16 %v2476
        %v2509 = vunpack.c.l.b16 %v2477
        %v2510 = vpack.c.b16 %v2495, %v2494
        %v2511 = vpack.c.b16 %v2497, %v2496
        %v2512 = vpack.c.b16 %v2499, %v2498
        %v2513 = vpack.c.b16 %v2501, %v2500
        %v2514 = vpack.c.b16 %v2503, %v2502
        %v2515 = vpack.c.b16 %v2505, %v2504
        %v2516 = vpack.c.b16 %v2507, %v2506
        %v2517 = vpack.c.b16 %v2509, %v2508
        %2526 = vmatpush.bf16.msra.mxu0 %v2517
        %2527 = vmatpush.bf16.msra.mxu0 %v2516
        %2528 = vmatpush.bf16.msra.mxu0 %v2515
        %2529 = vmatpush.bf16.msra.mxu0 %v2514
        %2530 = vmatpush.bf16.msra.mxu0 %v2513
        %2531 = vmatpush.bf16.msra.mxu0 %v2512
        %2532 = vmatpush.bf16.msra.mxu0 %v2511
        %2533 = vmatpush.bf16.msra.mxu0 %v2510
        %2534 = vmatmul.bf16.gmra.mxu0 %v2457
        %v2535 = vpop.f32.mrf.mxu0
        %v2536 = vadd.f32 0.0, %v2535
        %v2537 = vpop.f32.mrf.mxu0
        %v2538 = vadd.f32 0.0, %v2537
        %2539 = vmatmul.bf16.gmra.mxu0 %v2458
        %v2540 = vpop.f32.mrf.mxu0
        %v2541 = vadd.f32 0.0, %v2540
        %v2542 = vpop.f32.mrf.mxu0
        %v2543 = vadd.f32 0.0, %v2542
        %2544 = vmatmul.bf16.gmra.mxu0 %v2459
        %v2545 = vpop.f32.mrf.mxu0
        %v2546 = vadd.f32 0.0, %v2545
        %v2547 = vpop.f32.mrf.mxu0
        %v2548 = vadd.f32 0.0, %v2547
        %2549 = vmatmul.bf16.gmra.mxu0 %v2460
        %v2550 = vpop.f32.mrf.mxu0
        %v2551 = vadd.f32 0.0, %v2550
        %v2552 = vpop.f32.mrf.mxu0
        %v2553 = vadd.f32 0.0, %v2552
        %2554 = vdwg.mxu0
        %v2555 = vadd.f32 %v2441, %v2536
        %v2556 = vadd.f32 %v2442, %v2538
        %v2557 = vadd.f32 %v2443, %v2541
        %v2558 = vadd.f32 %v2444, %v2543
        %v2559 = vadd.f32 %v2445, %v2546
        %v2560 = vadd.f32 %v2446, %v2548
        %v2561 = vadd.f32 %v2447, %v2551
        %v2562 = vadd.f32 %v2448, %v2553
        %v2563 = vld [vmem:[%s1984 + $0x2] sm:$0xff]
        %v2564 = vld [vmem:[%s1984 + $0x12] sm:$0xff]
        %v2565 = vld [vmem:[%s1984 + $0x22] sm:$0xff]
        %v2566 = vld [vmem:[%s1984 + $0x32] sm:$0xff]
        %v2567 = vld [vmem:[%s1984 + $0x42] sm:$0xff]
        %v2568 = vld [vmem:[%s1984 + $0x52] sm:$0xff]
        %v2569 = vld [vmem:[%s1984 + $0x62] sm:$0xff]
        %v2570 = vld [vmem:[%s1984 + $0x72] sm:$0xff]
        %v2571 = vpack.c.bf16 %v2564, %v2563
        %v2572 = vpack.c.bf16 %v2566, %v2565
        %v2573 = vpack.c.bf16 %v2568, %v2567
        %v2574 = vpack.c.bf16 %v2570, %v2569
        %s2575 = scalar_lea.vmem [#allocation11], 896
        %v2576 = vld [vmem:[%s2575] sm:$0xf]
        %v2577 = vld [vmem:[%s2575 + $0x4] sm:$0xf]
        %v2578 = vld [vmem:[%s2575 + $0x8] sm:$0xf]
        %v2579 = vld [vmem:[%s2575 + $0xc] sm:$0xf]
        %v2580 = vld [vmem:[%s2575 + $0x10] sm:$0xf]
        %v2581 = vld [vmem:[%s2575 + $0x14] sm:$0xf]
        %v2582 = vld [vmem:[%s2575 + $0x18] sm:$0xf]
        %v2583 = vld [vmem:[%s2575 + $0x1c] sm:$0xf]
        %v2584 = vld [vmem:[%s2575 + $0x20] sm:$0xf]
        %v2585 = vld [vmem:[%s2575 + $0x24] sm:$0xf]
        %v2586 = vld [vmem:[%s2575 + $0x28] sm:$0xf]
        %v2587 = vld [vmem:[%s2575 + $0x2c] sm:$0xf]
        %v2588 = vld [vmem:[%s2575 + $0x30] sm:$0xf]
        %v2589 = vld [vmem:[%s2575 + $0x34] sm:$0xf]
        %v2590 = vld [vmem:[%s2575 + $0x38] sm:$0xf]
        %v2591 = vld [vmem:[%s2575 + $0x3c] sm:$0xf]
        %v2608 = vunpack.c.l.b16 %v2576
        %v2609 = vunpack.c.l.b16 %v2577
        %v2610 = vunpack.c.l.b16 %v2578
        %v2611 = vunpack.c.l.b16 %v2579
        %v2612 = vunpack.c.l.b16 %v2580
        %v2613 = vunpack.c.l.b16 %v2581
        %v2614 = vunpack.c.l.b16 %v2582
        %v2615 = vunpack.c.l.b16 %v2583
        %v2616 = vunpack.c.l.b16 %v2584
        %v2617 = vunpack.c.l.b16 %v2585
        %v2618 = vunpack.c.l.b16 %v2586
        %v2619 = vunpack.c.l.b16 %v2587
        %v2620 = vunpack.c.l.b16 %v2588
        %v2621 = vunpack.c.l.b16 %v2589
        %v2622 = vunpack.c.l.b16 %v2590
        %v2623 = vunpack.c.l.b16 %v2591
        %v2624 = vpack.c.b16 %v2609, %v2608
        %v2625 = vpack.c.b16 %v2611, %v2610
        %v2626 = vpack.c.b16 %v2613, %v2612
        %v2627 = vpack.c.b16 %v2615, %v2614
        %v2628 = vpack.c.b16 %v2617, %v2616
        %v2629 = vpack.c.b16 %v2619, %v2618
        %v2630 = vpack.c.b16 %v2621, %v2620
        %v2631 = vpack.c.b16 %v2623, %v2622
        %2640 = vmatpush.bf16.msra.mxu0 %v2631
        %2641 = vmatpush.bf16.msra.mxu0 %v2630
        %2642 = vmatpush.bf16.msra.mxu0 %v2629
        %2643 = vmatpush.bf16.msra.mxu0 %v2628
        %2644 = vmatpush.bf16.msra.mxu0 %v2627
        %2645 = vmatpush.bf16.msra.mxu0 %v2626
        %2646 = vmatpush.bf16.msra.mxu0 %v2625
        %2647 = vmatpush.bf16.msra.mxu0 %v2624
        %2648 = vmatmul.bf16.gmra.mxu0 %v2571
        %v2649 = vpop.f32.mrf.mxu0
        %v2650 = vadd.f32 0.0, %v2649
        %v2651 = vpop.f32.mrf.mxu0
        %v2652 = vadd.f32 0.0, %v2651
        %2653 = vmatmul.bf16.gmra.mxu0 %v2572
        %v2654 = vpop.f32.mrf.mxu0
        %v2655 = vadd.f32 0.0, %v2654
        %v2656 = vpop.f32.mrf.mxu0
        %v2657 = vadd.f32 0.0, %v2656
        %2658 = vmatmul.bf16.gmra.mxu0 %v2573
        %v2659 = vpop.f32.mrf.mxu0
        %v2660 = vadd.f32 0.0, %v2659
        %v2661 = vpop.f32.mrf.mxu0
        %v2662 = vadd.f32 0.0, %v2661
        %2663 = vmatmul.bf16.gmra.mxu0 %v2574
        %v2664 = vpop.f32.mrf.mxu0
        %v2665 = vadd.f32 0.0, %v2664
        %v2666 = vpop.f32.mrf.mxu0
        %v2667 = vadd.f32 0.0, %v2666
        %2668 = vdwg.mxu0
        %v2669 = vadd.f32 %v2555, %v2650
        %v2670 = vadd.f32 %v2556, %v2652
        %v2671 = vadd.f32 %v2557, %v2655
        %v2672 = vadd.f32 %v2558, %v2657
        %v2673 = vadd.f32 %v2559, %v2660
        %v2674 = vadd.f32 %v2560, %v2662
        %v2675 = vadd.f32 %v2561, %v2665
        %v2676 = vadd.f32 %v2562, %v2667
        %s2677 = scalar_lea.vmem [#allocation2], 192
        %v2678 = vld [vmem:[%s2677] sm:$0xff]
        %v2679 = vld [vmem:[%s2677 + $0x10] sm:$0xff]
        %v2680 = vld [vmem:[%s2677 + $0x20] sm:$0xff]
        %v2681 = vld [vmem:[%s2677 + $0x30] sm:$0xff]
        %v2682 = vld [vmem:[%s2677 + $0x40] sm:$0xff]
        %v2683 = vld [vmem:[%s2677 + $0x50] sm:$0xff]
        %v2684 = vld [vmem:[%s2677 + $0x60] sm:$0xff]
        %v2685 = vld [vmem:[%s2677 + $0x70] sm:$0xff]
        %v2686 = vpack.c.bf16 %v2679, %v2678
        %v2687 = vpack.c.bf16 %v2681, %v2680
        %v2688 = vpack.c.bf16 %v2683, %v2682
        %v2689 = vpack.c.bf16 %v2685, %v2684
        %s2690 = scalar_lea.vmem [#allocation11], 960
        %v2691 = vld [vmem:[%s2690] sm:$0xf]
        %v2692 = vld [vmem:[%s2690 + $0x4] sm:$0xf]
        %v2693 = vld [vmem:[%s2690 + $0x8] sm:$0xf]
        %v2694 = vld [vmem:[%s2690 + $0xc] sm:$0xf]
        %v2695 = vld [vmem:[%s2690 + $0x10] sm:$0xf]
        %v2696 = vld [vmem:[%s2690 + $0x14] sm:$0xf]
        %v2697 = vld [vmem:[%s2690 + $0x18] sm:$0xf]
        %v2698 = vld [vmem:[%s2690 + $0x1c] sm:$0xf]
        %v2699 = vld [vmem:[%s2690 + $0x20] sm:$0xf]
        %v2700 = vld [vmem:[%s2690 + $0x24] sm:$0xf]
        %v2701 = vld [vmem:[%s2690 + $0x28] sm:$0xf]
        %v2702 = vld [vmem:[%s2690 + $0x2c] sm:$0xf]
        %v2703 = vld [vmem:[%s2690 + $0x30] sm:$0xf]
        %v2704 = vld [vmem:[%s2690 + $0x34] sm:$0xf]
        %v2705 = vld [vmem:[%s2690 + $0x38] sm:$0xf]
        %v2706 = vld [vmem:[%s2690 + $0x3c] sm:$0xf]
        %v2723 = vunpack.c.l.b16 %v2691
        %v2724 = vunpack.c.l.b16 %v2692
        %v2725 = vunpack.c.l.b16 %v2693
        %v2726 = vunpack.c.l.b16 %v2694
        %v2727 = vunpack.c.l.b16 %v2695
        %v2728 = vunpack.c.l.b16 %v2696
        %v2729 = vunpack.c.l.b16 %v2697
        %v2730 = vunpack.c.l.b16 %v2698
        %v2731 = vunpack.c.l.b16 %v2699
        %v2732 = vunpack.c.l.b16 %v2700
        %v2733 = vunpack.c.l.b16 %v2701
        %v2734 = vunpack.c.l.b16 %v2702
        %v2735 = vunpack.c.l.b16 %v2703
        %v2736 = vunpack.c.l.b16 %v2704
        %v2737 = vunpack.c.l.b16 %v2705
        %v2738 = vunpack.c.l.b16 %v2706
        %v2739 = vpack.c.b16 %v2724, %v2723
        %v2740 = vpack.c.b16 %v2726, %v2725
        %v2741 = vpack.c.b16 %v2728, %v2727
        %v2742 = vpack.c.b16 %v2730, %v2729
        %v2743 = vpack.c.b16 %v2732, %v2731
        %v2744 = vpack.c.b16 %v2734, %v2733
        %v2745 = vpack.c.b16 %v2736, %v2735
        %v2746 = vpack.c.b16 %v2738, %v2737
        %2755 = vmatpush.bf16.msra.mxu0 %v2746
        %2756 = vmatpush.bf16.msra.mxu0 %v2745
        %2757 = vmatpush.bf16.msra.mxu0 %v2744
        %2758 = vmatpush.bf16.msra.mxu0 %v2743
        %2759 = vmatpush.bf16.msra.mxu0 %v2742
        %2760 = vmatpush.bf16.msra.mxu0 %v2741
        %2761 = vmatpush.bf16.msra.mxu0 %v2740
        %2762 = vmatpush.bf16.msra.mxu0 %v2739
        %2763 = vmatmul.bf16.gmra.mxu0 %v2686
        %v2764 = vpop.f32.mrf.mxu0
        %v2765 = vadd.f32 0.0, %v2764
        %v2766 = vpop.f32.mrf.mxu0
        %v2767 = vadd.f32 0.0, %v2766
        %2768 = vmatmul.bf16.gmra.mxu0 %v2687
        %v2769 = vpop.f32.mrf.mxu0
        %v2770 = vadd.f32 0.0, %v2769
        %v2771 = vpop.f32.mrf.mxu0
        %v2772 = vadd.f32 0.0, %v2771
        %2773 = vmatmul.bf16.gmra.mxu0 %v2688
        %v2774 = vpop.f32.mrf.mxu0
        %v2775 = vadd.f32 0.0, %v2774
        %v2776 = vpop.f32.mrf.mxu0
        %v2777 = vadd.f32 0.0, %v2776
        %2778 = vmatmul.bf16.gmra.mxu0 %v2689
        %v2779 = vpop.f32.mrf.mxu0
        %v2780 = vadd.f32 0.0, %v2779
        %v2781 = vpop.f32.mrf.mxu0
        %v2782 = vadd.f32 0.0, %v2781
        %2783 = vdwg.mxu0
        %v2784 = vadd.f32 %v2669, %v2765
        %v2785 = vadd.f32 %v2670, %v2767
        %v2786 = vadd.f32 %v2671, %v2770
        %v2787 = vadd.f32 %v2672, %v2772
        %v2788 = vadd.f32 %v2673, %v2775
        %v2789 = vadd.f32 %v2674, %v2777
        %v2790 = vadd.f32 %v2675, %v2780
        %v2791 = vadd.f32 %v2676, %v2782
        %v2792 = vld [vmem:[%s2677 + $0x1] sm:$0xff]
        %v2793 = vld [vmem:[%s2677 + $0x11] sm:$0xff]
        %v2794 = vld [vmem:[%s2677 + $0x21] sm:$0xff]
        %v2795 = vld [vmem:[%s2677 + $0x31] sm:$0xff]
        %v2796 = vld [vmem:[%s2677 + $0x41] sm:$0xff]
        %v2797 = vld [vmem:[%s2677 + $0x51] sm:$0xff]
        %v2798 = vld [vmem:[%s2677 + $0x61] sm:$0xff]
        %v2799 = vld [vmem:[%s2677 + $0x71] sm:$0xff]
        %v2800 = vpack.c.bf16 %v2793, %v2792
        %v2801 = vpack.c.bf16 %v2795, %v2794
        %v2802 = vpack.c.bf16 %v2797, %v2796
        %v2803 = vpack.c.bf16 %v2799, %v2798
        %s2804 = scalar_lea.vmem [#allocation11], 1024
        %v2805 = vld [vmem:[%s2804] sm:$0xf]
        %v2806 = vld [vmem:[%s2804 + $0x4] sm:$0xf]
        %v2807 = vld [vmem:[%s2804 + $0x8] sm:$0xf]
        %v2808 = vld [vmem:[%s2804 + $0xc] sm:$0xf]
        %v2809 = vld [vmem:[%s2804 + $0x10] sm:$0xf]
        %v2810 = vld [vmem:[%s2804 + $0x14] sm:$0xf]
        %v2811 = vld [vmem:[%s2804 + $0x18] sm:$0xf]
        %v2812 = vld [vmem:[%s2804 + $0x1c] sm:$0xf]
        %v2813 = vld [vmem:[%s2804 + $0x20] sm:$0xf]
        %v2814 = vld [vmem:[%s2804 + $0x24] sm:$0xf]
        %v2815 = vld [vmem:[%s2804 + $0x28] sm:$0xf]
        %v2816 = vld [vmem:[%s2804 + $0x2c] sm:$0xf]
        %v2817 = vld [vmem:[%s2804 + $0x30] sm:$0xf]
        %v2818 = vld [vmem:[%s2804 + $0x34] sm:$0xf]
        %v2819 = vld [vmem:[%s2804 + $0x38] sm:$0xf]
        %v2820 = vld [vmem:[%s2804 + $0x3c] sm:$0xf]
        %v2837 = vunpack.c.l.b16 %v2805
        %v2838 = vunpack.c.l.b16 %v2806
        %v2839 = vunpack.c.l.b16 %v2807
        %v2840 = vunpack.c.l.b16 %v2808
        %v2841 = vunpack.c.l.b16 %v2809
        %v2842 = vunpack.c.l.b16 %v2810
        %v2843 = vunpack.c.l.b16 %v2811
        %v2844 = vunpack.c.l.b16 %v2812
        %v2845 = vunpack.c.l.b16 %v2813
        %v2846 = vunpack.c.l.b16 %v2814
        %v2847 = vunpack.c.l.b16 %v2815
        %v2848 = vunpack.c.l.b16 %v2816
        %v2849 = vunpack.c.l.b16 %v2817
        %v2850 = vunpack.c.l.b16 %v2818
        %v2851 = vunpack.c.l.b16 %v2819
        %v2852 = vunpack.c.l.b16 %v2820
        %v2853 = vpack.c.b16 %v2838, %v2837
        %v2854 = vpack.c.b16 %v2840, %v2839
        %v2855 = vpack.c.b16 %v2842, %v2841
        %v2856 = vpack.c.b16 %v2844, %v2843
        %v2857 = vpack.c.b16 %v2846, %v2845
        %v2858 = vpack.c.b16 %v2848, %v2847
        %v2859 = vpack.c.b16 %v2850, %v2849
        %v2860 = vpack.c.b16 %v2852, %v2851
        %2869 = vmatpush.bf16.msra.mxu0 %v2860
        %2870 = vmatpush.bf16.msra.mxu0 %v2859
        %2871 = vmatpush.bf16.msra.mxu0 %v2858
        %2872 = vmatpush.bf16.msra.mxu0 %v2857
        %2873 = vmatpush.bf16.msra.mxu0 %v2856
        %2874 = vmatpush.bf16.msra.mxu0 %v2855
        %2875 = vmatpush.bf16.msra.mxu0 %v2854
        %2876 = vmatpush.bf16.msra.mxu0 %v2853
        %2877 = vmatmul.bf16.gmra.mxu0 %v2800
        %v2878 = vpop.f32.mrf.mxu0
        %v2879 = vadd.f32 0.0, %v2878
        %v2880 = vpop.f32.mrf.mxu0
        %v2881 = vadd.f32 0.0, %v2880
        %2882 = vmatmul.bf16.gmra.mxu0 %v2801
        %v2883 = vpop.f32.mrf.mxu0
        %v2884 = vadd.f32 0.0, %v2883
        %v2885 = vpop.f32.mrf.mxu0
        %v2886 = vadd.f32 0.0, %v2885
        %2887 = vmatmul.bf16.gmra.mxu0 %v2802
        %v2888 = vpop.f32.mrf.mxu0
        %v2889 = vadd.f32 0.0, %v2888
        %v2890 = vpop.f32.mrf.mxu0
        %v2891 = vadd.f32 0.0, %v2890
        %2892 = vmatmul.bf16.gmra.mxu0 %v2803
        %v2893 = vpop.f32.mrf.mxu0
        %v2894 = vadd.f32 0.0, %v2893
        %v2895 = vpop.f32.mrf.mxu0
        %v2896 = vadd.f32 0.0, %v2895
        %2897 = vdwg.mxu0
        %v2898 = vadd.f32 %v2784, %v2879
        %v2899 = vadd.f32 %v2785, %v2881
        %v2900 = vadd.f32 %v2786, %v2884
        %v2901 = vadd.f32 %v2787, %v2886
        %v2902 = vadd.f32 %v2788, %v2889
        %v2903 = vadd.f32 %v2789, %v2891
        %v2904 = vadd.f32 %v2790, %v2894
        %v2905 = vadd.f32 %v2791, %v2896
        %v2906 = vld [vmem:[%s2677 + $0x2] sm:$0xff]
        %v2907 = vld [vmem:[%s2677 + $0x12] sm:$0xff]
        %v2908 = vld [vmem:[%s2677 + $0x22] sm:$0xff]
        %v2909 = vld [vmem:[%s2677 + $0x32] sm:$0xff]
        %v2910 = vld [vmem:[%s2677 + $0x42] sm:$0xff]
        %v2911 = vld [vmem:[%s2677 + $0x52] sm:$0xff]
        %v2912 = vld [vmem:[%s2677 + $0x62] sm:$0xff]
        %v2913 = vld [vmem:[%s2677 + $0x72] sm:$0xff]
        %v2914 = vpack.c.bf16 %v2907, %v2906
        %v2915 = vpack.c.bf16 %v2909, %v2908
        %v2916 = vpack.c.bf16 %v2911, %v2910
        %v2917 = vpack.c.bf16 %v2913, %v2912
        %s2918 = scalar_lea.vmem [#allocation11], 1088
        %v2919 = vld [vmem:[%s2918] sm:$0xf]
        %v2920 = vld [vmem:[%s2918 + $0x4] sm:$0xf]
        %v2921 = vld [vmem:[%s2918 + $0x8] sm:$0xf]
        %v2922 = vld [vmem:[%s2918 + $0xc] sm:$0xf]
        %v2923 = vld [vmem:[%s2918 + $0x10] sm:$0xf]
        %v2924 = vld [vmem:[%s2918 + $0x14] sm:$0xf]
        %v2925 = vld [vmem:[%s2918 + $0x18] sm:$0xf]
        %v2926 = vld [vmem:[%s2918 + $0x1c] sm:$0xf]
        %v2927 = vld [vmem:[%s2918 + $0x20] sm:$0xf]
        %v2928 = vld [vmem:[%s2918 + $0x24] sm:$0xf]
        %v2929 = vld [vmem:[%s2918 + $0x28] sm:$0xf]
        %v2930 = vld [vmem:[%s2918 + $0x2c] sm:$0xf]
        %v2931 = vld [vmem:[%s2918 + $0x30] sm:$0xf]
        %v2932 = vld [vmem:[%s2918 + $0x34] sm:$0xf]
        %v2933 = vld [vmem:[%s2918 + $0x38] sm:$0xf]
        %v2934 = vld [vmem:[%s2918 + $0x3c] sm:$0xf]
        %v2951 = vunpack.c.l.b16 %v2919
        %v2952 = vunpack.c.l.b16 %v2920
        %v2953 = vunpack.c.l.b16 %v2921
        %v2954 = vunpack.c.l.b16 %v2922
        %v2955 = vunpack.c.l.b16 %v2923
        %v2956 = vunpack.c.l.b16 %v2924
        %v2957 = vunpack.c.l.b16 %v2925
        %v2958 = vunpack.c.l.b16 %v2926
        %v2959 = vunpack.c.l.b16 %v2927
        %v2960 = vunpack.c.l.b16 %v2928
        %v2961 = vunpack.c.l.b16 %v2929
        %v2962 = vunpack.c.l.b16 %v2930
        %v2963 = vunpack.c.l.b16 %v2931
        %v2964 = vunpack.c.l.b16 %v2932
        %v2965 = vunpack.c.l.b16 %v2933
        %v2966 = vunpack.c.l.b16 %v2934
        %v2967 = vpack.c.b16 %v2952, %v2951
        %v2968 = vpack.c.b16 %v2954, %v2953
        %v2969 = vpack.c.b16 %v2956, %v2955
        %v2970 = vpack.c.b16 %v2958, %v2957
        %v2971 = vpack.c.b16 %v2960, %v2959
        %v2972 = vpack.c.b16 %v2962, %v2961
        %v2973 = vpack.c.b16 %v2964, %v2963
        %v2974 = vpack.c.b16 %v2966, %v2965
        %2983 = vmatpush.bf16.msra.mxu0 %v2974
        %2984 = vmatpush.bf16.msra.mxu0 %v2973
        %2985 = vmatpush.bf16.msra.mxu0 %v2972
        %2986 = vmatpush.bf16.msra.mxu0 %v2971
        %2987 = vmatpush.bf16.msra.mxu0 %v2970
        %2988 = vmatpush.bf16.msra.mxu0 %v2969
        %2989 = vmatpush.bf16.msra.mxu0 %v2968
        %2990 = vmatpush.bf16.msra.mxu0 %v2967
        %2991 = vmatmul.bf16.gmra.mxu0 %v2914
        %v2992 = vpop.f32.mrf.mxu0
        %v2993 = vadd.f32 0.0, %v2992
        %v2994 = vpop.f32.mrf.mxu0
        %v2995 = vadd.f32 0.0, %v2994
        %2996 = vmatmul.bf16.gmra.mxu0 %v2915
        %v2997 = vpop.f32.mrf.mxu0
        %v2998 = vadd.f32 0.0, %v2997
        %v2999 = vpop.f32.mrf.mxu0
        %v3000 = vadd.f32 0.0, %v2999
        %3001 = vmatmul.bf16.gmra.mxu0 %v2916
        %v3002 = vpop.f32.mrf.mxu0
        %v3003 = vadd.f32 0.0, %v3002
        %v3004 = vpop.f32.mrf.mxu0
        %v3005 = vadd.f32 0.0, %v3004
        %3006 = vmatmul.bf16.gmra.mxu0 %v2917
        %v3007 = vpop.f32.mrf.mxu0
        %v3008 = vadd.f32 0.0, %v3007
        %v3009 = vpop.f32.mrf.mxu0
        %v3010 = vadd.f32 0.0, %v3009
        %3011 = vdwg.mxu0
        %v3012 = vadd.f32 %v2898, %v2993
        %v3013 = vadd.f32 %v2899, %v2995
        %v3014 = vadd.f32 %v2900, %v2998
        %v3015 = vadd.f32 %v2901, %v3000
        %v3016 = vadd.f32 %v2902, %v3003
        %v3017 = vadd.f32 %v2903, %v3005
        %v3018 = vadd.f32 %v2904, %v3008
        %v3019 = vadd.f32 %v2905, %v3010
        %s3020 = scalar_lea.vmem %s5, 1
        %v3021 = vld [vmem:[%s3020] sm:$0x1]
        %v3023 = vperm.slane %v3021, 0
        %v3025 = vadd.f32 %v3012, %v3023
        %v3026 = vadd.f32 %v3013, %v3023
        %v3027 = vadd.f32 %v3014, %v3023
        %v3028 = vadd.f32 %v3015, %v3023
        %v3029 = vadd.f32 %v3016, %v3023
        %v3030 = vadd.f32 %v3017, %v3023
        %v3031 = vadd.f32 %v3018, %v3023
        %v3032 = vadd.f32 %v3019, %v3023
        %s3033 = scalar_lea.vmem [#allocation3], 64
        %3034 = vst [vmem:[%s3033] sm:$0xff] %v3025
        %3035 = vst [vmem:[%s3033 + $0x8] sm:$0xff] %v3026
        %3036 = vst [vmem:[%s3033 + $0x10] sm:$0xff] %v3027
        %3037 = vst [vmem:[%s3033 + $0x18] sm:$0xff] %v3028
        %3038 = vst [vmem:[%s3033 + $0x20] sm:$0xff] %v3029
        %3039 = vst [vmem:[%s3033 + $0x28] sm:$0xff] %v3030
        %3040 = vst [vmem:[%s3033 + $0x30] sm:$0xff] %v3031
        %3041 = vst [vmem:[%s3033 + $0x38] sm:$0xff] %v3032
        %v3042 = vld [vmem:[#allocation3] sm:$0xff]
        %v3043 = vld [vmem:[#allocation3 + $0x8] sm:$0xff]
        %v3044 = vld [vmem:[#allocation3 + $0x10] sm:$0xff]
        %v3045 = vld [vmem:[#allocation3 + $0x18] sm:$0xff]
        %v3046 = vld [vmem:[#allocation3 + $0x20] sm:$0xff]
        %v3047 = vld [vmem:[#allocation3 + $0x28] sm:$0xff]
        %v3048 = vld [vmem:[#allocation3 + $0x30] sm:$0xff]
        %v3049 = vld [vmem:[#allocation3 + $0x38] sm:$0xff]
        %v3050 = vld [vmem:[%s3033] sm:$0xff]
        %v3051 = vld [vmem:[%s3033 + $0x8] sm:$0xff]
        %v3052 = vld [vmem:[%s3033 + $0x10] sm:$0xff]
        %v3053 = vld [vmem:[%s3033 + $0x18] sm:$0xff]
        %v3054 = vld [vmem:[%s3033 + $0x20] sm:$0xff]
        %v3055 = vld [vmem:[%s3033 + $0x28] sm:$0xff]
        %v3056 = vld [vmem:[%s3033 + $0x30] sm:$0xff]
        %v3057 = vld [vmem:[%s3033 + $0x38] sm:$0xff]
        %v3058 = vld [vmem:[#allocation13] sm:$0x1]
        %vm3059 = vcmp.gt.f32.partialorder %v3058, 0.5
        %v3060 = vsel %vm3059, 1, 0
        %v3061 = vperm.slane %v3060, 0
        %vm3062 = vcmp.eq.s32.totalorder %v3061, 1
        %v3063 = vsel %vm3062, %v3042, %v3050
        %v3064 = vsel %vm3062, %v3043, %v3051
        %v3065 = vsel %vm3062, %v3044, %v3052
        %v3066 = vsel %vm3062, %v3045, %v3053
        %v3067 = vsel %vm3062, %v3046, %v3054
        %v3068 = vsel %vm3062, %v3047, %v3055
        %v3069 = vsel %vm3062, %v3048, %v3056
        %v3070 = vsel %vm3062, %v3049, %v3057
        %v3071 = vmax.f32 %v3063, 0.0
        %v3072 = vmax.f32 %v3064, 0.0
        %v3073 = vmax.f32 %v3065, 0.0
        %v3074 = vmax.f32 %v3066, 0.0
        %v3075 = vmax.f32 %v3067, 0.0
        %v3076 = vmax.f32 %v3068, 0.0
        %v3077 = vmax.f32 %v3069, 0.0
        %v3078 = vmax.f32 %v3070, 0.0
        %s3079 = scalar_lea.vmem [#allocation13], 1
        %v3080 = vld [vmem:[%s3079] sm:$0x1]
        %vm3081 = vcmp.gt.f32.partialorder %v3080, 0.5
        %v3082 = vsel %vm3081, 1, 0
        %v3083 = vperm.slane %v3082, 0
        %vm3084 = vcmp.eq.s32.totalorder %v3083, 1
        %v3085 = vsel %vm3084, %v3050, %v3042
        %v3086 = vsel %vm3084, %v3051, %v3043
        %v3087 = vsel %vm3084, %v3052, %v3044
        %v3088 = vsel %vm3084, %v3053, %v3045
        %v3089 = vsel %vm3084, %v3054, %v3046
        %v3090 = vsel %vm3084, %v3055, %v3047
        %v3091 = vsel %vm3084, %v3056, %v3048
        %v3092 = vsel %vm3084, %v3057, %v3049
        %v3093 = vmax.f32 %v3085, 0.0
        %v3094 = vmax.f32 %v3086, 0.0
        %v3095 = vmax.f32 %v3087, 0.0
        %v3096 = vmax.f32 %v3088, 0.0
        %v3097 = vmax.f32 %v3089, 0.0
        %v3098 = vmax.f32 %v3090, 0.0
        %v3099 = vmax.f32 %v3091, 0.0
        %v3100 = vmax.f32 %v3092, 0.0
        %v3101 = vpack.c.bf16 %v3072, %v3071
        %v3102 = vpack.c.bf16 %v3074, %v3073
        %v3103 = vpack.c.bf16 %v3076, %v3075
        %v3104 = vpack.c.bf16 %v3078, %v3077
        %v3105 = vld [vmem:[#allocation14] sm:$0xf]
        %v3106 = vld [vmem:[#allocation14 + $0x4] sm:$0xf]
        %v3107 = vld [vmem:[#allocation14 + $0x8] sm:$0xf]
        %v3108 = vld [vmem:[#allocation14 + $0xc] sm:$0xf]
        %v3109 = vld [vmem:[#allocation14 + $0x10] sm:$0xf]
        %v3110 = vld [vmem:[#allocation14 + $0x14] sm:$0xf]
        %v3111 = vld [vmem:[#allocation14 + $0x18] sm:$0xf]
        %v3112 = vld [vmem:[#allocation14 + $0x1c] sm:$0xf]
        %v3113 = vld [vmem:[#allocation14 + $0x20] sm:$0xf]
        %v3114 = vld [vmem:[#allocation14 + $0x24] sm:$0xf]
        %v3115 = vld [vmem:[#allocation14 + $0x28] sm:$0xf]
        %v3116 = vld [vmem:[#allocation14 + $0x2c] sm:$0xf]
        %v3117 = vld [vmem:[#allocation14 + $0x30] sm:$0xf]
        %v3118 = vld [vmem:[#allocation14 + $0x34] sm:$0xf]
        %v3119 = vld [vmem:[#allocation14 + $0x38] sm:$0xf]
        %v3120 = vld [vmem:[#allocation14 + $0x3c] sm:$0xf]
        %v3121 = vld [vmem:[%s8] sm:$0x1]
        %v3123 = vperm.slane %v3121, 0
        %v3141 = vunpack.c.l.b16 %v3105
        %v3142 = vunpack.c.l.b16 %v3106
        %v3143 = vunpack.c.l.b16 %v3107
        %v3144 = vunpack.c.l.b16 %v3108
        %v3145 = vunpack.c.l.b16 %v3109
        %v3146 = vunpack.c.l.b16 %v3110
        %v3147 = vunpack.c.l.b16 %v3111
        %v3148 = vunpack.c.l.b16 %v3112
        %v3149 = vunpack.c.l.b16 %v3113
        %v3150 = vunpack.c.l.b16 %v3114
        %v3151 = vunpack.c.l.b16 %v3115
        %v3152 = vunpack.c.l.b16 %v3116
        %v3153 = vunpack.c.l.b16 %v3117
        %v3154 = vunpack.c.l.b16 %v3118
        %v3155 = vunpack.c.l.b16 %v3119
        %v3156 = vunpack.c.l.b16 %v3120
        %v3157 = vpack.c.b16 %v3142, %v3141
        %v3158 = vpack.c.b16 %v3144, %v3143
        %v3159 = vpack.c.b16 %v3146, %v3145
        %v3160 = vpack.c.b16 %v3148, %v3147
        %v3161 = vpack.c.b16 %v3150, %v3149
        %v3162 = vpack.c.b16 %v3152, %v3151
        %v3163 = vpack.c.b16 %v3154, %v3153
        %v3164 = vpack.c.b16 %v3156, %v3155
        %3173 = vmatpush.bf16.msra.mxu0 %v3164
        %3174 = vmatpush.bf16.msra.mxu0 %v3163
        %3175 = vmatpush.bf16.msra.mxu0 %v3162
        %3176 = vmatpush.bf16.msra.mxu0 %v3161
        %3177 = vmatpush.bf16.msra.mxu0 %v3160
        %3178 = vmatpush.bf16.msra.mxu0 %v3159
        %3179 = vmatpush.bf16.msra.mxu0 %v3158
        %3180 = vmatpush.bf16.msra.mxu0 %v3157
        %3181 = vmatmul.bf16.gmra.mxu0 %v3101
        %v3182 = vpop.f32.mrf.mxu0
        %v3183 = vadd.f32 %v3123, %v3182
        %v3184 = vpop.f32.mrf.mxu0
        %v3185 = vadd.f32 %v3123, %v3184
        %3186 = vmatmul.bf16.gmra.mxu0 %v3102
        %v3187 = vpop.f32.mrf.mxu0
        %v3188 = vadd.f32 %v3123, %v3187
        %v3189 = vpop.f32.mrf.mxu0
        %v3190 = vadd.f32 %v3123, %v3189
        %3191 = vmatmul.bf16.gmra.mxu0 %v3103
        %v3192 = vpop.f32.mrf.mxu0
        %v3193 = vadd.f32 %v3123, %v3192
        %v3194 = vpop.f32.mrf.mxu0
        %v3195 = vadd.f32 %v3123, %v3194
        %3196 = vmatmul.bf16.gmra.mxu0 %v3104
        %v3197 = vpop.f32.mrf.mxu0
        %v3198 = vadd.f32 %v3123, %v3197
        %v3199 = vpop.f32.mrf.mxu0
        %v3200 = vadd.f32 %v3123, %v3199
        %3201 = vdwg.mxu0
        %v3202 = vld [vmem:[#allocation4] sm:$0xff]
        %v3203 = vld [vmem:[#allocation4 + $0x8] sm:$0xff]
        %v3204 = vld [vmem:[#allocation4 + $0x10] sm:$0xff]
        %v3205 = vld [vmem:[#allocation4 + $0x18] sm:$0xff]
        %v3206 = vld [vmem:[#allocation4 + $0x20] sm:$0xff]
        %v3207 = vld [vmem:[#allocation4 + $0x28] sm:$0xff]
        %v3208 = vld [vmem:[#allocation4 + $0x30] sm:$0xff]
        %v3209 = vld [vmem:[#allocation4 + $0x38] sm:$0xff]
        %v3210 = vadd.f32 %v3183, %v3202
        %v3211 = vadd.f32 %v3185, %v3203
        %v3212 = vadd.f32 %v3188, %v3204
        %v3213 = vadd.f32 %v3190, %v3205
        %v3214 = vadd.f32 %v3193, %v3206
        %v3215 = vadd.f32 %v3195, %v3207
        %v3216 = vadd.f32 %v3198, %v3208
        %v3217 = vadd.f32 %v3200, %v3209
        %v3218 = vmax.f32 %v3210, 0.0
        %v3219 = vmax.f32 %v3211, 0.0
        %v3220 = vmax.f32 %v3212, 0.0
        %v3221 = vmax.f32 %v3213, 0.0
        %v3222 = vmax.f32 %v3214, 0.0
        %v3223 = vmax.f32 %v3215, 0.0
        %v3224 = vmax.f32 %v3216, 0.0
        %v3225 = vmax.f32 %v3217, 0.0
        %3226 = vst [vmem:[%s460] sm:$0xff] %v3218
        %3227 = vst [vmem:[%s460 + $0x8] sm:$0xff] %v3219
        %3228 = vst [vmem:[%s460 + $0x10] sm:$0xff] %v3220
        %3229 = vst [vmem:[%s460 + $0x18] sm:$0xff] %v3221
        %3230 = vst [vmem:[%s460 + $0x20] sm:$0xff] %v3222
        %3231 = vst [vmem:[%s460 + $0x28] sm:$0xff] %v3223
        %3232 = vst [vmem:[%s460 + $0x30] sm:$0xff] %v3224
        %3233 = vst [vmem:[%s460 + $0x38] sm:$0xff] %v3225
        %v3234 = vpack.c.bf16 %v3094, %v3093
        %v3235 = vpack.c.bf16 %v3096, %v3095
        %v3236 = vpack.c.bf16 %v3098, %v3097
        %v3237 = vpack.c.bf16 %v3100, %v3099
        %s3238 = scalar_lea.vmem [#allocation14], 64
        %v3239 = vld [vmem:[%s3238] sm:$0xf]
        %v3240 = vld [vmem:[%s3238 + $0x4] sm:$0xf]
        %v3241 = vld [vmem:[%s3238 + $0x8] sm:$0xf]
        %v3242 = vld [vmem:[%s3238 + $0xc] sm:$0xf]
        %v3243 = vld [vmem:[%s3238 + $0x10] sm:$0xf]
        %v3244 = vld [vmem:[%s3238 + $0x14] sm:$0xf]
        %v3245 = vld [vmem:[%s3238 + $0x18] sm:$0xf]
        %v3246 = vld [vmem:[%s3238 + $0x1c] sm:$0xf]
        %v3247 = vld [vmem:[%s3238 + $0x20] sm:$0xf]
        %v3248 = vld [vmem:[%s3238 + $0x24] sm:$0xf]
        %v3249 = vld [vmem:[%s3238 + $0x28] sm:$0xf]
        %v3250 = vld [vmem:[%s3238 + $0x2c] sm:$0xf]
        %v3251 = vld [vmem:[%s3238 + $0x30] sm:$0xf]
        %v3252 = vld [vmem:[%s3238 + $0x34] sm:$0xf]
        %v3253 = vld [vmem:[%s3238 + $0x38] sm:$0xf]
        %v3254 = vld [vmem:[%s3238 + $0x3c] sm:$0xf]
        %s3255 = scalar_lea.vmem %s8, 1
        %v3256 = vld [vmem:[%s3255] sm:$0x1]
        %v3258 = vperm.slane %v3256, 0
        %v3276 = vunpack.c.l.b16 %v3239
        %v3277 = vunpack.c.l.b16 %v3240
        %v3278 = vunpack.c.l.b16 %v3241
        %v3279 = vunpack.c.l.b16 %v3242
        %v3280 = vunpack.c.l.b16 %v3243
        %v3281 = vunpack.c.l.b16 %v3244
        %v3282 = vunpack.c.l.b16 %v3245
        %v3283 = vunpack.c.l.b16 %v3246
        %v3284 = vunpack.c.l.b16 %v3247
        %v3285 = vunpack.c.l.b16 %v3248
        %v3286 = vunpack.c.l.b16 %v3249
        %v3287 = vunpack.c.l.b16 %v3250
        %v3288 = vunpack.c.l.b16 %v3251
        %v3289 = vunpack.c.l.b16 %v3252
        %v3290 = vunpack.c.l.b16 %v3253
        %v3291 = vunpack.c.l.b16 %v3254
        %v3292 = vpack.c.b16 %v3277, %v3276
        %v3293 = vpack.c.b16 %v3279, %v3278
        %v3294 = vpack.c.b16 %v3281, %v3280
        %v3295 = vpack.c.b16 %v3283, %v3282
        %v3296 = vpack.c.b16 %v3285, %v3284
        %v3297 = vpack.c.b16 %v3287, %v3286
        %v3298 = vpack.c.b16 %v3289, %v3288
        %v3299 = vpack.c.b16 %v3291, %v3290
        %3308 = vmatpush.bf16.msra.mxu0 %v3299
        %3309 = vmatpush.bf16.msra.mxu0 %v3298
        %3310 = vmatpush.bf16.msra.mxu0 %v3297
        %3311 = vmatpush.bf16.msra.mxu0 %v3296
        %3312 = vmatpush.bf16.msra.mxu0 %v3295
        %3313 = vmatpush.bf16.msra.mxu0 %v3294
        %3314 = vmatpush.bf16.msra.mxu0 %v3293
        %3315 = vmatpush.bf16.msra.mxu0 %v3292
        %3316 = vmatmul.bf16.gmra.mxu0 %v3234
        %v3317 = vpop.f32.mrf.mxu0
        %v3318 = vadd.f32 %v3258, %v3317
        %v3319 = vpop.f32.mrf.mxu0
        %v3320 = vadd.f32 %v3258, %v3319
        %3321 = vmatmul.bf16.gmra.mxu0 %v3235
        %v3322 = vpop.f32.mrf.mxu0
        %v3323 = vadd.f32 %v3258, %v3322
        %v3324 = vpop.f32.mrf.mxu0
        %v3325 = vadd.f32 %v3258, %v3324
        %3326 = vmatmul.bf16.gmra.mxu0 %v3236
        %v3327 = vpop.f32.mrf.mxu0
        %v3328 = vadd.f32 %v3258, %v3327
        %v3329 = vpop.f32.mrf.mxu0
        %v3330 = vadd.f32 %v3258, %v3329
        %3331 = vmatmul.bf16.gmra.mxu0 %v3237
        %v3332 = vpop.f32.mrf.mxu0
        %v3333 = vadd.f32 %v3258, %v3332
        %v3334 = vpop.f32.mrf.mxu0
        %v3335 = vadd.f32 %v3258, %v3334
        %3336 = vdwg.mxu0
        %v3337 = vld [vmem:[%s1969] sm:$0xff]
        %v3338 = vld [vmem:[%s1969 + $0x8] sm:$0xff]
        %v3339 = vld [vmem:[%s1969 + $0x10] sm:$0xff]
        %v3340 = vld [vmem:[%s1969 + $0x18] sm:$0xff]
        %v3341 = vld [vmem:[%s1969 + $0x20] sm:$0xff]
        %v3342 = vld [vmem:[%s1969 + $0x28] sm:$0xff]
        %v3343 = vld [vmem:[%s1969 + $0x30] sm:$0xff]
        %v3344 = vld [vmem:[%s1969 + $0x38] sm:$0xff]
        %v3345 = vadd.f32 %v3318, %v3337
        %v3346 = vadd.f32 %v3320, %v3338
        %v3347 = vadd.f32 %v3323, %v3339
        %v3348 = vadd.f32 %v3325, %v3340
        %v3349 = vadd.f32 %v3328, %v3341
        %v3350 = vadd.f32 %v3330, %v3342
        %v3351 = vadd.f32 %v3333, %v3343
        %v3352 = vadd.f32 %v3335, %v3344
        %v3353 = vmax.f32 %v3345, 0.0
        %v3354 = vmax.f32 %v3346, 0.0
        %v3355 = vmax.f32 %v3347, 0.0
        %v3356 = vmax.f32 %v3348, 0.0
        %v3357 = vmax.f32 %v3349, 0.0
        %v3358 = vmax.f32 %v3350, 0.0
        %v3359 = vmax.f32 %v3351, 0.0
        %v3360 = vmax.f32 %v3352, 0.0
        %s3361 = scalar_lea.vmem %s460, 64 [#allocation16]
        %3362 = vst [vmem:[%s3361] sm:$0xff] %v3353
        %3363 = vst [vmem:[%s3361 + $0x8] sm:$0xff] %v3354
        %3364 = vst [vmem:[%s3361 + $0x10] sm:$0xff] %v3355
        %3365 = vst [vmem:[%s3361 + $0x18] sm:$0xff] %v3356
        %3366 = vst [vmem:[%s3361 + $0x20] sm:$0xff] %v3357
        %3367 = vst [vmem:[%s3361 + $0x28] sm:$0xff] %v3358
        %3368 = vst [vmem:[%s3361 + $0x30] sm:$0xff] %v3359
        %3369 = vst [vmem:[%s3361 + $0x38] sm:$0xff] %v3360
        %s3370 = sand.u32 %s231, 1
        %s3371 = scalar_lea.sflag [#allocation7], %s3370
        %s3372 = sand.u32 %s231, 1
        %s3373 = smul.addr %s3372, 128
        %s3374 = scalar_lea.vmem [#allocation16], %s3373
        // Predicated region
        $region81: #{tpu_custom_call.1} parent=55 // pred_check
          %p3375 = pneg %p241
        $region82: #{tpu_custom_call.1} parent=55 // pred_check_branch
          %3377 = sbr.rel (%p3375) target = $region84
        $region83: #{tpu_custom_call.1} parent=55 // pred_region
          #allocation20 [shape = 'u32[6]{0}', space=smem, size = 0x18, scoped, tag = 'DMA stride descriptor']
          %3379 = vsyncadd %s3371, 0
          %s3380 = smul.addr %s29, 8
          %s3381 = smul.addr %s3380, 8
          %s3382 = scalar_lea.hbm %s9, %s3381
          %s3384 = sshll.u32 1, 14
          %s3385 = sxor.u32 4294967295, %s3384
          %s3388 = sshll.u32 7, 18
          %s3389 = sxor.u32 4294967295, %s3388
          %s3390 = sand.u32 0, %s3389
          %s3392 = sor.u32 %s3390, 0
          %s3393 = sshll.u32 %s3374, 4
          %s3394 = int_to_ptr.vmem [resolvable:$true] %s3393
          %s3395 = sshll.u32 %s3382, 4
          %s3396 = int_to_ptr.hbm [resolvable:$true] %s3395
          %3402 = sst [smem:[#allocation20]] 1024
          %s3403 = scalar_lea.smem [#allocation20], 1
          %3404 = sst [smem:[%s3403]] 2048
          %s3405 = scalar_lea.smem [#allocation20], 2
          %3406 = sst [smem:[%s3405]] 8
          %s3407 = scalar_lea.smem [#allocation20], 3
          %3408 = sst [smem:[%s3407]] 128
          %s3409 = scalar_lea.smem [#allocation20], 4
          %3410 = sst [smem:[%s3409]] 128
          %s3411 = scalar_lea.smem [#allocation20], 5
          %3412 = sst [smem:[%s3411]] 8
          %3414 = dma.general %s3394, 2048, %s3396, %s3371, [#allocation19], [#allocation20], %s3392, 0
        $region84: #{tpu_custom_call.1} parent=55 // pred_fallthru
          _
      $region56: #{tpu_custom_call.1} parent=5 // pred_fallthru
        _
      %p3415 = scmp.le.s32.totalorder 2, %s24
      // Predicated region
      $region85: #{tpu_custom_call.1} parent=5 // pred_check
        %p3416 = pneg %p3415
      $region86: #{tpu_custom_call.1} parent=5 // pred_check_branch
        %3418 = sbr.rel (%p3416) target = $region88
      $region87: #{tpu_custom_call.1} parent=5 // pred_region
        %s3419 = ssub.s32 %s24, 2
        // Predicated region
        $region89: #{tpu_custom_call.1} parent=87 // pred_check
          %p3420 = pneg %p247
        $region90: #{tpu_custom_call.1} parent=87 // pred_check_branch
          %3422 = sbr.rel (%p3420) target = $region92
        $region91: #{tpu_custom_call.1} parent=87 // pred_region
          %s3423 = sand.u32 %s232, 1
          %s3424 = scalar_lea.sflag [#allocation7], %s3423
          %s3425 = sand.u32 %s232, 1
          %s3426 = smul.addr %s3425, 128
          %s3427 = scalar_lea.vmem [#allocation16], %s3426
          %3429 = dma.done %s3424, 2048
        $region92: #{tpu_custom_call.1} parent=87 // pred_fallthru
          _
      $region88: #{tpu_custom_call.1} parent=5 // pred_fallthru
        _
    $region6: #{tpu_custom_call.1} parent=1 // loop_footer
      %s28 = sadd.s32 1, %s24
    $region7: #{tpu_custom_call.1} parent=1 // loop_footer_branch
      %23 = sbr.rel target = $region3
    $region8: #{tpu_custom_call.1} parent=1 // loop_exit
      _
    %3430 = vsyncpa [#allocation6], 1
    %s3431 = scalar_lea.sflag [#allocation6], 1
    %3432 = vsyncpa %s3431, 1
    %3433 = vsyncpa [#allocation9], 1
    %3434 = vsyncpa [#allocation12], 1
    %3435 = vsyncpa [#allocation15], 1
    %3436 = vsyncpa [#allocation7], 1
    %s3437 = scalar_lea.sflag [#allocation7], 1
    %3438 = vsyncpa %s3437, 1

</llo_original>
